<compile_context>
chip_gen: v7x
topology: tpu7x:2x2x1
jax: 0.10.0
libtpu: 0.0.40
codegen_flags: <defaults>
</compile_context>

<pallas_src>
import functools

import jax
import jax.numpy as jnp
from jax.experimental import pallas as pl
from jax.experimental.pallas import tpu as pltpu


# ---------------------------------------------------------------------------
# Helpers.
# ---------------------------------------------------------------------------
def _round_up(v, m):
    return ((v + m - 1) // m) * m


def _pad2d(x, rows, cols):
    r, c = x.shape
    return jnp.pad(x, ((0, rows - r), (0, cols - c)))


def _to_bf16(x):
    return x if x.dtype == jnp.bfloat16 else x.astype(jnp.bfloat16)


def _pick_tile(dim, cap):
    """Largest tile in {cap, 512, 256, 128} that divides `dim` (dim % 128 == 0)."""
    for t in (cap, 512, 256, 128):
        if t <= cap and dim >= t and dim % t == 0:
            return t
    return dim


# ---------------------------------------------------------------------------
# Generic tiled  C = act(A @ B + bias)  kernel (bf16 MXU inputs, f32 acc).
# ---------------------------------------------------------------------------
def _matmul_bias_act_kernel(a_ref, b_ref, bias_ref, o_ref, acc_ref, *, relu):
    @pl.when(pl.program_id(2) == 0)
    def _init():
        acc_ref[...] = jnp.zeros_like(acc_ref)

    acc_ref[...] += jnp.dot(a_ref[...], b_ref[...],
                            preferred_element_type=jnp.float32)

    @pl.when(pl.program_id(2) == pl.num_programs(2) - 1)
    def _finalize():
        out = acc_ref[...] + bias_ref[...]          # f32 epilogue (v5e-safe)
        if relu:
            out = jnp.maximum(out, 0.0)
        o_ref[...] = out.astype(o_ref.dtype)


def matmul_bias_act(a, b, bias, *, relu=False, out_dtype=jnp.float32,
                    tm=None, tn=None, tk=None):
    """C = act(A @ B + bias).  a: [M, K], b: [K, N], bias: [1, N].

    All dimensions must already be multiples of 128.  Per-call tile overrides
    allow large row/reduction tiles for the HBM-bound adjacency GEMMs.
    """
    M, K = a.shape
    K2, N = b.shape
    assert K == K2 and bias.shape == (1, N)

    tm = tm if tm is not None else _pick_tile(M, 256)
    tn = tn if tn is not None else _pick_tile(N, 256)
    tk = tk if tk is not None else _pick_tile(K, 512)
    assert M % tm == 0 and N % tn == 0 and K % tk == 0

    a = _to_bf16(a)      # no-op if already bf16 (A_hat is cast once upstream)
    b = _to_bf16(b)
    bias = bias.astype(jnp.float32)
    out_bytes = jnp.dtype(out_dtype).itemsize

    # Working set: double-buffered bf16 input tiles + f32/out tiles + f32 acc,
    # with headroom; capped well below v7x's 64 MiB physical VMEM.
    tiles = 2 * (tm * tk + tk * tn) * 2 + 2 * (tm * tn + tn) * 4 + tm * tn * 4
    vmem_bytes = int(min(32 << 20, max(16 << 20, 2 * tiles)))

    cost = pl.CostEstimate(
        flops=2 * M * N * K,
        transcendentals=0,
        bytes_accessed=M * K * 2 + (M // tm) * K * N * 2 + M * N * out_bytes,
    )

    grid = (M // tm, N // tn, K // tk)
    kernel = functools.partial(_matmul_bias_act_kernel, relu=relu)
    return pl.pallas_call(
        kernel,
        out_shape=jax.ShapeDtypeStruct((M, N), out_dtype),
        grid_spec=pltpu.PrefetchScalarGridSpec(
            num_scalar_prefetch=0,
            grid=grid,
            in_specs=[
                pl.BlockSpec((tm, tk), lambda i, j, k: (i, k)),
                pl.BlockSpec((tk, tn), lambda i, j, k: (k, j)),
                pl.BlockSpec((1, tn), lambda i, j, k: (0, j)),
            ],
            out_specs=pl.BlockSpec((tm, tn), lambda i, j, k: (i, j)),
            scratch_shapes=[pltpu.VMEM((tm, tn), jnp.float32)],
        ),
        compiler_params=pltpu.CompilerParams(
            dimension_semantics=("parallel", "parallel", "arbitrary"),
            vmem_limit_bytes=vmem_bytes,
        ),
        cost_estimate=cost,
    )(a, b, bias)


# ---------------------------------------------------------------------------
# Fused layer-1 kernel:  hw2 = relu(A_hat @ XW1 + b1) @ W2
# The small W2 matmul rides in MXU slack during the bandwidth-bound A GEMM,
# so h never round-trips through HBM.
# ---------------------------------------------------------------------------
def _gcn1_fused_kernel(a_ref, xw1_ref, b1_ref, w2_ref, o_ref, acc_ref):
    @pl.when(pl.program_id(1) == 0)
    def _init():
        acc_ref[...] = jnp.zeros_like(acc_ref)

    acc_ref[...] += jnp.dot(a_ref[...], xw1_ref[...],
                            preferred_element_type=jnp.float32)

    @pl.when(pl.program_id(1) == pl.num_programs(1) - 1)
    def _finalize():
        h = jnp.maximum(acc_ref[...] + b1_ref[...], 0.0)   # f32 epilogue
        # TODO(synk): F.dropout(training=True) omitted -- eval-mode (identity)
        # semantics; a training kernel would mask h with pltpu.prng_random_bits.
        o_ref[...] = jnp.dot(h.astype(jnp.bfloat16), w2_ref[...],
                             preferred_element_type=jnp.float32
                             ).astype(o_ref.dtype)


def gcn1_fused(a_hat, xw1, b1, w2, *, tm, tk, out_dtype=jnp.bfloat16):
    """hw2 = relu(A_hat @ xw1 + b1) @ W2.

    a_hat: [N, N], xw1: [N, Mh], b1: [1, Mh], w2: [Mh, F].  Mh and F are the
    (padded) hidden / feature dims and live as full VMEM blocks.
    """
    n, n2 = a_hat.shape
    _, mh = xw1.shape
    mh2, f = w2.shape
    assert n == n2 and mh == mh2 and b1.shape == (1, mh)
    assert n % tm == 0 and n % tk == 0

    a_hat = _to_bf16(a_hat)
    xw1 = _to_bf16(xw1)
    w2 = _to_bf16(w2)
    b1 = b1.astype(jnp.float32)

    tiles = (2 * (tm * tk + tk * mh) * 2        # double-buffered bf16 A / xw1
             + 2 * tm * f * 2                   # double-buffered bf16 out
             + tm * mh * 4 + mh * f * 2 + mh * 4)
    vmem_bytes = int(min(32 << 20, max(16 << 20, 2 * tiles)))

    cost = pl.CostEstimate(
        flops=2 * n * n * mh + 2 * n * mh * f,
        transcendentals=0,
        bytes_accessed=n * n * 2 + (n // tm) * n * mh * 2 + n * f * 2,
    )

    return pl.pallas_call(
        _gcn1_fused_kernel,
        out_shape=jax.ShapeDtypeStruct((n, f), out_dtype),
        grid_spec=pltpu.PrefetchScalarGridSpec(
            num_scalar_prefetch=0,
            grid=(n // tm, n // tk),
            in_specs=[
                pl.BlockSpec((tm, tk), lambda i, k: (i, k)),
                pl.BlockSpec((tk, mh), lambda i, k: (k, 0)),
                pl.BlockSpec((1, mh), lambda i, k: (0, 0)),
                pl.BlockSpec((mh, f), lambda i, k: (0, 0)),
            ],
            out_specs=pl.BlockSpec((tm, f), lambda i, k: (i, 0)),
            scratch_shapes=[pltpu.VMEM((tm, mh), jnp.float32)],
        ),
        compiler_params=pltpu.CompilerParams(
            dimension_semantics=("parallel", "arbitrary"),
            vmem_limit_bytes=vmem_bytes,
        ),
        cost_estimate=cost,
    )(a_hat, xw1, b1, w2)


# ---------------------------------------------------------------------------
# scGNN forward (padding + three pallas_calls), jitted as one XLA program.
# ---------------------------------------------------------------------------
@jax.jit
def scgnn_forward(x, adj_norm, w1, b1, w2, b2):
    """out = A_hat @ (relu(A_hat @ (x @ W1) + b1) @ W2) + b2."""
    n, f_in = x.shape
    m_hidden = w1.shape[1]
    assert adj_norm.shape == (n, n)
    assert w1.shape == (f_in, m_hidden) and w2.shape == (m_hidden, f_in)

    # Pad the node dim to a multiple of 512 so the adjacency GEMMs always use
    # large row/reduction tiles; feature dims to a multiple of 128.
    n_p = _round_up(n, 512)
    f_p = _round_up(f_in, 128)
    m_p = _round_up(m_hidden, 128)

    # Row tile: large, but keep >= 2 row blocks so v7x's two TensorCores both
    # get work on the "parallel" axis (irrelevant on single-TC v5e/v6e).
    tm_adj = 512 if n_p >= 1024 else n_p // 2
    tk_adj = 512

    # A_hat: cast to bf16 and pad exactly once; reused by both A GEMMs.
    a_p = _pad2d(_to_bf16(adj_norm), n_p, n_p)
    x_p = _pad2d(x, n_p, f_p)
    w1_p = _pad2d(w1, f_p, m_p)
    w2_p = _pad2d(w2, m_p, f_p)
    b1_p = _pad2d(b1.reshape(1, -1).astype(jnp.float32), 1, m_p)
    b2_p = _pad2d(b2.reshape(1, -1).astype(jnp.float32), 1, f_p)
    zero_m = jnp.zeros((1, m_p), jnp.float32)

    # xw1 = x @ W1 hoisted: done once, not per adjacency row tile.
    xw1 = matmul_bias_act(x_p, w1_p, zero_m, out_dtype=jnp.bfloat16, tm=tm_adj)

    # Layer 1 + hoisted layer-2 feature transform, fused in one kernel:
    #   hw2 = relu(A_hat @ xw1 + b1) @ W2     (h never written to HBM)
    hw2 = gcn1_fused(a_p, xw1, b1_p, w2_p, tm=tm_adj, tk=tk_adj,
                     out_dtype=jnp.bfloat16)

    # Layer 2 aggregation: out = A_hat @ hw2 + b2.
    out = matmul_bias_act(a_p, hw2, b2_p, out_dtype=jnp.float32,
                          tm=tm_adj, tk=tk_adj)

    # Zero-padded A rows/cols and zero weight padding keep the valid region
    # exact; slice it back out.
    return out[:n, :f_in]


# ---------------------------------------------------------------------------
# Plain-JAX glue: adjacency normalization and parameter init.
# ---------------------------------------------------------------------------
def normalize_adj(adj):
    """A_hat = D^{-1/2} (A + I) D^{-1/2}."""
    n = adj.shape[0]
    a = adj + jnp.eye(n, dtype=adj.dtype)
    deg = jnp.sum(a, axis=1)
    d_inv_sqrt = jnp.where(deg > 0, 1.0 / jnp.sqrt(deg), 0.0)
    return a * d_inv_sqrt[:, None] * d_inv_sqrt[None, :]


def glorot(key, shape):
    fan_in, fan_out = shape
    limit = jnp.sqrt(6.0 / (fan_in + fan_out))
    return jax.random.uniform(key, shape, jnp.float32, -limit, limit)


if __name__ == "__main__":
    # Small, deterministic example consistent with scGNN(input_dim, middle_out).
    N = 256           # number of graph nodes (cells)
    INPUT_DIM = 128   # input feature dim
    MIDDLE_OUT = 64   # hidden dim of conv1 (padded to 128 inside the wrapper)

    key = jax.random.PRNGKey(0)
    kx, ka, kw1, kw2 = jax.random.split(key, 4)

    # Node features.
    x = jax.random.normal(kx, (N, INPUT_DIM), jnp.float32)

    # Random symmetric binary adjacency (no self loops; added in normalize_adj).
    a_rand = jax.random.uniform(ka, (N, N), jnp.float32)
    adj = (a_rand + a_rand.T > 1.4).astype(jnp.float32)
    adj = adj * (1.0 - jnp.eye(N, dtype=jnp.float32))
    adj_norm = normalize_adj(adj)

    # Deterministic GCNConv parameters (glorot weights, zero bias).
    w1 = glorot(kw1, (INPUT_DIM, MIDDLE_OUT))
    b1 = jnp.zeros((1, MIDDLE_OUT), jnp.float32)
    w2 = glorot(kw2, (MIDDLE_OUT, INPUT_DIM))
    b2 = jnp.zeros((1, INPUT_DIM), jnp.float32)

    out = scgnn_forward(x, adj_norm, w1, b1, w2, b2)
    jax.block_until_ready(out)

    # Pure-JAX f32 reference check (bf16 MXU inputs => loosened tolerance).
    h_ref = jnp.maximum(adj_norm @ (x @ w1) + b1, 0.0)
    out_ref = adj_norm @ (h_ref @ w2) + b2
    assert out.shape == (N, INPUT_DIM)
    rel_err = jnp.max(jnp.abs(out - out_ref)) / (jnp.max(jnp.abs(out_ref)) + 1e-8)
    assert rel_err < 5e-2, f"max relative error too large: {rel_err}"

    print("KERNEL_OK")
</pallas_src>

<mosaic_0001>
module attributes {stable_mosaic.version = 11 : i64} {
  func.func @_matmul_bias_act_kernel(%arg0: i32, %arg1: i32, %arg2: i32, %arg3: memref<256x128xbf16, #tpu.memory_space<vmem>>, %arg4: memref<128x128xbf16, #tpu.memory_space<vmem>>, %arg5: memref<1x128xf32, #tpu.memory_space<vmem>>, %arg6: memref<256x128xbf16, #tpu.memory_space<vmem>>, %arg7: memref<256x128xf32, #tpu.memory_space<vmem>>) attributes {dimension_semantics = [#tpu.dimension_semantics<parallel>, #tpu.dimension_semantics<parallel>, #tpu.dimension_semantics<arbitrary>], iteration_bounds = array<i64: 2, 1, 1>, scalar_prefetch = 0 : i64, scratch_operands = 1 : i64, tpu.core_type = #tpu.core_type<tc>, window_params = [{transform_indices = @transform_0, window_bounds = array<i64: 256, 128>}, {transform_indices = @transform_1, window_bounds = array<i64: 128, 128>}, {transform_indices = @transform_2, window_bounds = array<i64: 1, 128>}, {transform_indices = @transform_3, window_bounds = array<i64: 256, 128>}]} {
    %c0_i32 = arith.constant 0 : i32
    %0 = arith.cmpi eq, %arg2, %c0_i32 : i32
    %1 = arith.extui %0 : i1 to i32
    %c0_i32_0 = arith.constant 0 : i32
    %2 = arith.cmpi ne, %1, %c0_i32_0 : i32
    scf.if %2 {
      %cst_10 = arith.constant 0.000000e+00 : f32
      %12 = vector.broadcast %cst_10 : f32 to vector<256x128xf32>
      %c0_11 = arith.constant 0 : index
      %c0_12 = arith.constant 0 : index
      %13 = vector.load %arg7[%c0_11, %c0_12] : memref<256x128xf32, #tpu.memory_space<vmem>>, vector<256x128xf32>
      tpu.vector_store %arg7[%c0_11, %c0_12], %12 {strides = array<i32>} : memref<256x128xf32, #tpu.memory_space<vmem>>, vector<256x128xf32>,
    } else {
    }
    %c0 = arith.constant 0 : index
    %c0_1 = arith.constant 0 : index
    %3 = vector.load %arg7[%c0, %c0_1] : memref<256x128xf32, #tpu.memory_space<vmem>>, vector<256x128xf32>
    %c0_2 = arith.constant 0 : index
    %c0_3 = arith.constant 0 : index
    %4 = vector.load %arg3[%c0_2, %c0_3] : memref<256x128xbf16, #tpu.memory_space<vmem>>, vector<256x128xbf16>
    %c0_4 = arith.constant 0 : index
    %c0_5 = arith.constant 0 : index
    %5 = vector.load %arg4[%c0_4, %c0_5] : memref<128x128xbf16, #tpu.memory_space<vmem>>, vector<128x128xbf16>
    %cst = arith.constant dense<0.000000e+00> : vector<256x128xf32>
    %6 = tpu.matmul %4, %5, %cst {dimension_numbers = #tpu.dot_dimension_numbers<[1], [0], [0], [1], [0, 0, 1, 1], [], []>} : vector<256x128xbf16>, vector<128x128xbf16>, vector<256x128xf32> -> vector<256x128xf32>
    %7 = arith.addf %3, %6 : vector<256x128xf32>
    %c0_6 = arith.constant 0 : index
    %c0_7 = arith.constant 0 : index
    %8 = vector.load %arg7[%c0_6, %c0_7] : memref<256x128xf32, #tpu.memory_space<vmem>>, vector<256x128xf32>
    tpu.vector_store %arg7[%c0_6, %c0_7], %7 {strides = array<i32>} : memref<256x128xf32, #tpu.memory_space<vmem>>, vector<256x128xf32>,
    %c0_i32_8 = arith.constant 0 : i32
    %9 = arith.cmpi eq, %arg2, %c0_i32_8 : i32
    %10 = arith.extui %9 : i1 to i32
    %c0_i32_9 = arith.constant 0 : i32
    %11 = arith.cmpi ne, %10, %c0_i32_9 : i32
    scf.if %11 {
      %c0_10 = arith.constant 0 : index
      %c0_11 = arith.constant 0 : index
      %12 = vector.load %arg7[%c0_10, %c0_11] : memref<256x128xf32, #tpu.memory_space<vmem>>, vector<256x128xf32>
      %c0_12 = arith.constant 0 : index
      %c0_13 = arith.constant 0 : index
      %13 = vector.load %arg5[%c0_12, %c0_13] : memref<1x128xf32, #tpu.memory_space<vmem>>, vector<1x128xf32>
      %14 = vector.broadcast %13 : vector<1x128xf32> to vector<256x128xf32>
      %15 = arith.addf %12, %14 : vector<256x128xf32>
      %16 = arith.truncf %15 : vector<256x128xf32> to vector<256x128xbf16>
      %c0_14 = arith.constant 0 : index
      %c0_15 = arith.constant 0 : index
      %17 = vector.load %arg6[%c0_14, %c0_15] : memref<256x128xbf16, #tpu.memory_space<vmem>>, vector<256x128xbf16>
      tpu.vector_store %arg6[%c0_14, %c0_15], %16 {strides = array<i32>} : memref<256x128xbf16, #tpu.memory_space<vmem>>, vector<256x128xbf16>,
    } else {
    }
    return
  }
  func.func @transform_0(%arg0: i32, %arg1: i32, %arg2: i32) -> (i32, i32) {
    %c0_i32 = arith.constant 0 : i32
    return %arg0, %arg2 : i32, i32
  }
  func.func @transform_1(%arg0: i32, %arg1: i32, %arg2: i32) -> (i32, i32) {
    %c0_i32 = arith.constant 0 : i32
    return %arg2, %arg1 : i32, i32
  }
  func.func @transform_2(%arg0: i32, %arg1: i32, %arg2: i32) -> (i32, i32) {
    %c0_i32 = arith.constant 0 : i32
    %c0_i32_0 = arith.constant 0 : i32
    return %c0_i32, %arg1 : i32, i32
  }
  func.func @transform_3(%arg0: i32, %arg1: i32, %arg2: i32) -> (i32, i32) {
    %c0_i32 = arith.constant 0 : i32
    return %arg0, %arg1 : i32, i32
  }
}

module attributes {stable_mosaic.version = 11 : i64} {
  func.func @_matmul_bias_act_kernel(%arg0: i32, %arg1: i32, %arg2: i32, %arg3: memref<256x512xbf16, #tpu.memory_space<vmem>>, %arg4: memref<512x128xbf16, #tpu.memory_space<vmem>>, %arg5: memref<1x128xf32, #tpu.memory_space<vmem>>, %arg6: memref<256x128xf32, #tpu.memory_space<vmem>>, %arg7: memref<256x128xf32, #tpu.memory_space<vmem>>) attributes {dimension_semantics = [#tpu.dimension_semantics<parallel>, #tpu.dimension_semantics<parallel>, #tpu.dimension_semantics<arbitrary>], iteration_bounds = array<i64: 2, 1, 1>, scalar_prefetch = 0 : i64, scratch_operands = 1 : i64, tpu.core_type = #tpu.core_type<tc>, window_params = [{transform_indices = @transform_0, window_bounds = array<i64: 256, 512>}, {transform_indices = @transform_1, window_bounds = array<i64: 512, 128>}, {transform_indices = @transform_2, window_bounds = array<i64: 1, 128>}, {transform_indices = @transform_3, window_bounds = array<i64: 256, 128>}]} {
    %c0_i32 = arith.constant 0 : i32
    %0 = arith.cmpi eq, %arg2, %c0_i32 : i32
    %1 = arith.extui %0 : i1 to i32
    %c0_i32_0 = arith.constant 0 : i32
    %2 = arith.cmpi ne, %1, %c0_i32_0 : i32
    scf.if %2 {
      %cst_10 = arith.constant 0.000000e+00 : f32
      %12 = vector.broadcast %cst_10 : f32 to vector<256x128xf32>
      %c0_11 = arith.constant 0 : index
      %c0_12 = arith.constant 0 : index
      %13 = vector.load %arg7[%c0_11, %c0_12] : memref<256x128xf32, #tpu.memory_space<vmem>>, vector<256x128xf32>
      tpu.vector_store %arg7[%c0_11, %c0_12], %12 {strides = array<i32>} : memref<256x128xf32, #tpu.memory_space<vmem>>, vector<256x128xf32>,
    } else {
    }
    %c0 = arith.constant 0 : index
    %c0_1 = arith.constant 0 : index
    %3 = vector.load %arg7[%c0, %c0_1] : memref<256x128xf32, #tpu.memory_space<vmem>>, vector<256x128xf32>
    %c0_2 = arith.constant 0 : index
    %c0_3 = arith.constant 0 : index
    %4 = vector.load %arg3[%c0_2, %c0_3] : memref<256x512xbf16, #tpu.memory_space<vmem>>, vector<256x512xbf16>
    %c0_4 = arith.constant 0 : index
    %c0_5 = arith.constant 0 : index
    %5 = vector.load %arg4[%c0_4, %c0_5] : memref<512x128xbf16, #tpu.memory_space<vmem>>, vector<512x128xbf16>
    %cst = arith.constant dense<0.000000e+00> : vector<256x128xf32>
    %6 = tpu.matmul %4, %5, %cst {dimension_numbers = #tpu.dot_dimension_numbers<[1], [0], [0], [1], [0, 0, 1, 1], [], []>} : vector<256x512xbf16>, vector<512x128xbf16>, vector<256x128xf32> -> vector<256x128xf32>
    %7 = arith.addf %3, %6 : vector<256x128xf32>
    %c0_6 = arith.constant 0 : index
    %c0_7 = arith.constant 0 : index
    %8 = vector.load %arg7[%c0_6, %c0_7] : memref<256x128xf32, #tpu.memory_space<vmem>>, vector<256x128xf32>
    tpu.vector_store %arg7[%c0_6, %c0_7], %7 {strides = array<i32>} : memref<256x128xf32, #tpu.memory_space<vmem>>, vector<256x128xf32>,
    %c0_i32_8 = arith.constant 0 : i32
    %9 = arith.cmpi eq, %arg2, %c0_i32_8 : i32
    %10 = arith.extui %9 : i1 to i32
    %c0_i32_9 = arith.constant 0 : i32
    %11 = arith.cmpi ne, %10, %c0_i32_9 : i32
    scf.if %11 {
      %c0_10 = arith.constant 0 : index
      %c0_11 = arith.constant 0 : index
      %12 = vector.load %arg7[%c0_10, %c0_11] : memref<256x128xf32, #tpu.memory_space<vmem>>, vector<256x128xf32>
      %c0_12 = arith.constant 0 : index
      %c0_13 = arith.constant 0 : index
      %13 = vector.load %arg5[%c0_12, %c0_13] : memref<1x128xf32, #tpu.memory_space<vmem>>, vector<1x128xf32>
      %14 = vector.broadcast %13 : vector<1x128xf32> to vector<256x128xf32>
      %15 = arith.addf %12, %14 : vector<256x128xf32>
      %c0_14 = arith.constant 0 : index
      %c0_15 = arith.constant 0 : index
      %16 = vector.load %arg6[%c0_14, %c0_15] : memref<256x128xf32, #tpu.memory_space<vmem>>, vector<256x128xf32>
      tpu.vector_store %arg6[%c0_14, %c0_15], %15 {strides = array<i32>} : memref<256x128xf32, #tpu.memory_space<vmem>>, vector<256x128xf32>,
    } else {
    }
    return
  }
  func.func @transform_0(%arg0: i32, %arg1: i32, %arg2: i32) -> (i32, i32) {
    %c0_i32 = arith.constant 0 : i32
    return %arg0, %arg2 : i32, i32
  }
  func.func @transform_1(%arg0: i32, %arg1: i32, %arg2: i32) -> (i32, i32) {
    %c0_i32 = arith.constant 0 : i32
    return %arg2, %arg1 : i32, i32
  }
  func.func @transform_2(%arg0: i32, %arg1: i32, %arg2: i32) -> (i32, i32) {
    %c0_i32 = arith.constant 0 : i32
    %c0_i32_0 = arith.constant 0 : i32
    return %c0_i32, %arg1 : i32, i32
  }
  func.func @transform_3(%arg0: i32, %arg1: i32, %arg2: i32) -> (i32, i32) {
    %c0_i32 = arith.constant 0 : i32
    return %arg0, %arg1 : i32, i32
  }
}

module attributes {stable_mosaic.version = 11 : i64} {
  func.func @_gcn1_fused_kernel(%arg0: i32, %arg1: i32, %arg2: memref<256x512xbf16, #tpu.memory_space<vmem>>, %arg3: memref<512x128xbf16, #tpu.memory_space<vmem>>, %arg4: memref<1x128xf32, #tpu.memory_space<vmem>>, %arg5: memref<128x128xbf16, #tpu.memory_space<vmem>>, %arg6: memref<256x128xbf16, #tpu.memory_space<vmem>>, %arg7: memref<256x128xf32, #tpu.memory_space<vmem>>) attributes {dimension_semantics = [#tpu.dimension_semantics<parallel>, #tpu.dimension_semantics<arbitrary>], iteration_bounds = array<i64: 2, 1>, scalar_prefetch = 0 : i64, scratch_operands = 1 : i64, tpu.core_type = #tpu.core_type<tc>, window_params = [{transform_indices = @transform_0, window_bounds = array<i64: 256, 512>}, {transform_indices = @transform_1, window_bounds = array<i64: 512, 128>}, {pipeline_mode = #tpu.pipeline_mode<synchronous>, transform_indices = @transform_2, window_bounds = array<i64: 1, 128>}, {pipeline_mode = #tpu.pipeline_mode<synchronous>, transform_indices = @transform_3, window_bounds = array<i64: 128, 128>}, {transform_indices = @transform_4, window_bounds = array<i64: 256, 128>}]} {
    %c0_i32 = arith.constant 0 : i32
    %0 = arith.cmpi eq, %arg1, %c0_i32 : i32
    %1 = arith.extui %0 : i1 to i32
    %c0_i32_0 = arith.constant 0 : i32
    %2 = arith.cmpi ne, %1, %c0_i32_0 : i32
    scf.if %2 {
      %cst_10 = arith.constant 0.000000e+00 : f32
      %12 = vector.broadcast %cst_10 : f32 to vector<256x128xf32>
      %c0_11 = arith.constant 0 : index
      %c0_12 = arith.constant 0 : index
      %13 = vector.load %arg7[%c0_11, %c0_12] : memref<256x128xf32, #tpu.memory_space<vmem>>, vector<256x128xf32>
      tpu.vector_store %arg7[%c0_11, %c0_12], %12 {strides = array<i32>} : memref<256x128xf32, #tpu.memory_space<vmem>>, vector<256x128xf32>,
    } else {
    }
    %c0 = arith.constant 0 : index
    %c0_1 = arith.constant 0 : index
    %3 = vector.load %arg7[%c0, %c0_1] : memref<256x128xf32, #tpu.memory_space<vmem>>, vector<256x128xf32>
    %c0_2 = arith.constant 0 : index
    %c0_3 = arith.constant 0 : index
    %4 = vector.load %arg2[%c0_2, %c0_3] : memref<256x512xbf16, #tpu.memory_space<vmem>>, vector<256x512xbf16>
    %c0_4 = arith.constant 0 : index
    %c0_5 = arith.constant 0 : index
    %5 = vector.load %arg3[%c0_4, %c0_5] : memref<512x128xbf16, #tpu.memory_space<vmem>>, vector<512x128xbf16>
    %cst = arith.constant dense<0.000000e+00> : vector<256x128xf32>
    %6 = tpu.matmul %4, %5, %cst {dimension_numbers = #tpu.dot_dimension_numbers<[1], [0], [0], [1], [0, 0, 1, 1], [], []>} : vector<256x512xbf16>, vector<512x128xbf16>, vector<256x128xf32> -> vector<256x128xf32>
    %7 = arith.addf %3, %6 : vector<256x128xf32>
    %c0_6 = arith.constant 0 : index
    %c0_7 = arith.constant 0 : index
    %8 = vector.load %arg7[%c0_6, %c0_7] : memref<256x128xf32, #tpu.memory_space<vmem>>, vector<256x128xf32>
    tpu.vector_store %arg7[%c0_6, %c0_7], %7 {strides = array<i32>} : memref<256x128xf32, #tpu.memory_space<vmem>>, vector<256x128xf32>,
    %c0_i32_8 = arith.constant 0 : i32
    %9 = arith.cmpi eq, %arg1, %c0_i32_8 : i32
    %10 = arith.extui %9 : i1 to i32
    %c0_i32_9 = arith.constant 0 : i32
    %11 = arith.cmpi ne, %10, %c0_i32_9 : i32
    scf.if %11 {
      %c0_10 = arith.constant 0 : index
      %c0_11 = arith.constant 0 : index
      %12 = vector.load %arg7[%c0_10, %c0_11] : memref<256x128xf32, #tpu.memory_space<vmem>>, vector<256x128xf32>
      %c0_12 = arith.constant 0 : index
      %c0_13 = arith.constant 0 : index
      %13 = vector.load %arg4[%c0_12, %c0_13] : memref<1x128xf32, #tpu.memory_space<vmem>>, vector<1x128xf32>
      %14 = vector.broadcast %13 : vector<1x128xf32> to vector<256x128xf32>
      %15 = arith.addf %12, %14 : vector<256x128xf32>
      %cst_14 = arith.constant 0.000000e+00 : f32
      %16 = vector.broadcast %cst_14 : f32 to vector<256x128xf32>
      %17 = arith.maximumf %15, %16 : vector<256x128xf32>
      %18 = arith.truncf %17 : vector<256x128xf32> to vector<256x128xbf16>
      %c0_15 = arith.constant 0 : index
      %c0_16 = arith.constant 0 : index
      %19 = vector.load %arg5[%c0_15, %c0_16] : memref<128x128xbf16, #tpu.memory_space<vmem>>, vector<128x128xbf16>
      %cst_17 = arith.constant dense<0.000000e+00> : vector<256x128xf32>
      %20 = tpu.matmul %18, %19, %cst_17 {dimension_numbers = #tpu.dot_dimension_numbers<[1], [0], [0], [1], [0, 0, 1, 1], [], []>} : vector<256x128xbf16>, vector<128x128xbf16>, vector<256x128xf32> -> vector<256x128xf32>
      %21 = arith.truncf %20 : vector<256x128xf32> to vector<256x128xbf16>
      %c0_18 = arith.constant 0 : index
      %c0_19 = arith.constant 0 : index
      %22 = vector.load %arg6[%c0_18, %c0_19] : memref<256x128xbf16, #tpu.memory_space<vmem>>, vector<256x128xbf16>
      tpu.vector_store %arg6[%c0_18, %c0_19], %21 {strides = array<i32>} : memref<256x128xbf16, #tpu.memory_space<vmem>>, vector<256x128xbf16>,
    } else {
    }
    return
  }
  func.func @transform_0(%arg0: i32, %arg1: i32) -> (i32, i32) {
    %c0_i32 = arith.constant 0 : i32
    return %arg0, %arg1 : i32, i32
  }
  func.func @transform_1(%arg0: i32, %arg1: i32) -> (i32, i32) {
    %c0_i32 = arith.constant 0 : i32
    %c0_i32_0 = arith.constant 0 : i32
    return %arg1, %c0_i32 : i32, i32
  }
  func.func @transform_2(%arg0: i32, %arg1: i32) -> (i32, i32) {
    %c0_i32 = arith.constant 0 : i32
    %c0_i32_0 = arith.constant 0 : i32
    %c0_i32_1 = arith.constant 0 : i32
    return %c0_i32, %c0_i32_0 : i32, i32
  }
  func.func @transform_3(%arg0: i32, %arg1: i32) -> (i32, i32) {
    %c0_i32 = arith.constant 0 : i32
    %c0_i32_0 = arith.constant 0 : i32
    %c0_i32_1 = arith.constant 0 : i32
    return %c0_i32, %c0_i32_0 : i32, i32
  }
  func.func @transform_4(%arg0: i32, %arg1: i32) -> (i32, i32) {
    %c0_i32 = arith.constant 0 : i32
    %c0_i32_0 = arith.constant 0 : i32
    return %arg0, %c0_i32 : i32, i32
  }
}

</mosaic_0001>

<llo_original>
// kernel: scgnn_forward.3
$region0: #{scgnn_forward.3}
  #allocation0 [shape = 'u32[]', space=smem, size = 0x4, offset = 0x4, fixed_abs, tag = 'smem constant byte address 0x4 - core index']
  #allocation1 [shape = 'u32[144,128]{1,0:T(1,128)}', space=vmem, size = 0x12000, scoped, tag = 'internal scratch']
  #allocation2 [shape = 'f32[256,128]{1,0:T(8,128)}', space=vmem, size = 0x20000, scoped, tag = 'scratch operand']
  %s0 = inlined_call_operand.vmem [shape: bf16[512,128], index: 0, kind: input, shape index: {}]
  %s1 = inlined_call_operand.vmem [shape: bf16[128,128], index: 1, kind: input, shape index: {}]
  %s2 = inlined_call_operand.vmem [shape: f32[1,128], index: 2, kind: input, shape index: {}]
  %s3 = inlined_call_operand.vmem [shape: bf16[512,128], index: 3, kind: output, shape index: {}]
  %s4 = sld [smem:[#allocation0]]
  $region53: #{scgnn_forward.3} parent=0
    _
  %s6 = ssub.s32 1, %s4
  %s7 = scalar_select 0, %s6, %s4
  loop: start=0, step=1, limit=4
  $region2: #{scgnn_forward.3} parent=0 // loop_pre_header
    _
  $region3: #{scgnn_forward.3} parent=0 // loop_header
    %s9 = sphi 0, %s13
    %p10 = scmp.ge.s32.totalorder %s9, 4
    %s16 = sphi 0, %s35
    %s17 = sphi 0, %s31
    %s18 = sphi 0, %s27
    %s19 = sphi 0, %s16
    %s20 = sphi 0, %s17
    %s21 = sphi 0, %s18
    %s22 = sphi 0, %s19
    %s23 = sphi 0, %s20
    %s24 = sphi 0, %s21
    %s40 = sphi 0, %s42
    %s43 = sphi 0, %s40
    %s44 = sphi 0, %s43
    %s60 = sphi 0, %s44
    %s68 = sphi 0, %s70
    %s71 = sphi 0, %s68
    %s72 = sphi 0, %s71
    %s88 = sphi 0, %s72
    %s94 = sphi 0, %s96
    %s97 = sphi 0, %s94
    %s98 = sphi 0, %s97
    %s114 = sphi 0, %s98
    %s122 = sphi 0, %s124
    %s125 = sphi 0, %s122
    %s126 = sphi 0, %s125
    %s142 = sphi 0, %s126
  $region4: #{scgnn_forward.3} parent=0 // loop_header_branch
    %12 = sbr.rel (%p10) target = $region8
  $region5: #{scgnn_forward.3} parent=0 // loop_body
    %s14 = ssub.s32 %s9, 1
    %s15 = ssub.s32 %s9, 2
    %s25 = sadd.s32 1, %s18
    %p26 = scmp.ge.s32.totalorder %s25, 1
    %s27 = scalar_select %p26, 0, %s25
    %s28 = sadd.s32 1, %s17
    %s29 = scalar_select %p26, %s28, %s17
    %p30 = scmp.ge.s32.totalorder %s29, 1
    %s31 = scalar_select %p30, 0, %s29
    %s32 = sadd.s32 1, %s16
    %s33 = scalar_select %p30, %s32, %s16
    %p34 = scmp.ge.s32.totalorder %s33, 2
    %s35 = scalar_select %p34, 0, %s33
    %s36 = ssub.s32 %s16, %s35
    %s37 = ssub.s32 %s18, %s27
    %s38 = sor.u32 %s36, %s37
    %p39 = scmp.eq.s32.totalorder %s38, 0
    %s41 = sadd.s32 %s40, 1
    %s42 = scalar_select %p39, %s40, %s41
    %p45 = pneg %p39
    %p46 = scmp.eq.s32.totalorder %s9, 1
    %p47 = por %p45, %p46
    %p48 = scmp.ne.s32.totalorder %s40, %s43
    %p49 = scmp.eq.s32.totalorder %s9, 0
    %p50 = por %p48, %p49
    %p51 = scmp.ne.s32.totalorder %s40, %s43
    %p52 = scmp.eq.s32.totalorder %s14, 1
    %p53 = por %p51, %p52
    %p54 = scmp.ne.s32.totalorder %s43, %s44
    %p55 = scmp.eq.s32.totalorder %s14, 0
    %p56 = por %p54, %p55
    %p57 = scmp.ne.s32.totalorder %s43, %s44
    %p58 = scmp.eq.s32.totalorder %s15, 1
    %p59 = por %p57, %p58
    %p61 = scmp.ne.s32.totalorder %s44, %s60
    %p62 = scmp.eq.s32.totalorder %s15, 0
    %p63 = por %p61, %p62
    %s64 = ssub.s32 %s18, %s27
    %s65 = ssub.s32 %s17, %s31
    %s66 = sor.u32 %s64, %s65
    %p67 = scmp.eq.s32.totalorder %s66, 0
    %s69 = sadd.s32 %s68, 1
    %s70 = scalar_select %p67, %s68, %s69
    %p73 = pneg %p67
    %p74 = scmp.eq.s32.totalorder %s9, 1
    %p75 = por %p73, %p74
    %p76 = scmp.ne.s32.totalorder %s68, %s71
    %p77 = scmp.eq.s32.totalorder %s9, 0
    %p78 = por %p76, %p77
    %p79 = scmp.ne.s32.totalorder %s68, %s71
    %p80 = scmp.eq.s32.totalorder %s14, 1
    %p81 = por %p79, %p80
    %p82 = scmp.ne.s32.totalorder %s71, %s72
    %p83 = scmp.eq.s32.totalorder %s14, 0
    %p84 = por %p82, %p83
    %p85 = scmp.ne.s32.totalorder %s71, %s72
    %p86 = scmp.eq.s32.totalorder %s15, 1
    %p87 = por %p85, %p86
    %p89 = scmp.ne.s32.totalorder %s72, %s88
    %p90 = scmp.eq.s32.totalorder %s15, 0
    %p91 = por %p89, %p90
    %s92 = ssub.s32 %s17, %s31
    %p93 = scmp.eq.s32.totalorder %s92, 0
    %s95 = sadd.s32 %s94, 1
    %s96 = scalar_select %p93, %s94, %s95
    %p99 = pneg %p93
    %p100 = scmp.eq.s32.totalorder %s9, 1
    %p101 = por %p99, %p100
    %p102 = scmp.ne.s32.totalorder %s94, %s97
    %p103 = scmp.eq.s32.totalorder %s9, 0
    %p104 = por %p102, %p103
    %p105 = scmp.ne.s32.totalorder %s94, %s97
    %p106 = scmp.eq.s32.totalorder %s14, 1
    %p107 = por %p105, %p106
    %p108 = scmp.ne.s32.totalorder %s97, %s98
    %p109 = scmp.eq.s32.totalorder %s14, 0
    %p110 = por %p108, %p109
    %p111 = scmp.ne.s32.totalorder %s97, %s98
    %p112 = scmp.eq.s32.totalorder %s15, 1
    %p113 = por %p111, %p112
    %p115 = scmp.ne.s32.totalorder %s98, %s114
    %p116 = scmp.eq.s32.totalorder %s15, 0
    %p117 = por %p115, %p116
    %s118 = ssub.s32 %s16, %s35
    %s119 = ssub.s32 %s17, %s31
    %s120 = sor.u32 %s118, %s119
    %p121 = scmp.eq.s32.totalorder %s120, 0
    %s123 = sadd.s32 %s122, 1
    %s124 = scalar_select %p121, %s122, %s123
    %p127 = pneg %p121
    %p128 = scmp.eq.s32.totalorder %s9, 1
    %p129 = por %p127, %p128
    %p130 = scmp.ne.s32.totalorder %s122, %s125
    %p131 = scmp.eq.s32.totalorder %s9, 0
    %p132 = por %p130, %p131
    %p133 = scmp.ne.s32.totalorder %s122, %s125
    %p134 = scmp.eq.s32.totalorder %s14, 1
    %p135 = por %p133, %p134
    %p136 = scmp.ne.s32.totalorder %s125, %s126
    %p137 = scmp.eq.s32.totalorder %s14, 0
    %p138 = por %p136, %p137
    %p139 = scmp.ne.s32.totalorder %s125, %s126
    %p140 = scmp.eq.s32.totalorder %s15, 1
    %p141 = por %p139, %p140
    %p143 = scmp.ne.s32.totalorder %s126, %s142
    %p144 = scmp.eq.s32.totalorder %s15, 0
    %p145 = por %p143, %p144
    %p146 = scmp.le.s32.totalorder 1, %s9
    %p147 = scmp.lt.s32.totalorder %s9, 3
    %p148 = pnand %p146, %p147
    %p149 = pneg %p148
    // Predicated region
    $region9: #{scgnn_forward.3} parent=5 // pred_check
      _
    $region10: #{scgnn_forward.3} parent=5 // pred_check_branch
      %151 = sbr.rel (%p148) target = $region12
    $region11: #{scgnn_forward.3} parent=5 // pred_region
      %s152 = ssub.s32 %s9, 1
      // Predicated region
      $region13: #{scgnn_forward.3} parent=11 // pred_check
        %p153 = pneg %p84
      $region14: #{scgnn_forward.3} parent=11 // pred_check_branch
        %155 = sbr.rel (%p153) target = $region16
      $region15: #{scgnn_forward.3} parent=11 // pred_region
        %s156 = smul.u32 16, %s21
        %p157 = scmp.lt.s32.totalorder %s156, 15
        %s158 = scalar_select %p157, %s156, 15
        %p159 = scmp.lt.s32.totalorder %s20, 0
        %s160 = scalar_select %p159, %s20, 0
        %s161 = sadd.s32 %s160, %s158
        %s162 = smul.addr %s161, 4
        %s163 = scalar_lea.vmem %s1, %s162
        %s164 = smul.u32 16, %s21
      $region16: #{scgnn_forward.3} parent=11 // pred_fallthru
        _
      // Predicated region
      $region17: #{scgnn_forward.3} parent=11 // pred_check
        %p165 = pneg %p110
      $region18: #{scgnn_forward.3} parent=11 // pred_check_branch
        %167 = sbr.rel (%p165) target = $region20
      $region19: #{scgnn_forward.3} parent=11 // pred_region
        %p168 = scmp.lt.s32.totalorder %s20, 0
        %s169 = scalar_select %p168, %s20, 0
        %s170 = scalar_lea.vmem %s2, %s169
      $region20: #{scgnn_forward.3} parent=11 // pred_fallthru
        _
    $region12: #{scgnn_forward.3} parent=5 // pred_fallthru
      _
    %p171 = scmp.lt.s32.totalorder %s9, 2
    // Predicated region
    $region21: #{scgnn_forward.3} parent=5 // pred_check
      %p172 = pneg %p171
    $region22: #{scgnn_forward.3} parent=5 // pred_check_branch
      %174 = sbr.rel (%p172) target = $region24
    $region23: #{scgnn_forward.3} parent=5 // pred_region
      // Predicated region
      $region25: #{scgnn_forward.3} parent=23 // pred_check
        %p175 = pneg %p50
      $region26: #{scgnn_forward.3} parent=23 // pred_check_branch
        %177 = sbr.rel (%p175) target = $region28
      $region27: #{scgnn_forward.3} parent=23 // pred_region
        %s178 = smul.u32 32, %s16
        %p179 = scmp.lt.s32.totalorder %s178, 63
        %s180 = scalar_select %p179, %s178, 63
        %p181 = scmp.lt.s32.totalorder %s18, 0
        %s182 = scalar_select %p181, %s18, 0
        %s183 = sadd.s32 %s182, %s180
        %s184 = smul.addr %s183, 4
        %s185 = scalar_lea.vmem %s0, %s184
        %s186 = smul.u32 32, %s16
      $region28: #{scgnn_forward.3} parent=23 // pred_fallthru
        _
    $region24: #{scgnn_forward.3} parent=5 // pred_fallthru
      _
    %p187 = scmp.le.s32.totalorder 1, %s9
    %p188 = scmp.lt.s32.totalorder %s9, 3
    %p189 = pnand %p187, %p188
    %p190 = pneg %p189
    // Predicated region
    $region29: #{scgnn_forward.3} parent=5 // pred_check
      _
    $region30: #{scgnn_forward.3} parent=5 // pred_check_branch
      %192 = sbr.rel (%p189) target = $region32
    $region31: #{scgnn_forward.3} parent=5 // pred_region
      %s193 = ssub.s32 %s9, 1
      %s194 = smul.u32 32, %s19
      %p195 = scmp.lt.s32.totalorder %s194, 63
      %s196 = scalar_select %p195, %s194, 63
      %p197 = scmp.lt.s32.totalorder %s21, 0
      %s198 = scalar_select %p197, %s21, 0
      %s199 = sadd.s32 %s198, %s196
      %s200 = smul.addr %s199, 4
      %s201 = scalar_lea.vmem %s0, %s200
      %p202 = pneg %p56
      %p203 = pneg %p53
      %s204 = smul.u32 16, %s21
      %p205 = scmp.lt.s32.totalorder %s204, 15
      %s206 = scalar_select %p205, %s204, 15
      %p207 = scmp.lt.s32.totalorder %s20, 0
      %s208 = scalar_select %p207, %s20, 0
      %s209 = sadd.s32 %s208, %s206
      %s210 = smul.addr %s209, 4
      %s211 = scalar_lea.vmem %s1, %s210
      %p212 = pneg %p84
      %p213 = pneg %p81
      %p214 = scmp.lt.s32.totalorder %s20, 0
      %s215 = scalar_select %p214, %s20, 0
      %s216 = scalar_lea.vmem %s2, %s215
      %p217 = pneg %p110
      %p218 = pneg %p107
      %p219 = pneg %p138
      %p220 = pneg %p135
      %s221 = smul.u32 32, %s19
      %p222 = scmp.lt.s32.totalorder %s221, 63
      %s223 = scalar_select %p222, %s221, 63
      %p224 = scmp.lt.s32.totalorder %s20, 0
      %s225 = scalar_select %p224, %s20, 0
      %s226 = sadd.s32 %s225, %s223
      %s227 = smul.addr %s226, 4
      %s228 = scalar_lea.vmem %s3, %s227
      %s229 = smul.u32 32, %s19
      %p230 = scmp.lt.s32.totalorder %s229, 63
      %s231 = scalar_select %p230, %s229, 63
      %p232 = scmp.lt.s32.totalorder %s21, 0
      %s233 = scalar_select %p232, %s21, 0
      %s234 = sadd.s32 %s233, %s231
      %s235 = smul.addr %s234, 4
      %s236 = scalar_lea.vmem %s0, %s235
      %s237 = smul.u32 32, %s19
      %s238 = smul.u32 16, %s21
      %p239 = scmp.lt.s32.totalorder %s238, 15
      %s240 = scalar_select %p239, %s238, 15
      %p241 = scmp.lt.s32.totalorder %s20, 0
      %s242 = scalar_select %p241, %s20, 0
      %s243 = sadd.s32 %s242, %s240
      %s244 = smul.addr %s243, 4
      %s245 = scalar_lea.vmem %s1, %s244
      %s246 = smul.u32 16, %s21
      %p247 = scmp.lt.s32.totalorder %s20, 0
      %s248 = scalar_select %p247, %s20, 0
      %s249 = scalar_lea.vmem %s2, %s248
      %s250 = smul.u32 32, %s19
      %p251 = scmp.lt.s32.totalorder %s250, 63
      %s252 = scalar_select %p251, %s250, 63
      %p253 = scmp.lt.s32.totalorder %s20, 0
      %s254 = scalar_select %p253, %s20, 0
      %s255 = sadd.s32 %s254, %s252
      %s256 = smul.addr %s255, 4
      %s257 = scalar_lea.vmem %s3, %s256
      %s258 = smul.u32 32, %s19
      %p260 = scmp.eq.s32.totalorder %s21, 0
      // Predicated region
      $region33: #{scgnn_forward.3} parent=31 // pred_check
        %p261 = pneg %p260
      $region34: #{scgnn_forward.3} parent=31 // pred_check_branch
        %263 = sbr.rel (%p261) target = $region36
      $region35: #{scgnn_forward.3} parent=31 // pred_region
        %264 = vst [vmem:[#allocation2] sm:$0xff] 0.0
        %265 = vst [vmem:[#allocation2 + $0x8] sm:$0xff] 0.0
        %266 = vst [vmem:[#allocation2 + $0x10] sm:$0xff] 0.0
        %267 = vst [vmem:[#allocation2 + $0x18] sm:$0xff] 0.0
        %268 = vst [vmem:[#allocation2 + $0x20] sm:$0xff] 0.0
        %269 = vst [vmem:[#allocation2 + $0x28] sm:$0xff] 0.0
        %270 = vst [vmem:[#allocation2 + $0x30] sm:$0xff] 0.0
        %271 = vst [vmem:[#allocation2 + $0x38] sm:$0xff] 0.0
        %272 = vst [vmem:[#allocation2 + $0x40] sm:$0xff] 0.0
        %273 = vst [vmem:[#allocation2 + $0x48] sm:$0xff] 0.0
        %274 = vst [vmem:[#allocation2 + $0x50] sm:$0xff] 0.0
        %275 = vst [vmem:[#allocation2 + $0x58] sm:$0xff] 0.0
        %276 = vst [vmem:[#allocation2 + $0x60] sm:$0xff] 0.0
        %277 = vst [vmem:[#allocation2 + $0x68] sm:$0xff] 0.0
        %278 = vst [vmem:[#allocation2 + $0x70] sm:$0xff] 0.0
        %279 = vst [vmem:[#allocation2 + $0x78] sm:$0xff] 0.0
        %280 = vst [vmem:[#allocation2 + $0x80] sm:$0xff] 0.0
        %281 = vst [vmem:[#allocation2 + $0x88] sm:$0xff] 0.0
        %282 = vst [vmem:[#allocation2 + $0x90] sm:$0xff] 0.0
        %283 = vst [vmem:[#allocation2 + $0x98] sm:$0xff] 0.0
        %284 = vst [vmem:[#allocation2 + $0xa0] sm:$0xff] 0.0
        %285 = vst [vmem:[#allocation2 + $0xa8] sm:$0xff] 0.0
        %286 = vst [vmem:[#allocation2 + $0xb0] sm:$0xff] 0.0
        %287 = vst [vmem:[#allocation2 + $0xb8] sm:$0xff] 0.0
        %288 = vst [vmem:[#allocation2 + $0xc0] sm:$0xff] 0.0
        %289 = vst [vmem:[#allocation2 + $0xc8] sm:$0xff] 0.0
        %290 = vst [vmem:[#allocation2 + $0xd0] sm:$0xff] 0.0
        %291 = vst [vmem:[#allocation2 + $0xd8] sm:$0xff] 0.0
        %292 = vst [vmem:[#allocation2 + $0xe0] sm:$0xff] 0.0
        %293 = vst [vmem:[#allocation2 + $0xe8] sm:$0xff] 0.0
        %294 = vst [vmem:[#allocation2 + $0xf0] sm:$0xff] 0.0
        %295 = vst [vmem:[#allocation2 + $0xf8] sm:$0xff] 0.0
      $region36: #{scgnn_forward.3} parent=31 // pred_fallthru
        _
      %v296 = vld [vmem:[#allocation2] sm:$0xff]
      %v297 = vld [vmem:[#allocation2 + $0x8] sm:$0xff]
      %v298 = vld [vmem:[#allocation2 + $0x10] sm:$0xff]
      %v299 = vld [vmem:[#allocation2 + $0x18] sm:$0xff]
      %v300 = vld [vmem:[#allocation2 + $0x20] sm:$0xff]
      %v301 = vld [vmem:[#allocation2 + $0x28] sm:$0xff]
      %v302 = vld [vmem:[#allocation2 + $0x30] sm:$0xff]
      %v303 = vld [vmem:[#allocation2 + $0x38] sm:$0xff]
      %v304 = vld [vmem:[#allocation2 + $0x40] sm:$0xff]
      %v305 = vld [vmem:[#allocation2 + $0x48] sm:$0xff]
      %v306 = vld [vmem:[#allocation2 + $0x50] sm:$0xff]
      %v307 = vld [vmem:[#allocation2 + $0x58] sm:$0xff]
      %v308 = vld [vmem:[#allocation2 + $0x60] sm:$0xff]
      %v309 = vld [vmem:[#allocation2 + $0x68] sm:$0xff]
      %v310 = vld [vmem:[#allocation2 + $0x70] sm:$0xff]
      %v311 = vld [vmem:[#allocation2 + $0x78] sm:$0xff]
      %v312 = vld [vmem:[#allocation2 + $0x80] sm:$0xff]
      %v313 = vld [vmem:[#allocation2 + $0x88] sm:$0xff]
      %v314 = vld [vmem:[#allocation2 + $0x90] sm:$0xff]
      %v315 = vld [vmem:[#allocation2 + $0x98] sm:$0xff]
      %v316 = vld [vmem:[#allocation2 + $0xa0] sm:$0xff]
      %v317 = vld [vmem:[#allocation2 + $0xa8] sm:$0xff]
      %v318 = vld [vmem:[#allocation2 + $0xb0] sm:$0xff]
      %v319 = vld [vmem:[#allocation2 + $0xb8] sm:$0xff]
      %v320 = vld [vmem:[#allocation2 + $0xc0] sm:$0xff]
      %v321 = vld [vmem:[#allocation2 + $0xc8] sm:$0xff]
      %v322 = vld [vmem:[#allocation2 + $0xd0] sm:$0xff]
      %v323 = vld [vmem:[#allocation2 + $0xd8] sm:$0xff]
      %v324 = vld [vmem:[#allocation2 + $0xe0] sm:$0xff]
      %v325 = vld [vmem:[#allocation2 + $0xe8] sm:$0xff]
      %v326 = vld [vmem:[#allocation2 + $0xf0] sm:$0xff]
      %v327 = vld [vmem:[#allocation2 + $0xf8] sm:$0xff]
      %v328 = vld [vmem:[%s236] sm:$0xf]
      %v329 = vld [vmem:[%s236 + $0x4] sm:$0xf]
      %v330 = vld [vmem:[%s236 + $0x8] sm:$0xf]
      %v331 = vld [vmem:[%s236 + $0xc] sm:$0xf]
      %v332 = vld [vmem:[%s236 + $0x10] sm:$0xf]
      %v333 = vld [vmem:[%s236 + $0x14] sm:$0xf]
      %v334 = vld [vmem:[%s236 + $0x18] sm:$0xf]
      %v335 = vld [vmem:[%s236 + $0x1c] sm:$0xf]
      %v336 = vld [vmem:[%s236 + $0x20] sm:$0xf]
      %v337 = vld [vmem:[%s236 + $0x24] sm:$0xf]
      %v338 = vld [vmem:[%s236 + $0x28] sm:$0xf]
      %v339 = vld [vmem:[%s236 + $0x2c] sm:$0xf]
      %v340 = vld [vmem:[%s236 + $0x30] sm:$0xf]
      %v341 = vld [vmem:[%s236 + $0x34] sm:$0xf]
      %v342 = vld [vmem:[%s236 + $0x38] sm:$0xf]
      %v343 = vld [vmem:[%s236 + $0x3c] sm:$0xf]
      %v344 = vld [vmem:[%s236 + $0x40] sm:$0xf]
      %v345 = vld [vmem:[%s236 + $0x44] sm:$0xf]
      %v346 = vld [vmem:[%s236 + $0x48] sm:$0xf]
      %v347 = vld [vmem:[%s236 + $0x4c] sm:$0xf]
      %v348 = vld [vmem:[%s236 + $0x50] sm:$0xf]
      %v349 = vld [vmem:[%s236 + $0x54] sm:$0xf]
      %v350 = vld [vmem:[%s236 + $0x58] sm:$0xf]
      %v351 = vld [vmem:[%s236 + $0x5c] sm:$0xf]
      %v352 = vld [vmem:[%s236 + $0x60] sm:$0xf]
      %v353 = vld [vmem:[%s236 + $0x64] sm:$0xf]
      %v354 = vld [vmem:[%s236 + $0x68] sm:$0xf]
      %v355 = vld [vmem:[%s236 + $0x6c] sm:$0xf]
      %v356 = vld [vmem:[%s236 + $0x70] sm:$0xf]
      %v357 = vld [vmem:[%s236 + $0x74] sm:$0xf]
      %v358 = vld [vmem:[%s236 + $0x78] sm:$0xf]
      %v359 = vld [vmem:[%s236 + $0x7c] sm:$0xf]
      %v360 = vld [vmem:[%s245] sm:$0xf]
      %v361 = vld [vmem:[%s245 + $0x4] sm:$0xf]
      %v362 = vld [vmem:[%s245 + $0x8] sm:$0xf]
      %v363 = vld [vmem:[%s245 + $0xc] sm:$0xf]
      %v364 = vld [vmem:[%s245 + $0x10] sm:$0xf]
      %v365 = vld [vmem:[%s245 + $0x14] sm:$0xf]
      %v366 = vld [vmem:[%s245 + $0x18] sm:$0xf]
      %v367 = vld [vmem:[%s245 + $0x1c] sm:$0xf]
      %v368 = vld [vmem:[%s245 + $0x20] sm:$0xf]
      %v369 = vld [vmem:[%s245 + $0x24] sm:$0xf]
      %v370 = vld [vmem:[%s245 + $0x28] sm:$0xf]
      %v371 = vld [vmem:[%s245 + $0x2c] sm:$0xf]
      %v372 = vld [vmem:[%s245 + $0x30] sm:$0xf]
      %v373 = vld [vmem:[%s245 + $0x34] sm:$0xf]
      %v374 = vld [vmem:[%s245 + $0x38] sm:$0xf]
      %v375 = vld [vmem:[%s245 + $0x3c] sm:$0xf]
      %v408 = vunpack.c.l.b16 %v328
      %v409 = vunpack.c.l.b16 %v329
      %v410 = vunpack.c.l.b16 %v330
      %v411 = vunpack.c.l.b16 %v331
      %v412 = vunpack.c.l.b16 %v332
      %v413 = vunpack.c.l.b16 %v333
      %v414 = vunpack.c.l.b16 %v334
      %v415 = vunpack.c.l.b16 %v335
      %v416 = vunpack.c.l.b16 %v336
      %v417 = vunpack.c.l.b16 %v337
      %v418 = vunpack.c.l.b16 %v338
      %v419 = vunpack.c.l.b16 %v339
      %v420 = vunpack.c.l.b16 %v340
      %v421 = vunpack.c.l.b16 %v341
      %v422 = vunpack.c.l.b16 %v342
      %v423 = vunpack.c.l.b16 %v343
      %v424 = vunpack.c.l.b16 %v344
      %v425 = vunpack.c.l.b16 %v345
      %v426 = vunpack.c.l.b16 %v346
      %v427 = vunpack.c.l.b16 %v347
      %v428 = vunpack.c.l.b16 %v348
      %v429 = vunpack.c.l.b16 %v349
      %v430 = vunpack.c.l.b16 %v350
      %v431 = vunpack.c.l.b16 %v351
      %v432 = vunpack.c.l.b16 %v352
      %v433 = vunpack.c.l.b16 %v353
      %v434 = vunpack.c.l.b16 %v354
      %v435 = vunpack.c.l.b16 %v355
      %v436 = vunpack.c.l.b16 %v356
      %v437 = vunpack.c.l.b16 %v357
      %v438 = vunpack.c.l.b16 %v358
      %v439 = vunpack.c.l.b16 %v359
      %v440 = vpack.c.b16 %v409, %v408
      %v441 = vpack.c.b16 %v411, %v410
      %v442 = vpack.c.b16 %v413, %v412
      %v443 = vpack.c.b16 %v415, %v414
      %v444 = vpack.c.b16 %v417, %v416
      %v445 = vpack.c.b16 %v419, %v418
      %v446 = vpack.c.b16 %v421, %v420
      %v447 = vpack.c.b16 %v423, %v422
      %v448 = vpack.c.b16 %v425, %v424
      %v449 = vpack.c.b16 %v427, %v426
      %v450 = vpack.c.b16 %v429, %v428
      %v451 = vpack.c.b16 %v431, %v430
      %v452 = vpack.c.b16 %v433, %v432
      %v453 = vpack.c.b16 %v435, %v434
      %v454 = vpack.c.b16 %v437, %v436
      %v455 = vpack.c.b16 %v439, %v438
      %v488 = vunpack.c.l.b16 %v360
      %v489 = vunpack.c.l.b16 %v361
      %v490 = vunpack.c.l.b16 %v362
      %v491 = vunpack.c.l.b16 %v363
      %v492 = vunpack.c.l.b16 %v364
      %v493 = vunpack.c.l.b16 %v365
      %v494 = vunpack.c.l.b16 %v366
      %v495 = vunpack.c.l.b16 %v367
      %v496 = vunpack.c.l.b16 %v368
      %v497 = vunpack.c.l.b16 %v369
      %v498 = vunpack.c.l.b16 %v370
      %v499 = vunpack.c.l.b16 %v371
      %v500 = vunpack.c.l.b16 %v372
      %v501 = vunpack.c.l.b16 %v373
      %v502 = vunpack.c.l.b16 %v374
      %v503 = vunpack.c.l.b16 %v375
      %v504 = vpack.c.b16 %v489, %v488
      %v505 = vpack.c.b16 %v491, %v490
      %v506 = vpack.c.b16 %v493, %v492
      %v507 = vpack.c.b16 %v495, %v494
      %v508 = vpack.c.b16 %v497, %v496
      %v509 = vpack.c.b16 %v499, %v498
      %v510 = vpack.c.b16 %v501, %v500
      %v511 = vpack.c.b16 %v503, %v502
      %520 = vmatprep.subr.bf16.mxu0 0
      %521 = vmatpush1.bf16.msra.mxu0 %v504
      %522 = vmatprep.subr.bf16.mxu0 0
      %523 = vmatpush1.bf16.msra.mxu0 %v505
      %524 = vmatprep.subr.bf16.mxu0 0
      %525 = vmatpush1.bf16.msra.mxu0 %v506
      %526 = vmatprep.subr.bf16.mxu0 0
      %527 = vmatpush1.bf16.msra.mxu0 %v507
      %528 = vmatprep.subr.bf16.mxu0 0
      %529 = vmatpush1.bf16.msra.mxu0 %v508
      %530 = vmatprep.subr.bf16.mxu0 0
      %531 = vmatpush1.bf16.msra.mxu0 %v509
      %532 = vmatprep.subr.bf16.mxu0 0
      %533 = vmatpush1.bf16.msra.mxu0 %v510
      %534 = vmatprep.subr.bf16.mxu0 0
      %535 = vmatpush1.bf16.msra.mxu0 %v511
      %536 = vmatprep.subr.bf16.mxu0 0
      %537 = vmatpush1.bf16.msra.mxu0 0
      %538 = vmatprep.subr.bf16.mxu0 0
      %539 = vmatpush1.bf16.msra.mxu0 0
      %540 = vmatprep.subr.bf16.mxu0 0
      %541 = vmatpush1.bf16.msra.mxu0 0
      %542 = vmatprep.subr.bf16.mxu0 0
      %543 = vmatpush1.bf16.msra.mxu0 0
      %544 = vmatprep.subr.bf16.mxu0 0
      %545 = vmatpush1.bf16.msra.mxu0 0
      %546 = vmatprep.subr.bf16.mxu0 0
      %547 = vmatpush1.bf16.msra.mxu0 0
      %548 = vmatprep.subr.bf16.mxu0 0
      %549 = vmatpush1.bf16.msra.mxu0 0
      %550 = vmatprep.subr.bf16.mxu0 0
      %551 = vmatpush1.bf16.msra.mxu0 0
      %552 = vmatprep.mubr.bf16.mxu0 0
      %553 = vmatmul.mubr.bf16.gmra.mrb[0].mxu0 %v440
      %v554 = vpop.f32.mrb[0].mxu0
      %v555 = vadd.f32 0.0, %v554
      %v556 = vpop.f32.mrb[0].mxu0
      %v557 = vpop.f32.mrb[0].mxu0
      %v558 = vadd.f32 0.0, %v557
      %v559 = vpop.f32.mrb[0].mxu0
      %560 = vmatprep.mubr.bf16.mxu0 0
      %561 = vmatmul.mubr.bf16.gmra.mrb[0].mxu0 %v441
      %v562 = vpop.f32.mrb[0].mxu0
      %v563 = vadd.f32 0.0, %v562
      %v564 = vpop.f32.mrb[0].mxu0
      %v565 = vpop.f32.mrb[0].mxu0
      %v566 = vadd.f32 0.0, %v565
      %v567 = vpop.f32.mrb[0].mxu0
      %568 = vmatprep.mubr.bf16.mxu0 0
      %569 = vmatmul.mubr.bf16.gmra.mrb[0].mxu0 %v442
      %v570 = vpop.f32.mrb[0].mxu0
      %v571 = vadd.f32 0.0, %v570
      %v572 = vpop.f32.mrb[0].mxu0
      %v573 = vpop.f32.mrb[0].mxu0
      %v574 = vadd.f32 0.0, %v573
      %v575 = vpop.f32.mrb[0].mxu0
      %576 = vmatprep.mubr.bf16.mxu0 0
      %577 = vmatmul.mubr.bf16.gmra.mrb[0].mxu0 %v443
      %v578 = vpop.f32.mrb[0].mxu0
      %v579 = vadd.f32 0.0, %v578
      %v580 = vpop.f32.mrb[0].mxu0
      %v581 = vpop.f32.mrb[0].mxu0
      %v582 = vadd.f32 0.0, %v581
      %v583 = vpop.f32.mrb[0].mxu0
      %584 = vmatprep.mubr.bf16.mxu0 0
      %585 = vmatmul.mubr.bf16.gmra.mrb[0].mxu0 %v444
      %v586 = vpop.f32.mrb[0].mxu0
      %v587 = vadd.f32 0.0, %v586
      %v588 = vpop.f32.mrb[0].mxu0
      %v589 = vpop.f32.mrb[0].mxu0
      %v590 = vadd.f32 0.0, %v589
      %v591 = vpop.f32.mrb[0].mxu0
      %592 = vmatprep.mubr.bf16.mxu0 0
      %593 = vmatmul.mubr.bf16.gmra.mrb[0].mxu0 %v445
      %v594 = vpop.f32.mrb[0].mxu0
      %v595 = vadd.f32 0.0, %v594
      %v596 = vpop.f32.mrb[0].mxu0
      %v597 = vpop.f32.mrb[0].mxu0
      %v598 = vadd.f32 0.0, %v597
      %v599 = vpop.f32.mrb[0].mxu0
      %600 = vmatprep.mubr.bf16.mxu0 0
      %601 = vmatmul.mubr.bf16.gmra.mrb[0].mxu0 %v446
      %v602 = vpop.f32.mrb[0].mxu0
      %v603 = vadd.f32 0.0, %v602
      %v604 = vpop.f32.mrb[0].mxu0
      %v605 = vpop.f32.mrb[0].mxu0
      %v606 = vadd.f32 0.0, %v605
      %v607 = vpop.f32.mrb[0].mxu0
      %608 = vmatprep.mubr.bf16.mxu0 0
      %609 = vmatmul.mubr.bf16.gmra.mrb[0].mxu0 %v447
      %v610 = vpop.f32.mrb[0].mxu0
      %v611 = vadd.f32 0.0, %v610
      %v612 = vpop.f32.mrb[0].mxu0
      %v613 = vpop.f32.mrb[0].mxu0
      %v614 = vadd.f32 0.0, %v613
      %v615 = vpop.f32.mrb[0].mxu0
      %616 = vmatprep.mubr.bf16.mxu0 0
      %617 = vmatmul.mubr.bf16.gmra.mrb[0].mxu0 %v448
      %v618 = vpop.f32.mrb[0].mxu0
      %v619 = vadd.f32 0.0, %v618
      %v620 = vpop.f32.mrb[0].mxu0
      %v621 = vpop.f32.mrb[0].mxu0
      %v622 = vadd.f32 0.0, %v621
      %v623 = vpop.f32.mrb[0].mxu0
      %624 = vmatprep.mubr.bf16.mxu0 0
      %625 = vmatmul.mubr.bf16.gmra.mrb[0].mxu0 %v449
      %v626 = vpop.f32.mrb[0].mxu0
      %v627 = vadd.f32 0.0, %v626
      %v628 = vpop.f32.mrb[0].mxu0
      %v629 = vpop.f32.mrb[0].mxu0
      %v630 = vadd.f32 0.0, %v629
      %v631 = vpop.f32.mrb[0].mxu0
      %632 = vmatprep.mubr.bf16.mxu0 0
      %633 = vmatmul.mubr.bf16.gmra.mrb[0].mxu0 %v450
      %v634 = vpop.f32.mrb[0].mxu0
      %v635 = vadd.f32 0.0, %v634
      %v636 = vpop.f32.mrb[0].mxu0
      %v637 = vpop.f32.mrb[0].mxu0
      %v638 = vadd.f32 0.0, %v637
      %v639 = vpop.f32.mrb[0].mxu0
      %640 = vmatprep.mubr.bf16.mxu0 0
      %641 = vmatmul.mubr.bf16.gmra.mrb[0].mxu0 %v451
      %v642 = vpop.f32.mrb[0].mxu0
      %v643 = vadd.f32 0.0, %v642
      %v644 = vpop.f32.mrb[0].mxu0
      %v645 = vpop.f32.mrb[0].mxu0
      %v646 = vadd.f32 0.0, %v645
      %v647 = vpop.f32.mrb[0].mxu0
      %648 = vmatprep.mubr.bf16.mxu0 0
      %649 = vmatmul.mubr.bf16.gmra.mrb[0].mxu0 %v452
      %v650 = vpop.f32.mrb[0].mxu0
      %v651 = vadd.f32 0.0, %v650
      %v652 = vpop.f32.mrb[0].mxu0
      %v653 = vpop.f32.mrb[0].mxu0
      %v654 = vadd.f32 0.0, %v653
      %v655 = vpop.f32.mrb[0].mxu0
      %656 = vmatprep.mubr.bf16.mxu0 0
      %657 = vmatmul.mubr.bf16.gmra.mrb[0].mxu0 %v453
      %v658 = vpop.f32.mrb[0].mxu0
      %v659 = vadd.f32 0.0, %v658
      %v660 = vpop.f32.mrb[0].mxu0
      %v661 = vpop.f32.mrb[0].mxu0
      %v662 = vadd.f32 0.0, %v661
      %v663 = vpop.f32.mrb[0].mxu0
      %664 = vmatprep.mubr.bf16.mxu0 0
      %665 = vmatmul.mubr.bf16.gmra.mrb[0].mxu0 %v454
      %v666 = vpop.f32.mrb[0].mxu0
      %v667 = vadd.f32 0.0, %v666
      %v668 = vpop.f32.mrb[0].mxu0
      %v669 = vpop.f32.mrb[0].mxu0
      %v670 = vadd.f32 0.0, %v669
      %v671 = vpop.f32.mrb[0].mxu0
      %672 = vmatprep.mubr.bf16.mxu0 0
      %673 = vmatmul.mubr.bf16.gmra.mrb[0].mxu0 %v455
      %v674 = vpop.f32.mrb[0].mxu0
      %v675 = vadd.f32 0.0, %v674
      %v676 = vpop.f32.mrb[0].mxu0
      %v677 = vpop.f32.mrb[0].mxu0
      %v678 = vadd.f32 0.0, %v677
      %v679 = vpop.f32.mrb[0].mxu0
      %680 = vdwg.mxu0
      %v681 = vadd.f32 %v296, %v555
      %v682 = vadd.f32 %v297, %v558
      %v683 = vadd.f32 %v298, %v563
      %v684 = vadd.f32 %v299, %v566
      %v685 = vadd.f32 %v300, %v571
      %v686 = vadd.f32 %v301, %v574
      %v687 = vadd.f32 %v302, %v579
      %v688 = vadd.f32 %v303, %v582
      %v689 = vadd.f32 %v304, %v587
      %v690 = vadd.f32 %v305, %v590
      %v691 = vadd.f32 %v306, %v595
      %v692 = vadd.f32 %v307, %v598
      %v693 = vadd.f32 %v308, %v603
      %v694 = vadd.f32 %v309, %v606
      %v695 = vadd.f32 %v310, %v611
      %v696 = vadd.f32 %v311, %v614
      %v697 = vadd.f32 %v312, %v619
      %v698 = vadd.f32 %v313, %v622
      %v699 = vadd.f32 %v314, %v627
      %v700 = vadd.f32 %v315, %v630
      %v701 = vadd.f32 %v316, %v635
      %v702 = vadd.f32 %v317, %v638
      %v703 = vadd.f32 %v318, %v643
      %v704 = vadd.f32 %v319, %v646
      %v705 = vadd.f32 %v320, %v651
      %v706 = vadd.f32 %v321, %v654
      %v707 = vadd.f32 %v322, %v659
      %v708 = vadd.f32 %v323, %v662
      %v709 = vadd.f32 %v324, %v667
      %v710 = vadd.f32 %v325, %v670
      %v711 = vadd.f32 %v326, %v675
      %v712 = vadd.f32 %v327, %v678
      %713 = vst [vmem:[#allocation2] sm:$0xff] %v681
      %714 = vst [vmem:[#allocation2 + $0x8] sm:$0xff] %v682
      %715 = vst [vmem:[#allocation2 + $0x10] sm:$0xff] %v683
      %716 = vst [vmem:[#allocation2 + $0x18] sm:$0xff] %v684
      %717 = vst [vmem:[#allocation2 + $0x20] sm:$0xff] %v685
      %718 = vst [vmem:[#allocation2 + $0x28] sm:$0xff] %v686
      %719 = vst [vmem:[#allocation2 + $0x30] sm:$0xff] %v687
      %720 = vst [vmem:[#allocation2 + $0x38] sm:$0xff] %v688
      %721 = vst [vmem:[#allocation2 + $0x40] sm:$0xff] %v689
      %722 = vst [vmem:[#allocation2 + $0x48] sm:$0xff] %v690
      %723 = vst [vmem:[#allocation2 + $0x50] sm:$0xff] %v691
      %724 = vst [vmem:[#allocation2 + $0x58] sm:$0xff] %v692
      %725 = vst [vmem:[#allocation2 + $0x60] sm:$0xff] %v693
      %726 = vst [vmem:[#allocation2 + $0x68] sm:$0xff] %v694
      %727 = vst [vmem:[#allocation2 + $0x70] sm:$0xff] %v695
      %728 = vst [vmem:[#allocation2 + $0x78] sm:$0xff] %v696
      %729 = vst [vmem:[#allocation2 + $0x80] sm:$0xff] %v697
      %730 = vst [vmem:[#allocation2 + $0x88] sm:$0xff] %v698
      %731 = vst [vmem:[#allocation2 + $0x90] sm:$0xff] %v699
      %732 = vst [vmem:[#allocation2 + $0x98] sm:$0xff] %v700
      %733 = vst [vmem:[#allocation2 + $0xa0] sm:$0xff] %v701
      %734 = vst [vmem:[#allocation2 + $0xa8] sm:$0xff] %v702
      %735 = vst [vmem:[#allocation2 + $0xb0] sm:$0xff] %v703
      %736 = vst [vmem:[#allocation2 + $0xb8] sm:$0xff] %v704
      %737 = vst [vmem:[#allocation2 + $0xc0] sm:$0xff] %v705
      %738 = vst [vmem:[#allocation2 + $0xc8] sm:$0xff] %v706
      %739 = vst [vmem:[#allocation2 + $0xd0] sm:$0xff] %v707
      %740 = vst [vmem:[#allocation2 + $0xd8] sm:$0xff] %v708
      %741 = vst [vmem:[#allocation2 + $0xe0] sm:$0xff] %v709
      %742 = vst [vmem:[#allocation2 + $0xe8] sm:$0xff] %v710
      %743 = vst [vmem:[#allocation2 + $0xf0] sm:$0xff] %v711
      %744 = vst [vmem:[#allocation2 + $0xf8] sm:$0xff] %v712
      // Predicated region
      $region37: #{scgnn_forward.3} parent=31 // pred_check
        %p745 = pneg %p260
      $region38: #{scgnn_forward.3} parent=31 // pred_check_branch
        %747 = sbr.rel (%p745) target = $region40
      $region39: #{scgnn_forward.3} parent=31 // pred_region
        %v748 = vld [vmem:[#allocation2] sm:$0xff]
        %v749 = vld [vmem:[#allocation2 + $0x8] sm:$0xff]
        %v750 = vld [vmem:[#allocation2 + $0x10] sm:$0xff]
        %v751 = vld [vmem:[#allocation2 + $0x18] sm:$0xff]
        %v752 = vld [vmem:[#allocation2 + $0x20] sm:$0xff]
        %v753 = vld [vmem:[#allocation2 + $0x28] sm:$0xff]
        %v754 = vld [vmem:[#allocation2 + $0x30] sm:$0xff]
        %v755 = vld [vmem:[#allocation2 + $0x38] sm:$0xff]
        %v756 = vld [vmem:[#allocation2 + $0x40] sm:$0xff]
        %v757 = vld [vmem:[#allocation2 + $0x48] sm:$0xff]
        %v758 = vld [vmem:[#allocation2 + $0x50] sm:$0xff]
        %v759 = vld [vmem:[#allocation2 + $0x58] sm:$0xff]
        %v760 = vld [vmem:[#allocation2 + $0x60] sm:$0xff]
        %v761 = vld [vmem:[#allocation2 + $0x68] sm:$0xff]
        %v762 = vld [vmem:[#allocation2 + $0x70] sm:$0xff]
        %v763 = vld [vmem:[#allocation2 + $0x78] sm:$0xff]
        %v764 = vld [vmem:[#allocation2 + $0x80] sm:$0xff]
        %v765 = vld [vmem:[#allocation2 + $0x88] sm:$0xff]
        %v766 = vld [vmem:[#allocation2 + $0x90] sm:$0xff]
        %v767 = vld [vmem:[#allocation2 + $0x98] sm:$0xff]
        %v768 = vld [vmem:[#allocation2 + $0xa0] sm:$0xff]
        %v769 = vld [vmem:[#allocation2 + $0xa8] sm:$0xff]
        %v770 = vld [vmem:[#allocation2 + $0xb0] sm:$0xff]
        %v771 = vld [vmem:[#allocation2 + $0xb8] sm:$0xff]
        %v772 = vld [vmem:[#allocation2 + $0xc0] sm:$0xff]
        %v773 = vld [vmem:[#allocation2 + $0xc8] sm:$0xff]
        %v774 = vld [vmem:[#allocation2 + $0xd0] sm:$0xff]
        %v775 = vld [vmem:[#allocation2 + $0xd8] sm:$0xff]
        %v776 = vld [vmem:[#allocation2 + $0xe0] sm:$0xff]
        %v777 = vld [vmem:[#allocation2 + $0xe8] sm:$0xff]
        %v778 = vld [vmem:[#allocation2 + $0xf0] sm:$0xff]
        %v779 = vld [vmem:[#allocation2 + $0xf8] sm:$0xff]
        %v780 = vld [vmem:[%s249] sm:$0x1]
        %v782 = vlaneseq
        %v783 = vshrl.u32 %v782, 7
        %v784 = vsub.s32 0, %v783
        %v785 = vrot.slane %v780, %v784
        %v787 = vadd.f32 %v748, %v785
        %v788 = vadd.f32 %v749, %v785
        %v789 = vadd.f32 %v750, %v785
        %v790 = vadd.f32 %v751, %v785
        %v791 = vadd.f32 %v752, %v785
        %v792 = vadd.f32 %v753, %v785
        %v793 = vadd.f32 %v754, %v785
        %v794 = vadd.f32 %v755, %v785
        %v795 = vadd.f32 %v756, %v785
        %v796 = vadd.f32 %v757, %v785
        %v797 = vadd.f32 %v758, %v785
        %v798 = vadd.f32 %v759, %v785
        %v799 = vadd.f32 %v760, %v785
        %v800 = vadd.f32 %v761, %v785
        %v801 = vadd.f32 %v762, %v785
        %v802 = vadd.f32 %v763, %v785
        %v803 = vadd.f32 %v764, %v785
        %v804 = vadd.f32 %v765, %v785
        %v805 = vadd.f32 %v766, %v785
        %v806 = vadd.f32 %v767, %v785
        %v807 = vadd.f32 %v768, %v785
        %v808 = vadd.f32 %v769, %v785
        %v809 = vadd.f32 %v770, %v785
        %v810 = vadd.f32 %v771, %v785
        %v811 = vadd.f32 %v772, %v785
        %v812 = vadd.f32 %v773, %v785
        %v813 = vadd.f32 %v774, %v785
        %v814 = vadd.f32 %v775, %v785
        %v815 = vadd.f32 %v776, %v785
        %v816 = vadd.f32 %v777, %v785
        %v817 = vadd.f32 %v778, %v785
        %v818 = vadd.f32 %v779, %v785
        %v819 = vpack.c.bf16 %v788, %v787
        %v820 = vpack.c.bf16 %v790, %v789
        %v821 = vpack.c.bf16 %v792, %v791
        %v822 = vpack.c.bf16 %v794, %v793
        %v823 = vpack.c.bf16 %v796, %v795
        %v824 = vpack.c.bf16 %v798, %v797
        %v825 = vpack.c.bf16 %v800, %v799
        %v826 = vpack.c.bf16 %v802, %v801
        %v827 = vpack.c.bf16 %v804, %v803
        %v828 = vpack.c.bf16 %v806, %v805
        %v829 = vpack.c.bf16 %v808, %v807
        %v830 = vpack.c.bf16 %v810, %v809
        %v831 = vpack.c.bf16 %v812, %v811
        %v832 = vpack.c.bf16 %v814, %v813
        %v833 = vpack.c.bf16 %v816, %v815
        %v834 = vpack.c.bf16 %v818, %v817
        %v851 = vunpack.c.l.b16 %v819
        %v852 = vunpack.c.h.b16 %v819
        %v853 = vunpack.c.l.b16 %v820
        %v854 = vunpack.c.h.b16 %v820
        %v855 = vunpack.c.l.b16 %v821
        %v856 = vunpack.c.h.b16 %v821
        %v857 = vunpack.c.l.b16 %v822
        %v858 = vunpack.c.h.b16 %v822
        %v859 = vunpack.c.l.b16 %v823
        %v860 = vunpack.c.h.b16 %v823
        %v861 = vunpack.c.l.b16 %v824
        %v862 = vunpack.c.h.b16 %v824
        %v863 = vunpack.c.l.b16 %v825
        %v864 = vunpack.c.h.b16 %v825
        %v865 = vunpack.c.l.b16 %v826
        %v866 = vunpack.c.h.b16 %v826
        %v867 = vunpack.c.l.b16 %v827
        %v868 = vunpack.c.h.b16 %v827
        %v869 = vunpack.c.l.b16 %v828
        %v870 = vunpack.c.h.b16 %v828
        %v871 = vunpack.c.l.b16 %v829
        %v872 = vunpack.c.h.b16 %v829
        %v873 = vunpack.c.l.b16 %v830
        %v874 = vunpack.c.h.b16 %v830
        %v875 = vunpack.c.l.b16 %v831
        %v876 = vunpack.c.h.b16 %v831
        %v877 = vunpack.c.l.b16 %v832
        %v878 = vunpack.c.h.b16 %v832
        %v879 = vunpack.c.l.b16 %v833
        %v880 = vunpack.c.h.b16 %v833
        %v881 = vunpack.c.l.b16 %v834
        %v882 = vunpack.c.h.b16 %v834
        %v883 = vpack.c.b16 %v851, %v851
        %v884 = vpack.c.b16 %v852, %v852
        %v885 = vpack.c.b16 %v853, %v853
        %v886 = vpack.c.b16 %v854, %v854
        %v887 = vpack.c.b16 %v855, %v855
        %v888 = vpack.c.b16 %v856, %v856
        %v889 = vpack.c.b16 %v857, %v857
        %v890 = vpack.c.b16 %v858, %v858
        %v891 = vpack.c.b16 %v859, %v859
        %v892 = vpack.c.b16 %v860, %v860
        %v893 = vpack.c.b16 %v861, %v861
        %v894 = vpack.c.b16 %v862, %v862
        %v895 = vpack.c.b16 %v863, %v863
        %v896 = vpack.c.b16 %v864, %v864
        %v897 = vpack.c.b16 %v865, %v865
        %v898 = vpack.c.b16 %v866, %v866
        %v899 = vpack.c.b16 %v867, %v867
        %v900 = vpack.c.b16 %v868, %v868
        %v901 = vpack.c.b16 %v869, %v869
        %v902 = vpack.c.b16 %v870, %v870
        %v903 = vpack.c.b16 %v871, %v871
        %v904 = vpack.c.b16 %v872, %v872
        %v905 = vpack.c.b16 %v873, %v873
        %v906 = vpack.c.b16 %v874, %v874
        %v907 = vpack.c.b16 %v875, %v875
        %v908 = vpack.c.b16 %v876, %v876
        %v909 = vpack.c.b16 %v877, %v877
        %v910 = vpack.c.b16 %v878, %v878
        %v911 = vpack.c.b16 %v879, %v879
        %v912 = vpack.c.b16 %v880, %v880
        %v913 = vpack.c.b16 %v881, %v881
        %v914 = vpack.c.b16 %v882, %v882
        %947 = vst [vmem:[%s257] sm:$0xf] %v883
        %948 = vst [vmem:[%s257 + $0x4] sm:$0xf] %v884
        %949 = vst [vmem:[%s257 + $0x8] sm:$0xf] %v885
        %950 = vst [vmem:[%s257 + $0xc] sm:$0xf] %v886
        %951 = vst [vmem:[%s257 + $0x10] sm:$0xf] %v887
        %952 = vst [vmem:[%s257 + $0x14] sm:$0xf] %v888
        %953 = vst [vmem:[%s257 + $0x18] sm:$0xf] %v889
        %954 = vst [vmem:[%s257 + $0x1c] sm:$0xf] %v890
        %955 = vst [vmem:[%s257 + $0x20] sm:$0xf] %v891
        %956 = vst [vmem:[%s257 + $0x24] sm:$0xf] %v892
        %957 = vst [vmem:[%s257 + $0x28] sm:$0xf] %v893
        %958 = vst [vmem:[%s257 + $0x2c] sm:$0xf] %v894
        %959 = vst [vmem:[%s257 + $0x30] sm:$0xf] %v895
        %960 = vst [vmem:[%s257 + $0x34] sm:$0xf] %v896
        %961 = vst [vmem:[%s257 + $0x38] sm:$0xf] %v897
        %962 = vst [vmem:[%s257 + $0x3c] sm:$0xf] %v898
        %963 = vst [vmem:[%s257 + $0x40] sm:$0xf] %v899
        %964 = vst [vmem:[%s257 + $0x44] sm:$0xf] %v900
        %965 = vst [vmem:[%s257 + $0x48] sm:$0xf] %v901
        %966 = vst [vmem:[%s257 + $0x4c] sm:$0xf] %v902
        %967 = vst [vmem:[%s257 + $0x50] sm:$0xf] %v903
        %968 = vst [vmem:[%s257 + $0x54] sm:$0xf] %v904
        %969 = vst [vmem:[%s257 + $0x58] sm:$0xf] %v905
        %970 = vst [vmem:[%s257 + $0x5c] sm:$0xf] %v906
        %971 = vst [vmem:[%s257 + $0x60] sm:$0xf] %v907
        %972 = vst [vmem:[%s257 + $0x64] sm:$0xf] %v908
        %973 = vst [vmem:[%s257 + $0x68] sm:$0xf] %v909
        %974 = vst [vmem:[%s257 + $0x6c] sm:$0xf] %v910
        %975 = vst [vmem:[%s257 + $0x70] sm:$0xf] %v911
        %976 = vst [vmem:[%s257 + $0x74] sm:$0xf] %v912
        %977 = vst [vmem:[%s257 + $0x78] sm:$0xf] %v913
        %978 = vst [vmem:[%s257 + $0x7c] sm:$0xf] %v914
      $region40: #{scgnn_forward.3} parent=31 // pred_fallthru
        _
      %s979 = smul.u32 32, %s19
      %p980 = scmp.lt.s32.totalorder %s979, 63
      %s981 = scalar_select %p980, %s979, 63
      %p982 = scmp.lt.s32.totalorder %s20, 0
      %s983 = scalar_select %p982, %s20, 0
      %s984 = sadd.s32 %s983, %s981
      %s985 = smul.addr %s984, 4
      %s986 = scalar_lea.vmem %s3, %s985
      // Predicated region
      $region41: #{scgnn_forward.3} parent=31 // pred_check
        %p987 = pneg %p135
      $region42: #{scgnn_forward.3} parent=31 // pred_check_branch
        %989 = sbr.rel (%p987) target = $region44
      $region43: #{scgnn_forward.3} parent=31 // pred_region
        %s990 = smul.u32 32, %s19
      $region44: #{scgnn_forward.3} parent=31 // pred_fallthru
        _
    $region32: #{scgnn_forward.3} parent=5 // pred_fallthru
      _
    %p991 = scmp.le.s32.totalorder 2, %s9
    // Predicated region
    $region45: #{scgnn_forward.3} parent=5 // pred_check
      %p992 = pneg %p991
    $region46: #{scgnn_forward.3} parent=5 // pred_check_branch
      %994 = sbr.rel (%p992) target = $region48
    $region47: #{scgnn_forward.3} parent=5 // pred_region
      %s995 = ssub.s32 %s9, 2
      // Predicated region
      $region49: #{scgnn_forward.3} parent=47 // pred_check
        %p996 = pneg %p141
      $region50: #{scgnn_forward.3} parent=47 // pred_check_branch
        %998 = sbr.rel (%p996) target = $region52
      $region51: #{scgnn_forward.3} parent=47 // pred_region
        %s999 = smul.u32 32, %s22
        %p1000 = scmp.lt.s32.totalorder %s999, 63
        %s1001 = scalar_select %p1000, %s999, 63
        %p1002 = scmp.lt.s32.totalorder %s23, 0
        %s1003 = scalar_select %p1002, %s23, 0
        %s1004 = sadd.s32 %s1003, %s1001
        %s1005 = smul.addr %s1004, 4
        %s1006 = scalar_lea.vmem %s3, %s1005
      $region52: #{scgnn_forward.3} parent=47 // pred_fallthru
        _
    $region48: #{scgnn_forward.3} parent=5 // pred_fallthru
      _
  $region6: #{scgnn_forward.3} parent=0 // loop_footer
    %s13 = sadd.s32 1, %s9
  $region7: #{scgnn_forward.3} parent=0 // loop_footer_branch
    %8 = sbr.rel target = $region3
  $region8: #{scgnn_forward.3} parent=0 // loop_exit
    _

// kernel: scgnn_forward.5
$region0: #{scgnn_forward.5}
  #allocation0 [shape = 'u32[]', space=smem, size = 0x4, offset = 0x4, fixed_abs, tag = 'smem constant byte address 0x4 - core index']
  #allocation1 [shape = 'u32[144,128]{1,0:T(1,128)}', space=vmem, size = 0x12000, scoped, tag = 'internal scratch']
  #allocation2 [shape = 'f32[256,128]{1,0:T(8,128)}', space=vmem, size = 0x20000, scoped, tag = 'scratch operand']
  %s0 = inlined_call_operand.vmem [shape: bf16[512,512], index: 0, kind: input, shape index: {}]
  %s1 = inlined_call_operand.vmem [shape: bf16[512,128], index: 1, kind: input, shape index: {}]
  %s2 = inlined_call_operand.vmem [shape: f32[1,128], index: 2, kind: input, shape index: {}]
  %s3 = inlined_call_operand.vmem [shape: f32[512,128], index: 3, kind: output, shape index: {}]
  %s4 = sld [smem:[#allocation0]]
  $region53: #{scgnn_forward.5} parent=0
    _
  %s6 = ssub.s32 1, %s4
  %s7 = scalar_select 0, %s6, %s4
  loop: start=0, step=1, limit=4
  $region2: #{scgnn_forward.5} parent=0 // loop_pre_header
    _
  $region3: #{scgnn_forward.5} parent=0 // loop_header
    %s9 = sphi 0, %s13
    %p10 = scmp.ge.s32.totalorder %s9, 4
    %s16 = sphi 0, %s35
    %s17 = sphi 0, %s31
    %s18 = sphi 0, %s27
    %s19 = sphi 0, %s16
    %s20 = sphi 0, %s17
    %s21 = sphi 0, %s18
    %s22 = sphi 0, %s19
    %s23 = sphi 0, %s20
    %s24 = sphi 0, %s21
    %s40 = sphi 0, %s42
    %s43 = sphi 0, %s40
    %s44 = sphi 0, %s43
    %s60 = sphi 0, %s44
    %s68 = sphi 0, %s70
    %s71 = sphi 0, %s68
    %s72 = sphi 0, %s71
    %s88 = sphi 0, %s72
    %s94 = sphi 0, %s96
    %s97 = sphi 0, %s94
    %s98 = sphi 0, %s97
    %s114 = sphi 0, %s98
    %s122 = sphi 0, %s124
    %s125 = sphi 0, %s122
    %s126 = sphi 0, %s125
    %s142 = sphi 0, %s126
  $region4: #{scgnn_forward.5} parent=0 // loop_header_branch
    %12 = sbr.rel (%p10) target = $region8
  $region5: #{scgnn_forward.5} parent=0 // loop_body
    %s14 = ssub.s32 %s9, 1
    %s15 = ssub.s32 %s9, 2
    %s25 = sadd.s32 1, %s18
    %p26 = scmp.ge.s32.totalorder %s25, 1
    %s27 = scalar_select %p26, 0, %s25
    %s28 = sadd.s32 1, %s17
    %s29 = scalar_select %p26, %s28, %s17
    %p30 = scmp.ge.s32.totalorder %s29, 1
    %s31 = scalar_select %p30, 0, %s29
    %s32 = sadd.s32 1, %s16
    %s33 = scalar_select %p30, %s32, %s16
    %p34 = scmp.ge.s32.totalorder %s33, 2
    %s35 = scalar_select %p34, 0, %s33
    %s36 = ssub.s32 %s16, %s35
    %s37 = ssub.s32 %s18, %s27
    %s38 = sor.u32 %s36, %s37
    %p39 = scmp.eq.s32.totalorder %s38, 0
    %s41 = sadd.s32 %s40, 1
    %s42 = scalar_select %p39, %s40, %s41
    %p45 = pneg %p39
    %p46 = scmp.eq.s32.totalorder %s9, 1
    %p47 = por %p45, %p46
    %p48 = scmp.ne.s32.totalorder %s40, %s43
    %p49 = scmp.eq.s32.totalorder %s9, 0
    %p50 = por %p48, %p49
    %p51 = scmp.ne.s32.totalorder %s40, %s43
    %p52 = scmp.eq.s32.totalorder %s14, 1
    %p53 = por %p51, %p52
    %p54 = scmp.ne.s32.totalorder %s43, %s44
    %p55 = scmp.eq.s32.totalorder %s14, 0
    %p56 = por %p54, %p55
    %p57 = scmp.ne.s32.totalorder %s43, %s44
    %p58 = scmp.eq.s32.totalorder %s15, 1
    %p59 = por %p57, %p58
    %p61 = scmp.ne.s32.totalorder %s44, %s60
    %p62 = scmp.eq.s32.totalorder %s15, 0
    %p63 = por %p61, %p62
    %s64 = ssub.s32 %s18, %s27
    %s65 = ssub.s32 %s17, %s31
    %s66 = sor.u32 %s64, %s65
    %p67 = scmp.eq.s32.totalorder %s66, 0
    %s69 = sadd.s32 %s68, 1
    %s70 = scalar_select %p67, %s68, %s69
    %p73 = pneg %p67
    %p74 = scmp.eq.s32.totalorder %s9, 1
    %p75 = por %p73, %p74
    %p76 = scmp.ne.s32.totalorder %s68, %s71
    %p77 = scmp.eq.s32.totalorder %s9, 0
    %p78 = por %p76, %p77
    %p79 = scmp.ne.s32.totalorder %s68, %s71
    %p80 = scmp.eq.s32.totalorder %s14, 1
    %p81 = por %p79, %p80
    %p82 = scmp.ne.s32.totalorder %s71, %s72
    %p83 = scmp.eq.s32.totalorder %s14, 0
    %p84 = por %p82, %p83
    %p85 = scmp.ne.s32.totalorder %s71, %s72
    %p86 = scmp.eq.s32.totalorder %s15, 1
    %p87 = por %p85, %p86
    %p89 = scmp.ne.s32.totalorder %s72, %s88
    %p90 = scmp.eq.s32.totalorder %s15, 0
    %p91 = por %p89, %p90
    %s92 = ssub.s32 %s17, %s31
    %p93 = scmp.eq.s32.totalorder %s92, 0
    %s95 = sadd.s32 %s94, 1
    %s96 = scalar_select %p93, %s94, %s95
    %p99 = pneg %p93
    %p100 = scmp.eq.s32.totalorder %s9, 1
    %p101 = por %p99, %p100
    %p102 = scmp.ne.s32.totalorder %s94, %s97
    %p103 = scmp.eq.s32.totalorder %s9, 0
    %p104 = por %p102, %p103
    %p105 = scmp.ne.s32.totalorder %s94, %s97
    %p106 = scmp.eq.s32.totalorder %s14, 1
    %p107 = por %p105, %p106
    %p108 = scmp.ne.s32.totalorder %s97, %s98
    %p109 = scmp.eq.s32.totalorder %s14, 0
    %p110 = por %p108, %p109
    %p111 = scmp.ne.s32.totalorder %s97, %s98
    %p112 = scmp.eq.s32.totalorder %s15, 1
    %p113 = por %p111, %p112
    %p115 = scmp.ne.s32.totalorder %s98, %s114
    %p116 = scmp.eq.s32.totalorder %s15, 0
    %p117 = por %p115, %p116
    %s118 = ssub.s32 %s16, %s35
    %s119 = ssub.s32 %s17, %s31
    %s120 = sor.u32 %s118, %s119
    %p121 = scmp.eq.s32.totalorder %s120, 0
    %s123 = sadd.s32 %s122, 1
    %s124 = scalar_select %p121, %s122, %s123
    %p127 = pneg %p121
    %p128 = scmp.eq.s32.totalorder %s9, 1
    %p129 = por %p127, %p128
    %p130 = scmp.ne.s32.totalorder %s122, %s125
    %p131 = scmp.eq.s32.totalorder %s9, 0
    %p132 = por %p130, %p131
    %p133 = scmp.ne.s32.totalorder %s122, %s125
    %p134 = scmp.eq.s32.totalorder %s14, 1
    %p135 = por %p133, %p134
    %p136 = scmp.ne.s32.totalorder %s125, %s126
    %p137 = scmp.eq.s32.totalorder %s14, 0
    %p138 = por %p136, %p137
    %p139 = scmp.ne.s32.totalorder %s125, %s126
    %p140 = scmp.eq.s32.totalorder %s15, 1
    %p141 = por %p139, %p140
    %p143 = scmp.ne.s32.totalorder %s126, %s142
    %p144 = scmp.eq.s32.totalorder %s15, 0
    %p145 = por %p143, %p144
    %p146 = scmp.le.s32.totalorder 1, %s9
    %p147 = scmp.lt.s32.totalorder %s9, 3
    %p148 = pnand %p146, %p147
    %p149 = pneg %p148
    // Predicated region
    $region9: #{scgnn_forward.5} parent=5 // pred_check
      _
    $region10: #{scgnn_forward.5} parent=5 // pred_check_branch
      %151 = sbr.rel (%p148) target = $region12
    $region11: #{scgnn_forward.5} parent=5 // pred_region
      %s152 = ssub.s32 %s9, 1
      // Predicated region
      $region13: #{scgnn_forward.5} parent=11 // pred_check
        %p153 = pneg %p84
      $region14: #{scgnn_forward.5} parent=11 // pred_check_branch
        %155 = sbr.rel (%p153) target = $region16
      $region15: #{scgnn_forward.5} parent=11 // pred_region
        %s156 = smul.u32 64, %s21
        %p157 = scmp.lt.s32.totalorder %s156, 63
        %s158 = scalar_select %p157, %s156, 63
        %p159 = scmp.lt.s32.totalorder %s20, 0
        %s160 = scalar_select %p159, %s20, 0
        %s161 = sadd.s32 %s160, %s158
        %s162 = smul.addr %s161, 4
        %s163 = scalar_lea.vmem %s1, %s162
        %s164 = smul.u32 64, %s21
      $region16: #{scgnn_forward.5} parent=11 // pred_fallthru
        _
      // Predicated region
      $region17: #{scgnn_forward.5} parent=11 // pred_check
        %p165 = pneg %p110
      $region18: #{scgnn_forward.5} parent=11 // pred_check_branch
        %167 = sbr.rel (%p165) target = $region20
      $region19: #{scgnn_forward.5} parent=11 // pred_region
        %p168 = scmp.lt.s32.totalorder %s20, 0
        %s169 = scalar_select %p168, %s20, 0
        %s170 = scalar_lea.vmem %s2, %s169
      $region20: #{scgnn_forward.5} parent=11 // pred_fallthru
        _
    $region12: #{scgnn_forward.5} parent=5 // pred_fallthru
      _
    %p171 = scmp.lt.s32.totalorder %s9, 2
    // Predicated region
    $region21: #{scgnn_forward.5} parent=5 // pred_check
      %p172 = pneg %p171
    $region22: #{scgnn_forward.5} parent=5 // pred_check_branch
      %174 = sbr.rel (%p172) target = $region24
    $region23: #{scgnn_forward.5} parent=5 // pred_region
      // Predicated region
      $region25: #{scgnn_forward.5} parent=23 // pred_check
        %p175 = pneg %p50
      $region26: #{scgnn_forward.5} parent=23 // pred_check_branch
        %177 = sbr.rel (%p175) target = $region28
      $region27: #{scgnn_forward.5} parent=23 // pred_region
        %s178 = smul.u32 32, %s16
        %s179 = smul.u32 4, %s18
        %p180 = scmp.lt.s32.totalorder %s178, 63
        %s181 = scalar_select %p180, %s178, 63
        %p182 = scmp.lt.s32.totalorder %s179, 3
        %s183 = scalar_select %p182, %s179, 3
        %s184 = smul.addr %s181, 4
        %s185 = sadd.s32 %s183, %s184
        %s186 = smul.addr %s185, 4
        %s187 = scalar_lea.vmem %s0, %s186
        %s188 = smul.u32 32, %s16
        %s189 = smul.u32 4, %s18
      $region28: #{scgnn_forward.5} parent=23 // pred_fallthru
        _
    $region24: #{scgnn_forward.5} parent=5 // pred_fallthru
      _
    %p190 = scmp.le.s32.totalorder 1, %s9
    %p191 = scmp.lt.s32.totalorder %s9, 3
    %p192 = pnand %p190, %p191
    %p193 = pneg %p192
    // Predicated region
    $region29: #{scgnn_forward.5} parent=5 // pred_check
      _
    $region30: #{scgnn_forward.5} parent=5 // pred_check_branch
      %195 = sbr.rel (%p192) target = $region32
    $region31: #{scgnn_forward.5} parent=5 // pred_region
      %s196 = ssub.s32 %s9, 1
      %s197 = smul.u32 32, %s19
      %s198 = smul.u32 4, %s21
      %p199 = scmp.lt.s32.totalorder %s197, 63
      %s200 = scalar_select %p199, %s197, 63
      %p201 = scmp.lt.s32.totalorder %s198, 3
      %s202 = scalar_select %p201, %s198, 3
      %s203 = smul.addr %s200, 4
      %s204 = sadd.s32 %s202, %s203
      %s205 = smul.addr %s204, 4
      %s206 = scalar_lea.vmem %s0, %s205
      %p207 = pneg %p56
      %p208 = pneg %p53
      %s209 = smul.u32 64, %s21
      %p210 = scmp.lt.s32.totalorder %s209, 63
      %s211 = scalar_select %p210, %s209, 63
      %p212 = scmp.lt.s32.totalorder %s20, 0
      %s213 = scalar_select %p212, %s20, 0
      %s214 = sadd.s32 %s213, %s211
      %s215 = smul.addr %s214, 4
      %s216 = scalar_lea.vmem %s1, %s215
      %p217 = pneg %p84
      %p218 = pneg %p81
      %p219 = scmp.lt.s32.totalorder %s20, 0
      %s220 = scalar_select %p219, %s20, 0
      %s221 = scalar_lea.vmem %s2, %s220
      %p222 = pneg %p110
      %p223 = pneg %p107
      %p224 = pneg %p138
      %p225 = pneg %p135
      %s226 = smul.u32 32, %s19
      %p227 = scmp.lt.s32.totalorder %s226, 63
      %s228 = scalar_select %p227, %s226, 63
      %p229 = scmp.lt.s32.totalorder %s20, 0
      %s230 = scalar_select %p229, %s20, 0
      %s231 = sadd.s32 %s230, %s228
      %s232 = smul.addr %s231, 8
      %s233 = scalar_lea.vmem %s3, %s232
      %s234 = smul.u32 32, %s19
      %s235 = smul.u32 4, %s21
      %p236 = scmp.lt.s32.totalorder %s234, 63
      %s237 = scalar_select %p236, %s234, 63
      %p238 = scmp.lt.s32.totalorder %s235, 3
      %s239 = scalar_select %p238, %s235, 3
      %s240 = smul.addr %s237, 4
      %s241 = sadd.s32 %s239, %s240
      %s242 = smul.addr %s241, 4
      %s243 = scalar_lea.vmem %s0, %s242
      %s244 = smul.u32 32, %s19
      %s245 = smul.u32 4, %s21
      %s246 = smul.u32 64, %s21
      %p247 = scmp.lt.s32.totalorder %s246, 63
      %s248 = scalar_select %p247, %s246, 63
      %p249 = scmp.lt.s32.totalorder %s20, 0
      %s250 = scalar_select %p249, %s20, 0
      %s251 = sadd.s32 %s250, %s248
      %s252 = smul.addr %s251, 4
      %s253 = scalar_lea.vmem %s1, %s252
      %s254 = smul.u32 64, %s21
      %p255 = scmp.lt.s32.totalorder %s20, 0
      %s256 = scalar_select %p255, %s20, 0
      %s257 = scalar_lea.vmem %s2, %s256
      %s258 = smul.u32 32, %s19
      %p259 = scmp.lt.s32.totalorder %s258, 63
      %s260 = scalar_select %p259, %s258, 63
      %p261 = scmp.lt.s32.totalorder %s20, 0
      %s262 = scalar_select %p261, %s20, 0
      %s263 = sadd.s32 %s262, %s260
      %s264 = smul.addr %s263, 8
      %s265 = scalar_lea.vmem %s3, %s264
      %s266 = smul.u32 32, %s19
      %p268 = scmp.eq.s32.totalorder %s21, 0
      // Predicated region
      $region33: #{scgnn_forward.5} parent=31 // pred_check
        %p269 = pneg %p268
      $region34: #{scgnn_forward.5} parent=31 // pred_check_branch
        %271 = sbr.rel (%p269) target = $region36
      $region35: #{scgnn_forward.5} parent=31 // pred_region
        %272 = vst [vmem:[#allocation2] sm:$0xff] 0.0
        %273 = vst [vmem:[#allocation2 + $0x8] sm:$0xff] 0.0
        %274 = vst [vmem:[#allocation2 + $0x10] sm:$0xff] 0.0
        %275 = vst [vmem:[#allocation2 + $0x18] sm:$0xff] 0.0
        %276 = vst [vmem:[#allocation2 + $0x20] sm:$0xff] 0.0
        %277 = vst [vmem:[#allocation2 + $0x28] sm:$0xff] 0.0
        %278 = vst [vmem:[#allocation2 + $0x30] sm:$0xff] 0.0
        %279 = vst [vmem:[#allocation2 + $0x38] sm:$0xff] 0.0
        %280 = vst [vmem:[#allocation2 + $0x40] sm:$0xff] 0.0
        %281 = vst [vmem:[#allocation2 + $0x48] sm:$0xff] 0.0
        %282 = vst [vmem:[#allocation2 + $0x50] sm:$0xff] 0.0
        %283 = vst [vmem:[#allocation2 + $0x58] sm:$0xff] 0.0
        %284 = vst [vmem:[#allocation2 + $0x60] sm:$0xff] 0.0
        %285 = vst [vmem:[#allocation2 + $0x68] sm:$0xff] 0.0
        %286 = vst [vmem:[#allocation2 + $0x70] sm:$0xff] 0.0
        %287 = vst [vmem:[#allocation2 + $0x78] sm:$0xff] 0.0
        %288 = vst [vmem:[#allocation2 + $0x80] sm:$0xff] 0.0
        %289 = vst [vmem:[#allocation2 + $0x88] sm:$0xff] 0.0
        %290 = vst [vmem:[#allocation2 + $0x90] sm:$0xff] 0.0
        %291 = vst [vmem:[#allocation2 + $0x98] sm:$0xff] 0.0
        %292 = vst [vmem:[#allocation2 + $0xa0] sm:$0xff] 0.0
        %293 = vst [vmem:[#allocation2 + $0xa8] sm:$0xff] 0.0
        %294 = vst [vmem:[#allocation2 + $0xb0] sm:$0xff] 0.0
        %295 = vst [vmem:[#allocation2 + $0xb8] sm:$0xff] 0.0
        %296 = vst [vmem:[#allocation2 + $0xc0] sm:$0xff] 0.0
        %297 = vst [vmem:[#allocation2 + $0xc8] sm:$0xff] 0.0
        %298 = vst [vmem:[#allocation2 + $0xd0] sm:$0xff] 0.0
        %299 = vst [vmem:[#allocation2 + $0xd8] sm:$0xff] 0.0
        %300 = vst [vmem:[#allocation2 + $0xe0] sm:$0xff] 0.0
        %301 = vst [vmem:[#allocation2 + $0xe8] sm:$0xff] 0.0
        %302 = vst [vmem:[#allocation2 + $0xf0] sm:$0xff] 0.0
        %303 = vst [vmem:[#allocation2 + $0xf8] sm:$0xff] 0.0
      $region36: #{scgnn_forward.5} parent=31 // pred_fallthru
        _
      %v304 = vld [vmem:[#allocation2] sm:$0xff]
      %v305 = vld [vmem:[#allocation2 + $0x8] sm:$0xff]
      %v306 = vld [vmem:[#allocation2 + $0x10] sm:$0xff]
      %v307 = vld [vmem:[#allocation2 + $0x18] sm:$0xff]
      %v308 = vld [vmem:[#allocation2 + $0x20] sm:$0xff]
      %v309 = vld [vmem:[#allocation2 + $0x28] sm:$0xff]
      %v310 = vld [vmem:[#allocation2 + $0x30] sm:$0xff]
      %v311 = vld [vmem:[#allocation2 + $0x38] sm:$0xff]
      %v312 = vld [vmem:[#allocation2 + $0x40] sm:$0xff]
      %v313 = vld [vmem:[#allocation2 + $0x48] sm:$0xff]
      %v314 = vld [vmem:[#allocation2 + $0x50] sm:$0xff]
      %v315 = vld [vmem:[#allocation2 + $0x58] sm:$0xff]
      %v316 = vld [vmem:[#allocation2 + $0x60] sm:$0xff]
      %v317 = vld [vmem:[#allocation2 + $0x68] sm:$0xff]
      %v318 = vld [vmem:[#allocation2 + $0x70] sm:$0xff]
      %v319 = vld [vmem:[#allocation2 + $0x78] sm:$0xff]
      %v320 = vld [vmem:[#allocation2 + $0x80] sm:$0xff]
      %v321 = vld [vmem:[#allocation2 + $0x88] sm:$0xff]
      %v322 = vld [vmem:[#allocation2 + $0x90] sm:$0xff]
      %v323 = vld [vmem:[#allocation2 + $0x98] sm:$0xff]
      %v324 = vld [vmem:[#allocation2 + $0xa0] sm:$0xff]
      %v325 = vld [vmem:[#allocation2 + $0xa8] sm:$0xff]
      %v326 = vld [vmem:[#allocation2 + $0xb0] sm:$0xff]
      %v327 = vld [vmem:[#allocation2 + $0xb8] sm:$0xff]
      %v328 = vld [vmem:[#allocation2 + $0xc0] sm:$0xff]
      %v329 = vld [vmem:[#allocation2 + $0xc8] sm:$0xff]
      %v330 = vld [vmem:[#allocation2 + $0xd0] sm:$0xff]
      %v331 = vld [vmem:[#allocation2 + $0xd8] sm:$0xff]
      %v332 = vld [vmem:[#allocation2 + $0xe0] sm:$0xff]
      %v333 = vld [vmem:[#allocation2 + $0xe8] sm:$0xff]
      %v334 = vld [vmem:[#allocation2 + $0xf0] sm:$0xff]
      %v335 = vld [vmem:[#allocation2 + $0xf8] sm:$0xff]
      %v336 = vld [vmem:[%s243] sm:$0xff]
      %v337 = vld [vmem:[%s243 + $0x8] sm:$0xff]
      %v338 = vld [vmem:[%s243 + $0x10] sm:$0xff]
      %v339 = vld [vmem:[%s243 + $0x18] sm:$0xff]
      %v340 = vld [vmem:[%s243 + $0x20] sm:$0xff]
      %v341 = vld [vmem:[%s243 + $0x28] sm:$0xff]
      %v342 = vld [vmem:[%s243 + $0x30] sm:$0xff]
      %v343 = vld [vmem:[%s243 + $0x38] sm:$0xff]
      %v344 = vld [vmem:[%s243 + $0x40] sm:$0xff]
      %v345 = vld [vmem:[%s243 + $0x48] sm:$0xff]
      %v346 = vld [vmem:[%s243 + $0x50] sm:$0xff]
      %v347 = vld [vmem:[%s243 + $0x58] sm:$0xff]
      %v348 = vld [vmem:[%s243 + $0x60] sm:$0xff]
      %v349 = vld [vmem:[%s243 + $0x68] sm:$0xff]
      %v350 = vld [vmem:[%s243 + $0x70] sm:$0xff]
      %v351 = vld [vmem:[%s243 + $0x78] sm:$0xff]
      %v352 = vld [vmem:[%s243 + $0x80] sm:$0xff]
      %v353 = vld [vmem:[%s243 + $0x88] sm:$0xff]
      %v354 = vld [vmem:[%s243 + $0x90] sm:$0xff]
      %v355 = vld [vmem:[%s243 + $0x98] sm:$0xff]
      %v356 = vld [vmem:[%s243 + $0xa0] sm:$0xff]
      %v357 = vld [vmem:[%s243 + $0xa8] sm:$0xff]
      %v358 = vld [vmem:[%s243 + $0xb0] sm:$0xff]
      %v359 = vld [vmem:[%s243 + $0xb8] sm:$0xff]
      %v360 = vld [vmem:[%s243 + $0xc0] sm:$0xff]
      %v361 = vld [vmem:[%s243 + $0xc8] sm:$0xff]
      %v362 = vld [vmem:[%s243 + $0xd0] sm:$0xff]
      %v363 = vld [vmem:[%s243 + $0xd8] sm:$0xff]
      %v364 = vld [vmem:[%s243 + $0xe0] sm:$0xff]
      %v365 = vld [vmem:[%s243 + $0xe8] sm:$0xff]
      %v366 = vld [vmem:[%s243 + $0xf0] sm:$0xff]
      %v367 = vld [vmem:[%s243 + $0xf8] sm:$0xff]
      %v368 = vld [vmem:[%s243 + $0x100] sm:$0xff]
      %v369 = vld [vmem:[%s243 + $0x108] sm:$0xff]
      %v370 = vld [vmem:[%s243 + $0x110] sm:$0xff]
      %v371 = vld [vmem:[%s243 + $0x118] sm:$0xff]
      %v372 = vld [vmem:[%s243 + $0x120] sm:$0xff]
      %v373 = vld [vmem:[%s243 + $0x128] sm:$0xff]
      %v374 = vld [vmem:[%s243 + $0x130] sm:$0xff]
      %v375 = vld [vmem:[%s243 + $0x138] sm:$0xff]
      %v376 = vld [vmem:[%s243 + $0x140] sm:$0xff]
      %v377 = vld [vmem:[%s243 + $0x148] sm:$0xff]
      %v378 = vld [vmem:[%s243 + $0x150] sm:$0xff]
      %v379 = vld [vmem:[%s243 + $0x158] sm:$0xff]
      %v380 = vld [vmem:[%s243 + $0x160] sm:$0xff]
      %v381 = vld [vmem:[%s243 + $0x168] sm:$0xff]
      %v382 = vld [vmem:[%s243 + $0x170] sm:$0xff]
      %v383 = vld [vmem:[%s243 + $0x178] sm:$0xff]
      %v384 = vld [vmem:[%s243 + $0x180] sm:$0xff]
      %v385 = vld [vmem:[%s243 + $0x188] sm:$0xff]
      %v386 = vld [vmem:[%s243 + $0x190] sm:$0xff]
      %v387 = vld [vmem:[%s243 + $0x198] sm:$0xff]
      %v388 = vld [vmem:[%s243 + $0x1a0] sm:$0xff]
      %v389 = vld [vmem:[%s243 + $0x1a8] sm:$0xff]
      %v390 = vld [vmem:[%s243 + $0x1b0] sm:$0xff]
      %v391 = vld [vmem:[%s243 + $0x1b8] sm:$0xff]
      %v392 = vld [vmem:[%s243 + $0x1c0] sm:$0xff]
      %v393 = vld [vmem:[%s243 + $0x1c8] sm:$0xff]
      %v394 = vld [vmem:[%s243 + $0x1d0] sm:$0xff]
      %v395 = vld [vmem:[%s243 + $0x1d8] sm:$0xff]
      %v396 = vld [vmem:[%s243 + $0x1e0] sm:$0xff]
      %v397 = vld [vmem:[%s243 + $0x1e8] sm:$0xff]
      %v398 = vld [vmem:[%s243 + $0x1f0] sm:$0xff]
      %v399 = vld [vmem:[%s243 + $0x1f8] sm:$0xff]
      %v400 = vld [vmem:[%s253] sm:$0xf]
      %v401 = vld [vmem:[%s253 + $0x4] sm:$0xf]
      %v402 = vld [vmem:[%s253 + $0x8] sm:$0xf]
      %v403 = vld [vmem:[%s253 + $0xc] sm:$0xf]
      %v404 = vld [vmem:[%s253 + $0x10] sm:$0xf]
      %v405 = vld [vmem:[%s253 + $0x14] sm:$0xf]
      %v406 = vld [vmem:[%s253 + $0x18] sm:$0xf]
      %v407 = vld [vmem:[%s253 + $0x1c] sm:$0xf]
      %v408 = vld [vmem:[%s253 + $0x20] sm:$0xf]
      %v409 = vld [vmem:[%s253 + $0x24] sm:$0xf]
      %v410 = vld [vmem:[%s253 + $0x28] sm:$0xf]
      %v411 = vld [vmem:[%s253 + $0x2c] sm:$0xf]
      %v412 = vld [vmem:[%s253 + $0x30] sm:$0xf]
      %v413 = vld [vmem:[%s253 + $0x34] sm:$0xf]
      %v414 = vld [vmem:[%s253 + $0x38] sm:$0xf]
      %v415 = vld [vmem:[%s253 + $0x3c] sm:$0xf]
      %v416 = vld [vmem:[%s253 + $0x40] sm:$0xf]
      %v417 = vld [vmem:[%s253 + $0x44] sm:$0xf]
      %v418 = vld [vmem:[%s253 + $0x48] sm:$0xf]
      %v419 = vld [vmem:[%s253 + $0x4c] sm:$0xf]
      %v420 = vld [vmem:[%s253 + $0x50] sm:$0xf]
      %v421 = vld [vmem:[%s253 + $0x54] sm:$0xf]
      %v422 = vld [vmem:[%s253 + $0x58] sm:$0xf]
      %v423 = vld [vmem:[%s253 + $0x5c] sm:$0xf]
      %v424 = vld [vmem:[%s253 + $0x60] sm:$0xf]
      %v425 = vld [vmem:[%s253 + $0x64] sm:$0xf]
      %v426 = vld [vmem:[%s253 + $0x68] sm:$0xf]
      %v427 = vld [vmem:[%s253 + $0x6c] sm:$0xf]
      %v428 = vld [vmem:[%s253 + $0x70] sm:$0xf]
      %v429 = vld [vmem:[%s253 + $0x74] sm:$0xf]
      %v430 = vld [vmem:[%s253 + $0x78] sm:$0xf]
      %v431 = vld [vmem:[%s253 + $0x7c] sm:$0xf]
      %v432 = vld [vmem:[%s253 + $0x80] sm:$0xf]
      %v433 = vld [vmem:[%s253 + $0x84] sm:$0xf]
      %v434 = vld [vmem:[%s253 + $0x88] sm:$0xf]
      %v435 = vld [vmem:[%s253 + $0x8c] sm:$0xf]
      %v436 = vld [vmem:[%s253 + $0x90] sm:$0xf]
      %v437 = vld [vmem:[%s253 + $0x94] sm:$0xf]
      %v438 = vld [vmem:[%s253 + $0x98] sm:$0xf]
      %v439 = vld [vmem:[%s253 + $0x9c] sm:$0xf]
      %v440 = vld [vmem:[%s253 + $0xa0] sm:$0xf]
      %v441 = vld [vmem:[%s253 + $0xa4] sm:$0xf]
      %v442 = vld [vmem:[%s253 + $0xa8] sm:$0xf]
      %v443 = vld [vmem:[%s253 + $0xac] sm:$0xf]
      %v444 = vld [vmem:[%s253 + $0xb0] sm:$0xf]
      %v445 = vld [vmem:[%s253 + $0xb4] sm:$0xf]
      %v446 = vld [vmem:[%s253 + $0xb8] sm:$0xf]
      %v447 = vld [vmem:[%s253 + $0xbc] sm:$0xf]
      %v448 = vld [vmem:[%s253 + $0xc0] sm:$0xf]
      %v449 = vld [vmem:[%s253 + $0xc4] sm:$0xf]
      %v450 = vld [vmem:[%s253 + $0xc8] sm:$0xf]
      %v451 = vld [vmem:[%s253 + $0xcc] sm:$0xf]
      %v452 = vld [vmem:[%s253 + $0xd0] sm:$0xf]
      %v453 = vld [vmem:[%s253 + $0xd4] sm:$0xf]
      %v454 = vld [vmem:[%s253 + $0xd8] sm:$0xf]
      %v455 = vld [vmem:[%s253 + $0xdc] sm:$0xf]
      %v456 = vld [vmem:[%s253 + $0xe0] sm:$0xf]
      %v457 = vld [vmem:[%s253 + $0xe4] sm:$0xf]
      %v458 = vld [vmem:[%s253 + $0xe8] sm:$0xf]
      %v459 = vld [vmem:[%s253 + $0xec] sm:$0xf]
      %v460 = vld [vmem:[%s253 + $0xf0] sm:$0xf]
      %v461 = vld [vmem:[%s253 + $0xf4] sm:$0xf]
      %v462 = vld [vmem:[%s253 + $0xf8] sm:$0xf]
      %v463 = vld [vmem:[%s253 + $0xfc] sm:$0xf]
      %v528 = vunpack.c.l.b16 %v336
      %v529 = vunpack.c.h.b16 %v336
      %v530 = vunpack.c.l.b16 %v337
      %v531 = vunpack.c.h.b16 %v337
      %v532 = vunpack.c.l.b16 %v338
      %v533 = vunpack.c.h.b16 %v338
      %v534 = vunpack.c.l.b16 %v339
      %v535 = vunpack.c.h.b16 %v339
      %v536 = vunpack.c.l.b16 %v340
      %v537 = vunpack.c.h.b16 %v340
      %v538 = vunpack.c.l.b16 %v341
      %v539 = vunpack.c.h.b16 %v341
      %v540 = vunpack.c.l.b16 %v342
      %v541 = vunpack.c.h.b16 %v342
      %v542 = vunpack.c.l.b16 %v343
      %v543 = vunpack.c.h.b16 %v343
      %v544 = vunpack.c.l.b16 %v344
      %v545 = vunpack.c.h.b16 %v344
      %v546 = vunpack.c.l.b16 %v345
      %v547 = vunpack.c.h.b16 %v345
      %v548 = vunpack.c.l.b16 %v346
      %v549 = vunpack.c.h.b16 %v346
      %v550 = vunpack.c.l.b16 %v347
      %v551 = vunpack.c.h.b16 %v347
      %v552 = vunpack.c.l.b16 %v348
      %v553 = vunpack.c.h.b16 %v348
      %v554 = vunpack.c.l.b16 %v349
      %v555 = vunpack.c.h.b16 %v349
      %v556 = vunpack.c.l.b16 %v350
      %v557 = vunpack.c.h.b16 %v350
      %v558 = vunpack.c.l.b16 %v351
      %v559 = vunpack.c.h.b16 %v351
      %v560 = vunpack.c.l.b16 %v352
      %v561 = vunpack.c.h.b16 %v352
      %v562 = vunpack.c.l.b16 %v353
      %v563 = vunpack.c.h.b16 %v353
      %v564 = vunpack.c.l.b16 %v354
      %v565 = vunpack.c.h.b16 %v354
      %v566 = vunpack.c.l.b16 %v355
      %v567 = vunpack.c.h.b16 %v355
      %v568 = vunpack.c.l.b16 %v356
      %v569 = vunpack.c.h.b16 %v356
      %v570 = vunpack.c.l.b16 %v357
      %v571 = vunpack.c.h.b16 %v357
      %v572 = vunpack.c.l.b16 %v358
      %v573 = vunpack.c.h.b16 %v358
      %v574 = vunpack.c.l.b16 %v359
      %v575 = vunpack.c.h.b16 %v359
      %v576 = vunpack.c.l.b16 %v360
      %v577 = vunpack.c.h.b16 %v360
      %v578 = vunpack.c.l.b16 %v361
      %v579 = vunpack.c.h.b16 %v361
      %v580 = vunpack.c.l.b16 %v362
      %v581 = vunpack.c.h.b16 %v362
      %v582 = vunpack.c.l.b16 %v363
      %v583 = vunpack.c.h.b16 %v363
      %v584 = vunpack.c.l.b16 %v364
      %v585 = vunpack.c.h.b16 %v364
      %v586 = vunpack.c.l.b16 %v365
      %v587 = vunpack.c.h.b16 %v365
      %v588 = vunpack.c.l.b16 %v366
      %v589 = vunpack.c.h.b16 %v366
      %v590 = vunpack.c.l.b16 %v367
      %v591 = vunpack.c.h.b16 %v367
      %v592 = vunpack.c.l.b16 %v368
      %v593 = vunpack.c.h.b16 %v368
      %v594 = vunpack.c.l.b16 %v369
      %v595 = vunpack.c.h.b16 %v369
      %v596 = vunpack.c.l.b16 %v370
      %v597 = vunpack.c.h.b16 %v370
      %v598 = vunpack.c.l.b16 %v371
      %v599 = vunpack.c.h.b16 %v371
      %v600 = vunpack.c.l.b16 %v372
      %v601 = vunpack.c.h.b16 %v372
      %v602 = vunpack.c.l.b16 %v373
      %v603 = vunpack.c.h.b16 %v373
      %v604 = vunpack.c.l.b16 %v374
      %v605 = vunpack.c.h.b16 %v374
      %v606 = vunpack.c.l.b16 %v375
      %v607 = vunpack.c.h.b16 %v375
      %v608 = vunpack.c.l.b16 %v376
      %v609 = vunpack.c.h.b16 %v376
      %v610 = vunpack.c.l.b16 %v377
      %v611 = vunpack.c.h.b16 %v377
      %v612 = vunpack.c.l.b16 %v378
      %v613 = vunpack.c.h.b16 %v378
      %v614 = vunpack.c.l.b16 %v379
      %v615 = vunpack.c.h.b16 %v379
      %v616 = vunpack.c.l.b16 %v380
      %v617 = vunpack.c.h.b16 %v380
      %v618 = vunpack.c.l.b16 %v381
      %v619 = vunpack.c.h.b16 %v381
      %v620 = vunpack.c.l.b16 %v382
      %v621 = vunpack.c.h.b16 %v382
      %v622 = vunpack.c.l.b16 %v383
      %v623 = vunpack.c.h.b16 %v383
      %v624 = vunpack.c.l.b16 %v384
      %v625 = vunpack.c.h.b16 %v384
      %v626 = vunpack.c.l.b16 %v385
      %v627 = vunpack.c.h.b16 %v385
      %v628 = vunpack.c.l.b16 %v386
      %v629 = vunpack.c.h.b16 %v386
      %v630 = vunpack.c.l.b16 %v387
      %v631 = vunpack.c.h.b16 %v387
      %v632 = vunpack.c.l.b16 %v388
      %v633 = vunpack.c.h.b16 %v388
      %v634 = vunpack.c.l.b16 %v389
      %v635 = vunpack.c.h.b16 %v389
      %v636 = vunpack.c.l.b16 %v390
      %v637 = vunpack.c.h.b16 %v390
      %v638 = vunpack.c.l.b16 %v391
      %v639 = vunpack.c.h.b16 %v391
      %v640 = vunpack.c.l.b16 %v392
      %v641 = vunpack.c.h.b16 %v392
      %v642 = vunpack.c.l.b16 %v393
      %v643 = vunpack.c.h.b16 %v393
      %v644 = vunpack.c.l.b16 %v394
      %v645 = vunpack.c.h.b16 %v394
      %v646 = vunpack.c.l.b16 %v395
      %v647 = vunpack.c.h.b16 %v395
      %v648 = vunpack.c.l.b16 %v396
      %v649 = vunpack.c.h.b16 %v396
      %v650 = vunpack.c.l.b16 %v397
      %v651 = vunpack.c.h.b16 %v397
      %v652 = vunpack.c.l.b16 %v398
      %v653 = vunpack.c.h.b16 %v398
      %v654 = vunpack.c.l.b16 %v399
      %v655 = vunpack.c.h.b16 %v399
      %v656 = vpack.c.b16 %v532, %v528
      %v657 = vpack.c.b16 %v533, %v529
      %v658 = vpack.c.b16 %v534, %v530
      %v659 = vpack.c.b16 %v535, %v531
      %v660 = vpack.c.b16 %v540, %v536
      %v661 = vpack.c.b16 %v541, %v537
      %v662 = vpack.c.b16 %v542, %v538
      %v663 = vpack.c.b16 %v543, %v539
      %v664 = vpack.c.b16 %v548, %v544
      %v665 = vpack.c.b16 %v549, %v545
      %v666 = vpack.c.b16 %v550, %v546
      %v667 = vpack.c.b16 %v551, %v547
      %v668 = vpack.c.b16 %v556, %v552
      %v669 = vpack.c.b16 %v557, %v553
      %v670 = vpack.c.b16 %v558, %v554
      %v671 = vpack.c.b16 %v559, %v555
      %v672 = vpack.c.b16 %v564, %v560
      %v673 = vpack.c.b16 %v565, %v561
      %v674 = vpack.c.b16 %v566, %v562
      %v675 = vpack.c.b16 %v567, %v563
      %v676 = vpack.c.b16 %v572, %v568
      %v677 = vpack.c.b16 %v573, %v569
      %v678 = vpack.c.b16 %v574, %v570
      %v679 = vpack.c.b16 %v575, %v571
      %v680 = vpack.c.b16 %v580, %v576
      %v681 = vpack.c.b16 %v581, %v577
      %v682 = vpack.c.b16 %v582, %v578
      %v683 = vpack.c.b16 %v583, %v579
      %v684 = vpack.c.b16 %v588, %v584
      %v685 = vpack.c.b16 %v589, %v585
      %v686 = vpack.c.b16 %v590, %v586
      %v687 = vpack.c.b16 %v591, %v587
      %v688 = vpack.c.b16 %v596, %v592
      %v689 = vpack.c.b16 %v597, %v593
      %v690 = vpack.c.b16 %v598, %v594
      %v691 = vpack.c.b16 %v599, %v595
      %v692 = vpack.c.b16 %v604, %v600
      %v693 = vpack.c.b16 %v605, %v601
      %v694 = vpack.c.b16 %v606, %v602
      %v695 = vpack.c.b16 %v607, %v603
      %v696 = vpack.c.b16 %v612, %v608
      %v697 = vpack.c.b16 %v613, %v609
      %v698 = vpack.c.b16 %v614, %v610
      %v699 = vpack.c.b16 %v615, %v611
      %v700 = vpack.c.b16 %v620, %v616
      %v701 = vpack.c.b16 %v621, %v617
      %v702 = vpack.c.b16 %v622, %v618
      %v703 = vpack.c.b16 %v623, %v619
      %v704 = vpack.c.b16 %v628, %v624
      %v705 = vpack.c.b16 %v629, %v625
      %v706 = vpack.c.b16 %v630, %v626
      %v707 = vpack.c.b16 %v631, %v627
      %v708 = vpack.c.b16 %v636, %v632
      %v709 = vpack.c.b16 %v637, %v633
      %v710 = vpack.c.b16 %v638, %v634
      %v711 = vpack.c.b16 %v639, %v635
      %v712 = vpack.c.b16 %v644, %v640
      %v713 = vpack.c.b16 %v645, %v641
      %v714 = vpack.c.b16 %v646, %v642
      %v715 = vpack.c.b16 %v647, %v643
      %v716 = vpack.c.b16 %v652, %v648
      %v717 = vpack.c.b16 %v653, %v649
      %v718 = vpack.c.b16 %v654, %v650
      %v719 = vpack.c.b16 %v655, %v651
      %v848 = vunpack.c.l.b16 %v400
      %v849 = vunpack.c.l.b16 %v401
      %v850 = vunpack.c.l.b16 %v402
      %v851 = vunpack.c.l.b16 %v403
      %v852 = vunpack.c.l.b16 %v404
      %v853 = vunpack.c.l.b16 %v405
      %v854 = vunpack.c.l.b16 %v406
      %v855 = vunpack.c.l.b16 %v407
      %v856 = vunpack.c.l.b16 %v408
      %v857 = vunpack.c.l.b16 %v409
      %v858 = vunpack.c.l.b16 %v410
      %v859 = vunpack.c.l.b16 %v411
      %v860 = vunpack.c.l.b16 %v412
      %v861 = vunpack.c.l.b16 %v413
      %v862 = vunpack.c.l.b16 %v414
      %v863 = vunpack.c.l.b16 %v415
      %v864 = vunpack.c.l.b16 %v416
      %v865 = vunpack.c.l.b16 %v417
      %v866 = vunpack.c.l.b16 %v418
      %v867 = vunpack.c.l.b16 %v419
      %v868 = vunpack.c.l.b16 %v420
      %v869 = vunpack.c.l.b16 %v421
      %v870 = vunpack.c.l.b16 %v422
      %v871 = vunpack.c.l.b16 %v423
      %v872 = vunpack.c.l.b16 %v424
      %v873 = vunpack.c.l.b16 %v425
      %v874 = vunpack.c.l.b16 %v426
      %v875 = vunpack.c.l.b16 %v427
      %v876 = vunpack.c.l.b16 %v428
      %v877 = vunpack.c.l.b16 %v429
      %v878 = vunpack.c.l.b16 %v430
      %v879 = vunpack.c.l.b16 %v431
      %v880 = vunpack.c.l.b16 %v432
      %v881 = vunpack.c.l.b16 %v433
      %v882 = vunpack.c.l.b16 %v434
      %v883 = vunpack.c.l.b16 %v435
      %v884 = vunpack.c.l.b16 %v436
      %v885 = vunpack.c.l.b16 %v437
      %v886 = vunpack.c.l.b16 %v438
      %v887 = vunpack.c.l.b16 %v439
      %v888 = vunpack.c.l.b16 %v440
      %v889 = vunpack.c.l.b16 %v441
      %v890 = vunpack.c.l.b16 %v442
      %v891 = vunpack.c.l.b16 %v443
      %v892 = vunpack.c.l.b16 %v444
      %v893 = vunpack.c.l.b16 %v445
      %v894 = vunpack.c.l.b16 %v446
      %v895 = vunpack.c.l.b16 %v447
      %v896 = vunpack.c.l.b16 %v448
      %v897 = vunpack.c.l.b16 %v449
      %v898 = vunpack.c.l.b16 %v450
      %v899 = vunpack.c.l.b16 %v451
      %v900 = vunpack.c.l.b16 %v452
      %v901 = vunpack.c.l.b16 %v453
      %v902 = vunpack.c.l.b16 %v454
      %v903 = vunpack.c.l.b16 %v455
      %v904 = vunpack.c.l.b16 %v456
      %v905 = vunpack.c.l.b16 %v457
      %v906 = vunpack.c.l.b16 %v458
      %v907 = vunpack.c.l.b16 %v459
      %v908 = vunpack.c.l.b16 %v460
      %v909 = vunpack.c.l.b16 %v461
      %v910 = vunpack.c.l.b16 %v462
      %v911 = vunpack.c.l.b16 %v463
      %v912 = vpack.c.b16 %v849, %v848
      %v913 = vpack.c.b16 %v851, %v850
      %v914 = vpack.c.b16 %v853, %v852
      %v915 = vpack.c.b16 %v855, %v854
      %v916 = vpack.c.b16 %v857, %v856
      %v917 = vpack.c.b16 %v859, %v858
      %v918 = vpack.c.b16 %v861, %v860
      %v919 = vpack.c.b16 %v863, %v862
      %v920 = vpack.c.b16 %v865, %v864
      %v921 = vpack.c.b16 %v867, %v866
      %v922 = vpack.c.b16 %v869, %v868
      %v923 = vpack.c.b16 %v871, %v870
      %v924 = vpack.c.b16 %v873, %v872
      %v925 = vpack.c.b16 %v875, %v874
      %v926 = vpack.c.b16 %v877, %v876
      %v927 = vpack.c.b16 %v879, %v878
      %v928 = vpack.c.b16 %v881, %v880
      %v929 = vpack.c.b16 %v883, %v882
      %v930 = vpack.c.b16 %v885, %v884
      %v931 = vpack.c.b16 %v887, %v886
      %v932 = vpack.c.b16 %v889, %v888
      %v933 = vpack.c.b16 %v891, %v890
      %v934 = vpack.c.b16 %v893, %v892
      %v935 = vpack.c.b16 %v895, %v894
      %v936 = vpack.c.b16 %v897, %v896
      %v937 = vpack.c.b16 %v899, %v898
      %v938 = vpack.c.b16 %v901, %v900
      %v939 = vpack.c.b16 %v903, %v902
      %v940 = vpack.c.b16 %v905, %v904
      %v941 = vpack.c.b16 %v907, %v906
      %v942 = vpack.c.b16 %v909, %v908
      %v943 = vpack.c.b16 %v911, %v910
      %976 = vmatprep.subr.bf16.mxu0 0
      %977 = vmatpush1.bf16.msra.mxu0 %v912
      %978 = vmatprep.subr.bf16.mxu0 0
      %979 = vmatpush1.bf16.msra.mxu0 %v913
      %980 = vmatprep.subr.bf16.mxu0 0
      %981 = vmatpush1.bf16.msra.mxu0 %v914
      %982 = vmatprep.subr.bf16.mxu0 0
      %983 = vmatpush1.bf16.msra.mxu0 %v915
      %984 = vmatprep.subr.bf16.mxu0 0
      %985 = vmatpush1.bf16.msra.mxu0 %v916
      %986 = vmatprep.subr.bf16.mxu0 0
      %987 = vmatpush1.bf16.msra.mxu0 %v917
      %988 = vmatprep.subr.bf16.mxu0 0
      %989 = vmatpush1.bf16.msra.mxu0 %v918
      %990 = vmatprep.subr.bf16.mxu0 0
      %991 = vmatpush1.bf16.msra.mxu0 %v919
      %992 = vmatprep.subr.bf16.mxu0 0
      %993 = vmatpush1.bf16.msra.mxu0 %v920
      %994 = vmatprep.subr.bf16.mxu0 0
      %995 = vmatpush1.bf16.msra.mxu0 %v921
      %996 = vmatprep.subr.bf16.mxu0 0
      %997 = vmatpush1.bf16.msra.mxu0 %v922
      %998 = vmatprep.subr.bf16.mxu0 0
      %999 = vmatpush1.bf16.msra.mxu0 %v923
      %1000 = vmatprep.subr.bf16.mxu0 0
      %1001 = vmatpush1.bf16.msra.mxu0 %v924
      %1002 = vmatprep.subr.bf16.mxu0 0
      %1003 = vmatpush1.bf16.msra.mxu0 %v925
      %1004 = vmatprep.subr.bf16.mxu0 0
      %1005 = vmatpush1.bf16.msra.mxu0 %v926
      %1006 = vmatprep.subr.bf16.mxu0 0
      %1007 = vmatpush1.bf16.msra.mxu0 %v927
      %1008 = vmatprep.mubr.bf16.mxu0 %v657
      %1009 = vmatmul.mubr.bf16.gmra.mrb[0].mxu0 %v656
      %v1010 = vpop.f32.mrb[0].mxu0
      %v1011 = vadd.f32 0.0, %v1010
      %v1012 = vpop.f32.mrb[0].mxu0
      %v1013 = vpop.f32.mrb[0].mxu0
      %v1014 = vadd.f32 0.0, %v1013
      %v1015 = vpop.f32.mrb[0].mxu0
      %1016 = vmatprep.mubr.bf16.mxu0 %v661
      %1017 = vmatmul.mubr.bf16.gmra.mrb[0].mxu0 %v660
      %v1018 = vpop.f32.mrb[0].mxu0
      %v1019 = vadd.f32 0.0, %v1018
      %v1020 = vpop.f32.mrb[0].mxu0
      %v1021 = vpop.f32.mrb[0].mxu0
      %v1022 = vadd.f32 0.0, %v1021
      %v1023 = vpop.f32.mrb[0].mxu0
      %1024 = vmatprep.mubr.bf16.mxu0 %v665
      %1025 = vmatmul.mubr.bf16.gmra.mrb[0].mxu0 %v664
      %v1026 = vpop.f32.mrb[0].mxu0
      %v1027 = vadd.f32 0.0, %v1026
      %v1028 = vpop.f32.mrb[0].mxu0
      %v1029 = vpop.f32.mrb[0].mxu0
      %v1030 = vadd.f32 0.0, %v1029
      %v1031 = vpop.f32.mrb[0].mxu0
      %1032 = vmatprep.mubr.bf16.mxu0 %v669
      %1033 = vmatmul.mubr.bf16.gmra.mrb[0].mxu0 %v668
      %v1034 = vpop.f32.mrb[0].mxu0
      %v1035 = vadd.f32 0.0, %v1034
      %v1036 = vpop.f32.mrb[0].mxu0
      %v1037 = vpop.f32.mrb[0].mxu0
      %v1038 = vadd.f32 0.0, %v1037
      %v1039 = vpop.f32.mrb[0].mxu0
      %1040 = vmatprep.mubr.bf16.mxu0 %v673
      %1041 = vmatmul.mubr.bf16.gmra.mrb[0].mxu0 %v672
      %v1042 = vpop.f32.mrb[0].mxu0
      %v1043 = vadd.f32 0.0, %v1042
      %v1044 = vpop.f32.mrb[0].mxu0
      %v1045 = vpop.f32.mrb[0].mxu0
      %v1046 = vadd.f32 0.0, %v1045
      %v1047 = vpop.f32.mrb[0].mxu0
      %1048 = vmatprep.mubr.bf16.mxu0 %v677
      %1049 = vmatmul.mubr.bf16.gmra.mrb[0].mxu0 %v676
      %v1050 = vpop.f32.mrb[0].mxu0
      %v1051 = vadd.f32 0.0, %v1050
      %v1052 = vpop.f32.mrb[0].mxu0
      %v1053 = vpop.f32.mrb[0].mxu0
      %v1054 = vadd.f32 0.0, %v1053
      %v1055 = vpop.f32.mrb[0].mxu0
      %1056 = vmatprep.mubr.bf16.mxu0 %v681
      %1057 = vmatmul.mubr.bf16.gmra.mrb[0].mxu0 %v680
      %v1058 = vpop.f32.mrb[0].mxu0
      %v1059 = vadd.f32 0.0, %v1058
      %v1060 = vpop.f32.mrb[0].mxu0
      %v1061 = vpop.f32.mrb[0].mxu0
      %v1062 = vadd.f32 0.0, %v1061
      %v1063 = vpop.f32.mrb[0].mxu0
      %1064 = vmatprep.mubr.bf16.mxu0 %v685
      %1065 = vmatmul.mubr.bf16.gmra.mrb[0].mxu0 %v684
      %v1066 = vpop.f32.mrb[0].mxu0
      %v1067 = vadd.f32 0.0, %v1066
      %v1068 = vpop.f32.mrb[0].mxu0
      %v1069 = vpop.f32.mrb[0].mxu0
      %v1070 = vadd.f32 0.0, %v1069
      %v1071 = vpop.f32.mrb[0].mxu0
      %1072 = vmatprep.mubr.bf16.mxu0 %v689
      %1073 = vmatmul.mubr.bf16.gmra.mrb[0].mxu0 %v688
      %v1074 = vpop.f32.mrb[0].mxu0
      %v1075 = vadd.f32 0.0, %v1074
      %v1076 = vpop.f32.mrb[0].mxu0
      %v1077 = vpop.f32.mrb[0].mxu0
      %v1078 = vadd.f32 0.0, %v1077
      %v1079 = vpop.f32.mrb[0].mxu0
      %1080 = vmatprep.mubr.bf16.mxu0 %v693
      %1081 = vmatmul.mubr.bf16.gmra.mrb[0].mxu0 %v692
      %v1082 = vpop.f32.mrb[0].mxu0
      %v1083 = vadd.f32 0.0, %v1082
      %v1084 = vpop.f32.mrb[0].mxu0
      %v1085 = vpop.f32.mrb[0].mxu0
      %v1086 = vadd.f32 0.0, %v1085
      %v1087 = vpop.f32.mrb[0].mxu0
      %1088 = vmatprep.mubr.bf16.mxu0 %v697
      %1089 = vmatmul.mubr.bf16.gmra.mrb[0].mxu0 %v696
      %v1090 = vpop.f32.mrb[0].mxu0
      %v1091 = vadd.f32 0.0, %v1090
      %v1092 = vpop.f32.mrb[0].mxu0
      %v1093 = vpop.f32.mrb[0].mxu0
      %v1094 = vadd.f32 0.0, %v1093
      %v1095 = vpop.f32.mrb[0].mxu0
      %1096 = vmatprep.mubr.bf16.mxu0 %v701
      %1097 = vmatmul.mubr.bf16.gmra.mrb[0].mxu0 %v700
      %v1098 = vpop.f32.mrb[0].mxu0
      %v1099 = vadd.f32 0.0, %v1098
      %v1100 = vpop.f32.mrb[0].mxu0
      %v1101 = vpop.f32.mrb[0].mxu0
      %v1102 = vadd.f32 0.0, %v1101
      %v1103 = vpop.f32.mrb[0].mxu0
      %1104 = vmatprep.mubr.bf16.mxu0 %v705
      %1105 = vmatmul.mubr.bf16.gmra.mrb[0].mxu0 %v704
      %v1106 = vpop.f32.mrb[0].mxu0
      %v1107 = vadd.f32 0.0, %v1106
      %v1108 = vpop.f32.mrb[0].mxu0
      %v1109 = vpop.f32.mrb[0].mxu0
      %v1110 = vadd.f32 0.0, %v1109
      %v1111 = vpop.f32.mrb[0].mxu0
      %1112 = vmatprep.mubr.bf16.mxu0 %v709
      %1113 = vmatmul.mubr.bf16.gmra.mrb[0].mxu0 %v708
      %v1114 = vpop.f32.mrb[0].mxu0
      %v1115 = vadd.f32 0.0, %v1114
      %v1116 = vpop.f32.mrb[0].mxu0
      %v1117 = vpop.f32.mrb[0].mxu0
      %v1118 = vadd.f32 0.0, %v1117
      %v1119 = vpop.f32.mrb[0].mxu0
      %1120 = vmatprep.mubr.bf16.mxu0 %v713
      %1121 = vmatmul.mubr.bf16.gmra.mrb[0].mxu0 %v712
      %v1122 = vpop.f32.mrb[0].mxu0
      %v1123 = vadd.f32 0.0, %v1122
      %v1124 = vpop.f32.mrb[0].mxu0
      %v1125 = vpop.f32.mrb[0].mxu0
      %v1126 = vadd.f32 0.0, %v1125
      %v1127 = vpop.f32.mrb[0].mxu0
      %1128 = vmatprep.mubr.bf16.mxu0 %v717
      %1129 = vmatmul.mubr.bf16.gmra.mrb[0].mxu0 %v716
      %v1130 = vpop.f32.mrb[0].mxu0
      %v1131 = vadd.f32 0.0, %v1130
      %v1132 = vpop.f32.mrb[0].mxu0
      %v1133 = vpop.f32.mrb[0].mxu0
      %v1134 = vadd.f32 0.0, %v1133
      %v1135 = vpop.f32.mrb[0].mxu0
      %1136 = vdwg.mxu0
      %1137 = vmatprep.subr.bf16.mxu0 0
      %1138 = vmatpush1.bf16.msra.mxu0 %v928
      %1139 = vmatprep.subr.bf16.mxu0 0
      %1140 = vmatpush1.bf16.msra.mxu0 %v929
      %1141 = vmatprep.subr.bf16.mxu0 0
      %1142 = vmatpush1.bf16.msra.mxu0 %v930
      %1143 = vmatprep.subr.bf16.mxu0 0
      %1144 = vmatpush1.bf16.msra.mxu0 %v931
      %1145 = vmatprep.subr.bf16.mxu0 0
      %1146 = vmatpush1.bf16.msra.mxu0 %v932
      %1147 = vmatprep.subr.bf16.mxu0 0
      %1148 = vmatpush1.bf16.msra.mxu0 %v933
      %1149 = vmatprep.subr.bf16.mxu0 0
      %1150 = vmatpush1.bf16.msra.mxu0 %v934
      %1151 = vmatprep.subr.bf16.mxu0 0
      %1152 = vmatpush1.bf16.msra.mxu0 %v935
      %1153 = vmatprep.subr.bf16.mxu0 0
      %1154 = vmatpush1.bf16.msra.mxu0 %v936
      %1155 = vmatprep.subr.bf16.mxu0 0
      %1156 = vmatpush1.bf16.msra.mxu0 %v937
      %1157 = vmatprep.subr.bf16.mxu0 0
      %1158 = vmatpush1.bf16.msra.mxu0 %v938
      %1159 = vmatprep.subr.bf16.mxu0 0
      %1160 = vmatpush1.bf16.msra.mxu0 %v939
      %1161 = vmatprep.subr.bf16.mxu0 0
      %1162 = vmatpush1.bf16.msra.mxu0 %v940
      %1163 = vmatprep.subr.bf16.mxu0 0
      %1164 = vmatpush1.bf16.msra.mxu0 %v941
      %1165 = vmatprep.subr.bf16.mxu0 0
      %1166 = vmatpush1.bf16.msra.mxu0 %v942
      %1167 = vmatprep.subr.bf16.mxu0 0
      %1168 = vmatpush1.bf16.msra.mxu0 %v943
      %1169 = vmatprep.mubr.bf16.mxu0 %v659
      %1170 = vmatmul.mubr.bf16.gmra.mrb[0].mxu0 %v658
      %v1171 = vpop.f32.mrb[0].mxu0
      %v1172 = vadd.f32 %v1011, %v1171
      %v1173 = vpop.f32.mrb[0].mxu0
      %v1174 = vpop.f32.mrb[0].mxu0
      %v1175 = vadd.f32 %v1014, %v1174
      %v1176 = vpop.f32.mrb[0].mxu0
      %1177 = vmatprep.mubr.bf16.mxu0 %v663
      %1178 = vmatmul.mubr.bf16.gmra.mrb[0].mxu0 %v662
      %v1179 = vpop.f32.mrb[0].mxu0
      %v1180 = vadd.f32 %v1019, %v1179
      %v1181 = vpop.f32.mrb[0].mxu0
      %v1182 = vpop.f32.mrb[0].mxu0
      %v1183 = vadd.f32 %v1022, %v1182
      %v1184 = vpop.f32.mrb[0].mxu0
      %1185 = vmatprep.mubr.bf16.mxu0 %v667
      %1186 = vmatmul.mubr.bf16.gmra.mrb[0].mxu0 %v666
      %v1187 = vpop.f32.mrb[0].mxu0
      %v1188 = vadd.f32 %v1027, %v1187
      %v1189 = vpop.f32.mrb[0].mxu0
      %v1190 = vpop.f32.mrb[0].mxu0
      %v1191 = vadd.f32 %v1030, %v1190
      %v1192 = vpop.f32.mrb[0].mxu0
      %1193 = vmatprep.mubr.bf16.mxu0 %v671
      %1194 = vmatmul.mubr.bf16.gmra.mrb[0].mxu0 %v670
      %v1195 = vpop.f32.mrb[0].mxu0
      %v1196 = vadd.f32 %v1035, %v1195
      %v1197 = vpop.f32.mrb[0].mxu0
      %v1198 = vpop.f32.mrb[0].mxu0
      %v1199 = vadd.f32 %v1038, %v1198
      %v1200 = vpop.f32.mrb[0].mxu0
      %1201 = vmatprep.mubr.bf16.mxu0 %v675
      %1202 = vmatmul.mubr.bf16.gmra.mrb[0].mxu0 %v674
      %v1203 = vpop.f32.mrb[0].mxu0
      %v1204 = vadd.f32 %v1043, %v1203
      %v1205 = vpop.f32.mrb[0].mxu0
      %v1206 = vpop.f32.mrb[0].mxu0
      %v1207 = vadd.f32 %v1046, %v1206
      %v1208 = vpop.f32.mrb[0].mxu0
      %1209 = vmatprep.mubr.bf16.mxu0 %v679
      %1210 = vmatmul.mubr.bf16.gmra.mrb[0].mxu0 %v678
      %v1211 = vpop.f32.mrb[0].mxu0
      %v1212 = vadd.f32 %v1051, %v1211
      %v1213 = vpop.f32.mrb[0].mxu0
      %v1214 = vpop.f32.mrb[0].mxu0
      %v1215 = vadd.f32 %v1054, %v1214
      %v1216 = vpop.f32.mrb[0].mxu0
      %1217 = vmatprep.mubr.bf16.mxu0 %v683
      %1218 = vmatmul.mubr.bf16.gmra.mrb[0].mxu0 %v682
      %v1219 = vpop.f32.mrb[0].mxu0
      %v1220 = vadd.f32 %v1059, %v1219
      %v1221 = vpop.f32.mrb[0].mxu0
      %v1222 = vpop.f32.mrb[0].mxu0
      %v1223 = vadd.f32 %v1062, %v1222
      %v1224 = vpop.f32.mrb[0].mxu0
      %1225 = vmatprep.mubr.bf16.mxu0 %v687
      %1226 = vmatmul.mubr.bf16.gmra.mrb[0].mxu0 %v686
      %v1227 = vpop.f32.mrb[0].mxu0
      %v1228 = vadd.f32 %v1067, %v1227
      %v1229 = vpop.f32.mrb[0].mxu0
      %v1230 = vpop.f32.mrb[0].mxu0
      %v1231 = vadd.f32 %v1070, %v1230
      %v1232 = vpop.f32.mrb[0].mxu0
      %1233 = vmatprep.mubr.bf16.mxu0 %v691
      %1234 = vmatmul.mubr.bf16.gmra.mrb[0].mxu0 %v690
      %v1235 = vpop.f32.mrb[0].mxu0
      %v1236 = vadd.f32 %v1075, %v1235
      %v1237 = vpop.f32.mrb[0].mxu0
      %v1238 = vpop.f32.mrb[0].mxu0
      %v1239 = vadd.f32 %v1078, %v1238
      %v1240 = vpop.f32.mrb[0].mxu0
      %1241 = vmatprep.mubr.bf16.mxu0 %v695
      %1242 = vmatmul.mubr.bf16.gmra.mrb[0].mxu0 %v694
      %v1243 = vpop.f32.mrb[0].mxu0
      %v1244 = vadd.f32 %v1083, %v1243
      %v1245 = vpop.f32.mrb[0].mxu0
      %v1246 = vpop.f32.mrb[0].mxu0
      %v1247 = vadd.f32 %v1086, %v1246
      %v1248 = vpop.f32.mrb[0].mxu0
      %1249 = vmatprep.mubr.bf16.mxu0 %v699
      %1250 = vmatmul.mubr.bf16.gmra.mrb[0].mxu0 %v698
      %v1251 = vpop.f32.mrb[0].mxu0
      %v1252 = vadd.f32 %v1091, %v1251
      %v1253 = vpop.f32.mrb[0].mxu0
      %v1254 = vpop.f32.mrb[0].mxu0
      %v1255 = vadd.f32 %v1094, %v1254
      %v1256 = vpop.f32.mrb[0].mxu0
      %1257 = vmatprep.mubr.bf16.mxu0 %v703
      %1258 = vmatmul.mubr.bf16.gmra.mrb[0].mxu0 %v702
      %v1259 = vpop.f32.mrb[0].mxu0
      %v1260 = vadd.f32 %v1099, %v1259
      %v1261 = vpop.f32.mrb[0].mxu0
      %v1262 = vpop.f32.mrb[0].mxu0
      %v1263 = vadd.f32 %v1102, %v1262
      %v1264 = vpop.f32.mrb[0].mxu0
      %1265 = vmatprep.mubr.bf16.mxu0 %v707
      %1266 = vmatmul.mubr.bf16.gmra.mrb[0].mxu0 %v706
      %v1267 = vpop.f32.mrb[0].mxu0
      %v1268 = vadd.f32 %v1107, %v1267
      %v1269 = vpop.f32.mrb[0].mxu0
      %v1270 = vpop.f32.mrb[0].mxu0
      %v1271 = vadd.f32 %v1110, %v1270
      %v1272 = vpop.f32.mrb[0].mxu0
      %1273 = vmatprep.mubr.bf16.mxu0 %v711
      %1274 = vmatmul.mubr.bf16.gmra.mrb[0].mxu0 %v710
      %v1275 = vpop.f32.mrb[0].mxu0
      %v1276 = vadd.f32 %v1115, %v1275
      %v1277 = vpop.f32.mrb[0].mxu0
      %v1278 = vpop.f32.mrb[0].mxu0
      %v1279 = vadd.f32 %v1118, %v1278
      %v1280 = vpop.f32.mrb[0].mxu0
      %1281 = vmatprep.mubr.bf16.mxu0 %v715
      %1282 = vmatmul.mubr.bf16.gmra.mrb[0].mxu0 %v714
      %v1283 = vpop.f32.mrb[0].mxu0
      %v1284 = vadd.f32 %v1123, %v1283
      %v1285 = vpop.f32.mrb[0].mxu0
      %v1286 = vpop.f32.mrb[0].mxu0
      %v1287 = vadd.f32 %v1126, %v1286
      %v1288 = vpop.f32.mrb[0].mxu0
      %1289 = vmatprep.mubr.bf16.mxu0 %v719
      %1290 = vmatmul.mubr.bf16.gmra.mrb[0].mxu0 %v718
      %v1291 = vpop.f32.mrb[0].mxu0
      %v1292 = vadd.f32 %v1131, %v1291
      %v1293 = vpop.f32.mrb[0].mxu0
      %v1294 = vpop.f32.mrb[0].mxu0
      %v1295 = vadd.f32 %v1134, %v1294
      %v1296 = vpop.f32.mrb[0].mxu0
      %1297 = vdwg.mxu0
      %v1298 = vadd.f32 %v304, %v1172
      %v1299 = vadd.f32 %v305, %v1175
      %v1300 = vadd.f32 %v306, %v1180
      %v1301 = vadd.f32 %v307, %v1183
      %v1302 = vadd.f32 %v308, %v1188
      %v1303 = vadd.f32 %v309, %v1191
      %v1304 = vadd.f32 %v310, %v1196
      %v1305 = vadd.f32 %v311, %v1199
      %v1306 = vadd.f32 %v312, %v1204
      %v1307 = vadd.f32 %v313, %v1207
      %v1308 = vadd.f32 %v314, %v1212
      %v1309 = vadd.f32 %v315, %v1215
      %v1310 = vadd.f32 %v316, %v1220
      %v1311 = vadd.f32 %v317, %v1223
      %v1312 = vadd.f32 %v318, %v1228
      %v1313 = vadd.f32 %v319, %v1231
      %v1314 = vadd.f32 %v320, %v1236
      %v1315 = vadd.f32 %v321, %v1239
      %v1316 = vadd.f32 %v322, %v1244
      %v1317 = vadd.f32 %v323, %v1247
      %v1318 = vadd.f32 %v324, %v1252
      %v1319 = vadd.f32 %v325, %v1255
      %v1320 = vadd.f32 %v326, %v1260
      %v1321 = vadd.f32 %v327, %v1263
      %v1322 = vadd.f32 %v328, %v1268
      %v1323 = vadd.f32 %v329, %v1271
      %v1324 = vadd.f32 %v330, %v1276
      %v1325 = vadd.f32 %v331, %v1279
      %v1326 = vadd.f32 %v332, %v1284
      %v1327 = vadd.f32 %v333, %v1287
      %v1328 = vadd.f32 %v334, %v1292
      %v1329 = vadd.f32 %v335, %v1295
      %1330 = vst [vmem:[#allocation2] sm:$0xff] %v1298
      %1331 = vst [vmem:[#allocation2 + $0x8] sm:$0xff] %v1299
      %1332 = vst [vmem:[#allocation2 + $0x10] sm:$0xff] %v1300
      %1333 = vst [vmem:[#allocation2 + $0x18] sm:$0xff] %v1301
      %1334 = vst [vmem:[#allocation2 + $0x20] sm:$0xff] %v1302
      %1335 = vst [vmem:[#allocation2 + $0x28] sm:$0xff] %v1303
      %1336 = vst [vmem:[#allocation2 + $0x30] sm:$0xff] %v1304
      %1337 = vst [vmem:[#allocation2 + $0x38] sm:$0xff] %v1305
      %1338 = vst [vmem:[#allocation2 + $0x40] sm:$0xff] %v1306
      %1339 = vst [vmem:[#allocation2 + $0x48] sm:$0xff] %v1307
      %1340 = vst [vmem:[#allocation2 + $0x50] sm:$0xff] %v1308
      %1341 = vst [vmem:[#allocation2 + $0x58] sm:$0xff] %v1309
      %1342 = vst [vmem:[#allocation2 + $0x60] sm:$0xff] %v1310
      %1343 = vst [vmem:[#allocation2 + $0x68] sm:$0xff] %v1311
      %1344 = vst [vmem:[#allocation2 + $0x70] sm:$0xff] %v1312
      %1345 = vst [vmem:[#allocation2 + $0x78] sm:$0xff] %v1313
      %1346 = vst [vmem:[#allocation2 + $0x80] sm:$0xff] %v1314
      %1347 = vst [vmem:[#allocation2 + $0x88] sm:$0xff] %v1315
      %1348 = vst [vmem:[#allocation2 + $0x90] sm:$0xff] %v1316
      %1349 = vst [vmem:[#allocation2 + $0x98] sm:$0xff] %v1317
      %1350 = vst [vmem:[#allocation2 + $0xa0] sm:$0xff] %v1318
      %1351 = vst [vmem:[#allocation2 + $0xa8] sm:$0xff] %v1319
      %1352 = vst [vmem:[#allocation2 + $0xb0] sm:$0xff] %v1320
      %1353 = vst [vmem:[#allocation2 + $0xb8] sm:$0xff] %v1321
      %1354 = vst [vmem:[#allocation2 + $0xc0] sm:$0xff] %v1322
      %1355 = vst [vmem:[#allocation2 + $0xc8] sm:$0xff] %v1323
      %1356 = vst [vmem:[#allocation2 + $0xd0] sm:$0xff] %v1324
      %1357 = vst [vmem:[#allocation2 + $0xd8] sm:$0xff] %v1325
      %1358 = vst [vmem:[#allocation2 + $0xe0] sm:$0xff] %v1326
      %1359 = vst [vmem:[#allocation2 + $0xe8] sm:$0xff] %v1327
      %1360 = vst [vmem:[#allocation2 + $0xf0] sm:$0xff] %v1328
      %1361 = vst [vmem:[#allocation2 + $0xf8] sm:$0xff] %v1329
      // Predicated region
      $region37: #{scgnn_forward.5} parent=31 // pred_check
        %p1362 = pneg %p268
      $region38: #{scgnn_forward.5} parent=31 // pred_check_branch
        %1364 = sbr.rel (%p1362) target = $region40
      $region39: #{scgnn_forward.5} parent=31 // pred_region
        %v1365 = vld [vmem:[#allocation2] sm:$0xff]
        %v1366 = vld [vmem:[#allocation2 + $0x8] sm:$0xff]
        %v1367 = vld [vmem:[#allocation2 + $0x10] sm:$0xff]
        %v1368 = vld [vmem:[#allocation2 + $0x18] sm:$0xff]
        %v1369 = vld [vmem:[#allocation2 + $0x20] sm:$0xff]
        %v1370 = vld [vmem:[#allocation2 + $0x28] sm:$0xff]
        %v1371 = vld [vmem:[#allocation2 + $0x30] sm:$0xff]
        %v1372 = vld [vmem:[#allocation2 + $0x38] sm:$0xff]
        %v1373 = vld [vmem:[#allocation2 + $0x40] sm:$0xff]
        %v1374 = vld [vmem:[#allocation2 + $0x48] sm:$0xff]
        %v1375 = vld [vmem:[#allocation2 + $0x50] sm:$0xff]
        %v1376 = vld [vmem:[#allocation2 + $0x58] sm:$0xff]
        %v1377 = vld [vmem:[#allocation2 + $0x60] sm:$0xff]
        %v1378 = vld [vmem:[#allocation2 + $0x68] sm:$0xff]
        %v1379 = vld [vmem:[#allocation2 + $0x70] sm:$0xff]
        %v1380 = vld [vmem:[#allocation2 + $0x78] sm:$0xff]
        %v1381 = vld [vmem:[#allocation2 + $0x80] sm:$0xff]
        %v1382 = vld [vmem:[#allocation2 + $0x88] sm:$0xff]
        %v1383 = vld [vmem:[#allocation2 + $0x90] sm:$0xff]
        %v1384 = vld [vmem:[#allocation2 + $0x98] sm:$0xff]
        %v1385 = vld [vmem:[#allocation2 + $0xa0] sm:$0xff]
        %v1386 = vld [vmem:[#allocation2 + $0xa8] sm:$0xff]
        %v1387 = vld [vmem:[#allocation2 + $0xb0] sm:$0xff]
        %v1388 = vld [vmem:[#allocation2 + $0xb8] sm:$0xff]
        %v1389 = vld [vmem:[#allocation2 + $0xc0] sm:$0xff]
        %v1390 = vld [vmem:[#allocation2 + $0xc8] sm:$0xff]
        %v1391 = vld [vmem:[#allocation2 + $0xd0] sm:$0xff]
        %v1392 = vld [vmem:[#allocation2 + $0xd8] sm:$0xff]
        %v1393 = vld [vmem:[#allocation2 + $0xe0] sm:$0xff]
        %v1394 = vld [vmem:[#allocation2 + $0xe8] sm:$0xff]
        %v1395 = vld [vmem:[#allocation2 + $0xf0] sm:$0xff]
        %v1396 = vld [vmem:[#allocation2 + $0xf8] sm:$0xff]
        %v1397 = vld [vmem:[%s257] sm:$0x1]
        %v1399 = vlaneseq
        %v1400 = vshrl.u32 %v1399, 7
        %v1401 = vsub.s32 0, %v1400
        %v1402 = vrot.slane %v1397, %v1401
        %v1404 = vadd.f32 %v1365, %v1402
        %v1405 = vadd.f32 %v1366, %v1402
        %v1406 = vadd.f32 %v1367, %v1402
        %v1407 = vadd.f32 %v1368, %v1402
        %v1408 = vadd.f32 %v1369, %v1402
        %v1409 = vadd.f32 %v1370, %v1402
        %v1410 = vadd.f32 %v1371, %v1402
        %v1411 = vadd.f32 %v1372, %v1402
        %v1412 = vadd.f32 %v1373, %v1402
        %v1413 = vadd.f32 %v1374, %v1402
        %v1414 = vadd.f32 %v1375, %v1402
        %v1415 = vadd.f32 %v1376, %v1402
        %v1416 = vadd.f32 %v1377, %v1402
        %v1417 = vadd.f32 %v1378, %v1402
        %v1418 = vadd.f32 %v1379, %v1402
        %v1419 = vadd.f32 %v1380, %v1402
        %v1420 = vadd.f32 %v1381, %v1402
        %v1421 = vadd.f32 %v1382, %v1402
        %v1422 = vadd.f32 %v1383, %v1402
        %v1423 = vadd.f32 %v1384, %v1402
        %v1424 = vadd.f32 %v1385, %v1402
        %v1425 = vadd.f32 %v1386, %v1402
        %v1426 = vadd.f32 %v1387, %v1402
        %v1427 = vadd.f32 %v1388, %v1402
        %v1428 = vadd.f32 %v1389, %v1402
        %v1429 = vadd.f32 %v1390, %v1402
        %v1430 = vadd.f32 %v1391, %v1402
        %v1431 = vadd.f32 %v1392, %v1402
        %v1432 = vadd.f32 %v1393, %v1402
        %v1433 = vadd.f32 %v1394, %v1402
        %v1434 = vadd.f32 %v1395, %v1402
        %v1435 = vadd.f32 %v1396, %v1402
        %1436 = vst [vmem:[%s265] sm:$0xff] %v1404
        %1437 = vst [vmem:[%s265 + $0x8] sm:$0xff] %v1405
        %1438 = vst [vmem:[%s265 + $0x10] sm:$0xff] %v1406
        %1439 = vst [vmem:[%s265 + $0x18] sm:$0xff] %v1407
        %1440 = vst [vmem:[%s265 + $0x20] sm:$0xff] %v1408
        %1441 = vst [vmem:[%s265 + $0x28] sm:$0xff] %v1409
        %1442 = vst [vmem:[%s265 + $0x30] sm:$0xff] %v1410
        %1443 = vst [vmem:[%s265 + $0x38] sm:$0xff] %v1411
        %1444 = vst [vmem:[%s265 + $0x40] sm:$0xff] %v1412
        %1445 = vst [vmem:[%s265 + $0x48] sm:$0xff] %v1413
        %1446 = vst [vmem:[%s265 + $0x50] sm:$0xff] %v1414
        %1447 = vst [vmem:[%s265 + $0x58] sm:$0xff] %v1415
        %1448 = vst [vmem:[%s265 + $0x60] sm:$0xff] %v1416
        %1449 = vst [vmem:[%s265 + $0x68] sm:$0xff] %v1417
        %1450 = vst [vmem:[%s265 + $0x70] sm:$0xff] %v1418
        %1451 = vst [vmem:[%s265 + $0x78] sm:$0xff] %v1419
        %1452 = vst [vmem:[%s265 + $0x80] sm:$0xff] %v1420
        %1453 = vst [vmem:[%s265 + $0x88] sm:$0xff] %v1421
        %1454 = vst [vmem:[%s265 + $0x90] sm:$0xff] %v1422
        %1455 = vst [vmem:[%s265 + $0x98] sm:$0xff] %v1423
        %1456 = vst [vmem:[%s265 + $0xa0] sm:$0xff] %v1424
        %1457 = vst [vmem:[%s265 + $0xa8] sm:$0xff] %v1425
        %1458 = vst [vmem:[%s265 + $0xb0] sm:$0xff] %v1426
        %1459 = vst [vmem:[%s265 + $0xb8] sm:$0xff] %v1427
        %1460 = vst [vmem:[%s265 + $0xc0] sm:$0xff] %v1428
        %1461 = vst [vmem:[%s265 + $0xc8] sm:$0xff] %v1429
        %1462 = vst [vmem:[%s265 + $0xd0] sm:$0xff] %v1430
        %1463 = vst [vmem:[%s265 + $0xd8] sm:$0xff] %v1431
        %1464 = vst [vmem:[%s265 + $0xe0] sm:$0xff] %v1432
        %1465 = vst [vmem:[%s265 + $0xe8] sm:$0xff] %v1433
        %1466 = vst [vmem:[%s265 + $0xf0] sm:$0xff] %v1434
        %1467 = vst [vmem:[%s265 + $0xf8] sm:$0xff] %v1435
      $region40: #{scgnn_forward.5} parent=31 // pred_fallthru
        _
      %s1468 = smul.u32 32, %s19
      %p1469 = scmp.lt.s32.totalorder %s1468, 63
      %s1470 = scalar_select %p1469, %s1468, 63
      %p1471 = scmp.lt.s32.totalorder %s20, 0
      %s1472 = scalar_select %p1471, %s20, 0
      %s1473 = sadd.s32 %s1472, %s1470
      %s1474 = smul.addr %s1473, 8
      %s1475 = scalar_lea.vmem %s3, %s1474
      // Predicated region
      $region41: #{scgnn_forward.5} parent=31 // pred_check
        %p1476 = pneg %p135
      $region42: #{scgnn_forward.5} parent=31 // pred_check_branch
        %1478 = sbr.rel (%p1476) target = $region44
      $region43: #{scgnn_forward.5} parent=31 // pred_region
        %s1479 = smul.u32 32, %s19
      $region44: #{scgnn_forward.5} parent=31 // pred_fallthru
        _
    $region32: #{scgnn_forward.5} parent=5 // pred_fallthru
      _
    %p1480 = scmp.le.s32.totalorder 2, %s9
    // Predicated region
    $region45: #{scgnn_forward.5} parent=5 // pred_check
      %p1481 = pneg %p1480
    $region46: #{scgnn_forward.5} parent=5 // pred_check_branch
      %1483 = sbr.rel (%p1481) target = $region48
    $region47: #{scgnn_forward.5} parent=5 // pred_region
      %s1484 = ssub.s32 %s9, 2
      // Predicated region
      $region49: #{scgnn_forward.5} parent=47 // pred_check
        %p1485 = pneg %p141
      $region50: #{scgnn_forward.5} parent=47 // pred_check_branch
        %1487 = sbr.rel (%p1485) target = $region52
      $region51: #{scgnn_forward.5} parent=47 // pred_region
        %s1488 = smul.u32 32, %s22
        %p1489 = scmp.lt.s32.totalorder %s1488, 63
        %s1490 = scalar_select %p1489, %s1488, 63
        %p1491 = scmp.lt.s32.totalorder %s23, 0
        %s1492 = scalar_select %p1491, %s23, 0
        %s1493 = sadd.s32 %s1492, %s1490
        %s1494 = smul.addr %s1493, 8
        %s1495 = scalar_lea.vmem %s3, %s1494
      $region52: #{scgnn_forward.5} parent=47 // pred_fallthru
        _
    $region48: #{scgnn_forward.5} parent=5 // pred_fallthru
      _
  $region6: #{scgnn_forward.5} parent=0 // loop_footer
    %s13 = sadd.s32 1, %s9
  $region7: #{scgnn_forward.5} parent=0 // loop_footer_branch
    %8 = sbr.rel target = $region3
  $region8: #{scgnn_forward.5} parent=0 // loop_exit
    _

// kernel: scgnn_forward.4
$region0: #{scgnn_forward.4}
  #allocation0 [shape = 'u32[]', space=smem, size = 0x4, offset = 0x4, fixed_abs, tag = 'smem constant byte address 0x4 - core index']
  #allocation1 [shape = 'u32[144,128]{1,0:T(1,128)}', space=vmem, size = 0x12000, scoped, tag = 'internal scratch']
  #allocation2 [shape = 'f32[256,128]{1,0:T(8,128)}', space=vmem, size = 0x20000, scoped, tag = 'scratch operand']
  %s0 = inlined_call_operand.vmem [shape: bf16[512,512], index: 0, kind: input, shape index: {}]
  %s1 = inlined_call_operand.vmem [shape: bf16[512,128], index: 1, kind: input, shape index: {}]
  %s2 = inlined_call_operand.vmem [shape: f32[1,128], index: 2, kind: input, shape index: {}]
  %s3 = inlined_call_operand.vmem [shape: bf16[128,128], index: 3, kind: input, shape index: {}]
  %s4 = inlined_call_operand.vmem [shape: bf16[512,128], index: 4, kind: output, shape index: {}]
  %s5 = sld [smem:[#allocation0]]
  $region57: #{scgnn_forward.4} parent=0
    _
  %s7 = ssub.s32 1, %s5
  %s8 = scalar_select 0, %s7, %s5
  loop: start=0, step=1, limit=4
  $region2: #{scgnn_forward.4} parent=0 // loop_pre_header
    _
  $region3: #{scgnn_forward.4} parent=0 // loop_header
    %s10 = sphi 0, %s14
    %p11 = scmp.ge.s32.totalorder %s10, 4
    %s17 = sphi 0, %s29
    %s18 = sphi 0, %s25
    %s19 = sphi 0, %s17
    %s20 = sphi 0, %s18
    %s21 = sphi 0, %s19
    %s22 = sphi 0, %s20
    %s34 = sphi 0, %s36
    %s37 = sphi 0, %s34
    %s38 = sphi 0, %s37
    %s54 = sphi 0, %s38
    %s60 = sphi 0, %s62
    %s63 = sphi 0, %s60
    %s64 = sphi 0, %s63
    %s80 = sphi 0, %s64
    %s84 = sphi 0, %s84
    %s86 = sphi 0, %s84
    %s87 = sphi 0, %s86
    %s101 = sphi 0, %s87
    %s105 = sphi 0, %s105
    %s107 = sphi 0, %s105
    %s108 = sphi 0, %s107
    %s122 = sphi 0, %s108
    %s128 = sphi 0, %s130
    %s131 = sphi 0, %s128
    %s132 = sphi 0, %s131
    %s148 = sphi 0, %s132
  $region4: #{scgnn_forward.4} parent=0 // loop_header_branch
    %13 = sbr.rel (%p11) target = $region8
  $region5: #{scgnn_forward.4} parent=0 // loop_body
    %s15 = ssub.s32 %s10, 1
    %s16 = ssub.s32 %s10, 2
    %s23 = sadd.s32 1, %s18
    %p24 = scmp.ge.s32.totalorder %s23, 1
    %s25 = scalar_select %p24, 0, %s23
    %s26 = sadd.s32 1, %s17
    %s27 = scalar_select %p24, %s26, %s17
    %p28 = scmp.ge.s32.totalorder %s27, 2
    %s29 = scalar_select %p28, 0, %s27
    %s30 = ssub.s32 %s17, %s29
    %s31 = ssub.s32 %s18, %s25
    %s32 = sor.u32 %s30, %s31
    %p33 = scmp.eq.s32.totalorder %s32, 0
    %s35 = sadd.s32 %s34, 1
    %s36 = scalar_select %p33, %s34, %s35
    %p39 = pneg %p33
    %p40 = scmp.eq.s32.totalorder %s10, 1
    %p41 = por %p39, %p40
    %p42 = scmp.ne.s32.totalorder %s34, %s37
    %p43 = scmp.eq.s32.totalorder %s10, 0
    %p44 = por %p42, %p43
    %p45 = scmp.ne.s32.totalorder %s34, %s37
    %p46 = scmp.eq.s32.totalorder %s15, 1
    %p47 = por %p45, %p46
    %p48 = scmp.ne.s32.totalorder %s37, %s38
    %p49 = scmp.eq.s32.totalorder %s15, 0
    %p50 = por %p48, %p49
    %p51 = scmp.ne.s32.totalorder %s37, %s38
    %p52 = scmp.eq.s32.totalorder %s16, 1
    %p53 = por %p51, %p52
    %p55 = scmp.ne.s32.totalorder %s38, %s54
    %p56 = scmp.eq.s32.totalorder %s16, 0
    %p57 = por %p55, %p56
    %s58 = ssub.s32 %s18, %s25
    %p59 = scmp.eq.s32.totalorder %s58, 0
    %s61 = sadd.s32 %s60, 1
    %s62 = scalar_select %p59, %s60, %s61
    %p65 = pneg %p59
    %p66 = scmp.eq.s32.totalorder %s10, 1
    %p67 = por %p65, %p66
    %p68 = scmp.ne.s32.totalorder %s60, %s63
    %p69 = scmp.eq.s32.totalorder %s10, 0
    %p70 = por %p68, %p69
    %p71 = scmp.ne.s32.totalorder %s60, %s63
    %p72 = scmp.eq.s32.totalorder %s15, 1
    %p73 = por %p71, %p72
    %p74 = scmp.ne.s32.totalorder %s63, %s64
    %p75 = scmp.eq.s32.totalorder %s15, 0
    %p76 = por %p74, %p75
    %p77 = scmp.ne.s32.totalorder %s63, %s64
    %p78 = scmp.eq.s32.totalorder %s16, 1
    %p79 = por %p77, %p78
    %p81 = scmp.ne.s32.totalorder %s64, %s80
    %p82 = scmp.eq.s32.totalorder %s16, 0
    %p83 = por %p81, %p82
    %s85 = sadd.s32 %s84, 1
    %p88 = scmp.eq.s32.totalorder %s10, 1
    %p89 = scmp.ne.s32.totalorder %s84, %s86
    %p90 = scmp.eq.s32.totalorder %s10, 0
    %p91 = por %p89, %p90
    %p92 = scmp.ne.s32.totalorder %s84, %s86
    %p93 = scmp.eq.s32.totalorder %s15, 1
    %p94 = por %p92, %p93
    %p95 = scmp.ne.s32.totalorder %s86, %s87
    %p96 = scmp.eq.s32.totalorder %s15, 0
    %p97 = por %p95, %p96
    %p98 = scmp.ne.s32.totalorder %s86, %s87
    %p99 = scmp.eq.s32.totalorder %s16, 1
    %p100 = por %p98, %p99
    %p102 = scmp.ne.s32.totalorder %s87, %s101
    %p103 = scmp.eq.s32.totalorder %s16, 0
    %p104 = por %p102, %p103
    %s106 = sadd.s32 %s105, 1
    %p109 = scmp.eq.s32.totalorder %s10, 1
    %p110 = scmp.ne.s32.totalorder %s105, %s107
    %p111 = scmp.eq.s32.totalorder %s10, 0
    %p112 = por %p110, %p111
    %p113 = scmp.ne.s32.totalorder %s105, %s107
    %p114 = scmp.eq.s32.totalorder %s15, 1
    %p115 = por %p113, %p114
    %p116 = scmp.ne.s32.totalorder %s107, %s108
    %p117 = scmp.eq.s32.totalorder %s15, 0
    %p118 = por %p116, %p117
    %p119 = scmp.ne.s32.totalorder %s107, %s108
    %p120 = scmp.eq.s32.totalorder %s16, 1
    %p121 = por %p119, %p120
    %p123 = scmp.ne.s32.totalorder %s108, %s122
    %p124 = scmp.eq.s32.totalorder %s16, 0
    %p125 = por %p123, %p124
    %s126 = ssub.s32 %s17, %s29
    %p127 = scmp.eq.s32.totalorder %s126, 0
    %s129 = sadd.s32 %s128, 1
    %s130 = scalar_select %p127, %s128, %s129
    %p133 = pneg %p127
    %p134 = scmp.eq.s32.totalorder %s10, 1
    %p135 = por %p133, %p134
    %p136 = scmp.ne.s32.totalorder %s128, %s131
    %p137 = scmp.eq.s32.totalorder %s10, 0
    %p138 = por %p136, %p137
    %p139 = scmp.ne.s32.totalorder %s128, %s131
    %p140 = scmp.eq.s32.totalorder %s15, 1
    %p141 = por %p139, %p140
    %p142 = scmp.ne.s32.totalorder %s131, %s132
    %p143 = scmp.eq.s32.totalorder %s15, 0
    %p144 = por %p142, %p143
    %p145 = scmp.ne.s32.totalorder %s131, %s132
    %p146 = scmp.eq.s32.totalorder %s16, 1
    %p147 = por %p145, %p146
    %p149 = scmp.ne.s32.totalorder %s132, %s148
    %p150 = scmp.eq.s32.totalorder %s16, 0
    %p151 = por %p149, %p150
    %p152 = scmp.le.s32.totalorder 1, %s10
    %p153 = scmp.lt.s32.totalorder %s10, 3
    %p154 = pnand %p152, %p153
    %p155 = pneg %p154
    // Predicated region
    $region9: #{scgnn_forward.4} parent=5 // pred_check
      _
    $region10: #{scgnn_forward.4} parent=5 // pred_check_branch
      %157 = sbr.rel (%p154) target = $region12
    $region11: #{scgnn_forward.4} parent=5 // pred_region
      %s158 = ssub.s32 %s10, 1
      // Predicated region
      $region13: #{scgnn_forward.4} parent=11 // pred_check
        %p159 = pneg %p76
      $region14: #{scgnn_forward.4} parent=11 // pred_check_branch
        %161 = sbr.rel (%p159) target = $region16
      $region15: #{scgnn_forward.4} parent=11 // pred_region
        %s162 = smul.u32 64, %s20
        %p163 = scmp.lt.s32.totalorder %s162, 63
        %s164 = scalar_select %p163, %s162, 63
        %s165 = smul.addr %s164, 4
        %s166 = scalar_lea.vmem %s1, %s165
        %s167 = smul.u32 64, %s20
      $region16: #{scgnn_forward.4} parent=11 // pred_fallthru
        _
      // Predicated region
      $region17: #{scgnn_forward.4} parent=11 // pred_check
        %p168 = pneg %p97
      $region18: #{scgnn_forward.4} parent=11 // pred_check_branch
        %170 = sbr.rel (%p168) target = $region20
      $region19: #{scgnn_forward.4} parent=11 // pred_region
        _
      $region20: #{scgnn_forward.4} parent=11 // pred_fallthru
        _
      // Predicated region
      $region21: #{scgnn_forward.4} parent=11 // pred_check
        %p171 = pneg %p118
      $region22: #{scgnn_forward.4} parent=11 // pred_check_branch
        %173 = sbr.rel (%p171) target = $region24
      $region23: #{scgnn_forward.4} parent=11 // pred_region
        _
      $region24: #{scgnn_forward.4} parent=11 // pred_fallthru
        _
    $region12: #{scgnn_forward.4} parent=5 // pred_fallthru
      _
    %p174 = scmp.lt.s32.totalorder %s10, 2
    // Predicated region
    $region25: #{scgnn_forward.4} parent=5 // pred_check
      %p175 = pneg %p174
    $region26: #{scgnn_forward.4} parent=5 // pred_check_branch
      %177 = sbr.rel (%p175) target = $region28
    $region27: #{scgnn_forward.4} parent=5 // pred_region
      // Predicated region
      $region29: #{scgnn_forward.4} parent=27 // pred_check
        %p178 = pneg %p44
      $region30: #{scgnn_forward.4} parent=27 // pred_check_branch
        %180 = sbr.rel (%p178) target = $region32
      $region31: #{scgnn_forward.4} parent=27 // pred_region
        %s181 = smul.u32 32, %s17
        %s182 = smul.u32 4, %s18
        %p183 = scmp.lt.s32.totalorder %s181, 63
        %s184 = scalar_select %p183, %s181, 63
        %p185 = scmp.lt.s32.totalorder %s182, 3
        %s186 = scalar_select %p185, %s182, 3
        %s187 = smul.addr %s184, 4
        %s188 = sadd.s32 %s186, %s187
        %s189 = smul.addr %s188, 4
        %s190 = scalar_lea.vmem %s0, %s189
        %s191 = smul.u32 32, %s17
        %s192 = smul.u32 4, %s18
      $region32: #{scgnn_forward.4} parent=27 // pred_fallthru
        _
    $region28: #{scgnn_forward.4} parent=5 // pred_fallthru
      _
    %p193 = scmp.le.s32.totalorder 1, %s10
    %p194 = scmp.lt.s32.totalorder %s10, 3
    %p195 = pnand %p193, %p194
    %p196 = pneg %p195
    // Predicated region
    $region33: #{scgnn_forward.4} parent=5 // pred_check
      _
    $region34: #{scgnn_forward.4} parent=5 // pred_check_branch
      %198 = sbr.rel (%p195) target = $region36
    $region35: #{scgnn_forward.4} parent=5 // pred_region
      %s199 = ssub.s32 %s10, 1
      %s200 = smul.u32 32, %s19
      %s201 = smul.u32 4, %s20
      %p202 = scmp.lt.s32.totalorder %s200, 63
      %s203 = scalar_select %p202, %s200, 63
      %p204 = scmp.lt.s32.totalorder %s201, 3
      %s205 = scalar_select %p204, %s201, 3
      %s206 = smul.addr %s203, 4
      %s207 = sadd.s32 %s205, %s206
      %s208 = smul.addr %s207, 4
      %s209 = scalar_lea.vmem %s0, %s208
      %p210 = pneg %p50
      %p211 = pneg %p47
      %s212 = smul.u32 64, %s20
      %p213 = scmp.lt.s32.totalorder %s212, 63
      %s214 = scalar_select %p213, %s212, 63
      %s215 = smul.addr %s214, 4
      %s216 = scalar_lea.vmem %s1, %s215
      %p217 = pneg %p76
      %p218 = pneg %p73
      %p219 = pneg %p97
      %p220 = pneg %p94
      %p221 = pneg %p118
      %p222 = pneg %p115
      %p223 = pneg %p144
      %p224 = pneg %p141
      %s225 = smul.u32 32, %s19
      %p226 = scmp.lt.s32.totalorder %s225, 63
      %s227 = scalar_select %p226, %s225, 63
      %s228 = smul.addr %s227, 4
      %s229 = scalar_lea.vmem %s4, %s228
      %s230 = smul.u32 32, %s19
      %s231 = smul.u32 4, %s20
      %p232 = scmp.lt.s32.totalorder %s230, 63
      %s233 = scalar_select %p232, %s230, 63
      %p234 = scmp.lt.s32.totalorder %s231, 3
      %s235 = scalar_select %p234, %s231, 3
      %s236 = smul.addr %s233, 4
      %s237 = sadd.s32 %s235, %s236
      %s238 = smul.addr %s237, 4
      %s239 = scalar_lea.vmem %s0, %s238
      %s240 = smul.u32 32, %s19
      %s241 = smul.u32 4, %s20
      %s242 = smul.u32 64, %s20
      %p243 = scmp.lt.s32.totalorder %s242, 63
      %s244 = scalar_select %p243, %s242, 63
      %s245 = smul.addr %s244, 4
      %s246 = scalar_lea.vmem %s1, %s245
      %s247 = smul.u32 64, %s20
      %s248 = smul.u32 32, %s19
      %p249 = scmp.lt.s32.totalorder %s248, 63
      %s250 = scalar_select %p249, %s248, 63
      %s251 = smul.addr %s250, 4
      %s252 = scalar_lea.vmem %s4, %s251
      %s253 = smul.u32 32, %s19
      %p255 = scmp.eq.s32.totalorder %s20, 0
      // Predicated region
      $region37: #{scgnn_forward.4} parent=35 // pred_check
        %p256 = pneg %p255
      $region38: #{scgnn_forward.4} parent=35 // pred_check_branch
        %258 = sbr.rel (%p256) target = $region40
      $region39: #{scgnn_forward.4} parent=35 // pred_region
        %259 = vst [vmem:[#allocation2] sm:$0xff] 0.0
        %260 = vst [vmem:[#allocation2 + $0x8] sm:$0xff] 0.0
        %261 = vst [vmem:[#allocation2 + $0x10] sm:$0xff] 0.0
        %262 = vst [vmem:[#allocation2 + $0x18] sm:$0xff] 0.0
        %263 = vst [vmem:[#allocation2 + $0x20] sm:$0xff] 0.0
        %264 = vst [vmem:[#allocation2 + $0x28] sm:$0xff] 0.0
        %265 = vst [vmem:[#allocation2 + $0x30] sm:$0xff] 0.0
        %266 = vst [vmem:[#allocation2 + $0x38] sm:$0xff] 0.0
        %267 = vst [vmem:[#allocation2 + $0x40] sm:$0xff] 0.0
        %268 = vst [vmem:[#allocation2 + $0x48] sm:$0xff] 0.0
        %269 = vst [vmem:[#allocation2 + $0x50] sm:$0xff] 0.0
        %270 = vst [vmem:[#allocation2 + $0x58] sm:$0xff] 0.0
        %271 = vst [vmem:[#allocation2 + $0x60] sm:$0xff] 0.0
        %272 = vst [vmem:[#allocation2 + $0x68] sm:$0xff] 0.0
        %273 = vst [vmem:[#allocation2 + $0x70] sm:$0xff] 0.0
        %274 = vst [vmem:[#allocation2 + $0x78] sm:$0xff] 0.0
        %275 = vst [vmem:[#allocation2 + $0x80] sm:$0xff] 0.0
        %276 = vst [vmem:[#allocation2 + $0x88] sm:$0xff] 0.0
        %277 = vst [vmem:[#allocation2 + $0x90] sm:$0xff] 0.0
        %278 = vst [vmem:[#allocation2 + $0x98] sm:$0xff] 0.0
        %279 = vst [vmem:[#allocation2 + $0xa0] sm:$0xff] 0.0
        %280 = vst [vmem:[#allocation2 + $0xa8] sm:$0xff] 0.0
        %281 = vst [vmem:[#allocation2 + $0xb0] sm:$0xff] 0.0
        %282 = vst [vmem:[#allocation2 + $0xb8] sm:$0xff] 0.0
        %283 = vst [vmem:[#allocation2 + $0xc0] sm:$0xff] 0.0
        %284 = vst [vmem:[#allocation2 + $0xc8] sm:$0xff] 0.0
        %285 = vst [vmem:[#allocation2 + $0xd0] sm:$0xff] 0.0
        %286 = vst [vmem:[#allocation2 + $0xd8] sm:$0xff] 0.0
        %287 = vst [vmem:[#allocation2 + $0xe0] sm:$0xff] 0.0
        %288 = vst [vmem:[#allocation2 + $0xe8] sm:$0xff] 0.0
        %289 = vst [vmem:[#allocation2 + $0xf0] sm:$0xff] 0.0
        %290 = vst [vmem:[#allocation2 + $0xf8] sm:$0xff] 0.0
      $region40: #{scgnn_forward.4} parent=35 // pred_fallthru
        _
      %v291 = vld [vmem:[#allocation2] sm:$0xff]
      %v292 = vld [vmem:[#allocation2 + $0x8] sm:$0xff]
      %v293 = vld [vmem:[#allocation2 + $0x10] sm:$0xff]
      %v294 = vld [vmem:[#allocation2 + $0x18] sm:$0xff]
      %v295 = vld [vmem:[#allocation2 + $0x20] sm:$0xff]
      %v296 = vld [vmem:[#allocation2 + $0x28] sm:$0xff]
      %v297 = vld [vmem:[#allocation2 + $0x30] sm:$0xff]
      %v298 = vld [vmem:[#allocation2 + $0x38] sm:$0xff]
      %v299 = vld [vmem:[#allocation2 + $0x40] sm:$0xff]
      %v300 = vld [vmem:[#allocation2 + $0x48] sm:$0xff]
      %v301 = vld [vmem:[#allocation2 + $0x50] sm:$0xff]
      %v302 = vld [vmem:[#allocation2 + $0x58] sm:$0xff]
      %v303 = vld [vmem:[#allocation2 + $0x60] sm:$0xff]
      %v304 = vld [vmem:[#allocation2 + $0x68] sm:$0xff]
      %v305 = vld [vmem:[#allocation2 + $0x70] sm:$0xff]
      %v306 = vld [vmem:[#allocation2 + $0x78] sm:$0xff]
      %v307 = vld [vmem:[#allocation2 + $0x80] sm:$0xff]
      %v308 = vld [vmem:[#allocation2 + $0x88] sm:$0xff]
      %v309 = vld [vmem:[#allocation2 + $0x90] sm:$0xff]
      %v310 = vld [vmem:[#allocation2 + $0x98] sm:$0xff]
      %v311 = vld [vmem:[#allocation2 + $0xa0] sm:$0xff]
      %v312 = vld [vmem:[#allocation2 + $0xa8] sm:$0xff]
      %v313 = vld [vmem:[#allocation2 + $0xb0] sm:$0xff]
      %v314 = vld [vmem:[#allocation2 + $0xb8] sm:$0xff]
      %v315 = vld [vmem:[#allocation2 + $0xc0] sm:$0xff]
      %v316 = vld [vmem:[#allocation2 + $0xc8] sm:$0xff]
      %v317 = vld [vmem:[#allocation2 + $0xd0] sm:$0xff]
      %v318 = vld [vmem:[#allocation2 + $0xd8] sm:$0xff]
      %v319 = vld [vmem:[#allocation2 + $0xe0] sm:$0xff]
      %v320 = vld [vmem:[#allocation2 + $0xe8] sm:$0xff]
      %v321 = vld [vmem:[#allocation2 + $0xf0] sm:$0xff]
      %v322 = vld [vmem:[#allocation2 + $0xf8] sm:$0xff]
      %v323 = vld [vmem:[%s239] sm:$0xff]
      %v324 = vld [vmem:[%s239 + $0x8] sm:$0xff]
      %v325 = vld [vmem:[%s239 + $0x10] sm:$0xff]
      %v326 = vld [vmem:[%s239 + $0x18] sm:$0xff]
      %v327 = vld [vmem:[%s239 + $0x20] sm:$0xff]
      %v328 = vld [vmem:[%s239 + $0x28] sm:$0xff]
      %v329 = vld [vmem:[%s239 + $0x30] sm:$0xff]
      %v330 = vld [vmem:[%s239 + $0x38] sm:$0xff]
      %v331 = vld [vmem:[%s239 + $0x40] sm:$0xff]
      %v332 = vld [vmem:[%s239 + $0x48] sm:$0xff]
      %v333 = vld [vmem:[%s239 + $0x50] sm:$0xff]
      %v334 = vld [vmem:[%s239 + $0x58] sm:$0xff]
      %v335 = vld [vmem:[%s239 + $0x60] sm:$0xff]
      %v336 = vld [vmem:[%s239 + $0x68] sm:$0xff]
      %v337 = vld [vmem:[%s239 + $0x70] sm:$0xff]
      %v338 = vld [vmem:[%s239 + $0x78] sm:$0xff]
      %v339 = vld [vmem:[%s239 + $0x80] sm:$0xff]
      %v340 = vld [vmem:[%s239 + $0x88] sm:$0xff]
      %v341 = vld [vmem:[%s239 + $0x90] sm:$0xff]
      %v342 = vld [vmem:[%s239 + $0x98] sm:$0xff]
      %v343 = vld [vmem:[%s239 + $0xa0] sm:$0xff]
      %v344 = vld [vmem:[%s239 + $0xa8] sm:$0xff]
      %v345 = vld [vmem:[%s239 + $0xb0] sm:$0xff]
      %v346 = vld [vmem:[%s239 + $0xb8] sm:$0xff]
      %v347 = vld [vmem:[%s239 + $0xc0] sm:$0xff]
      %v348 = vld [vmem:[%s239 + $0xc8] sm:$0xff]
      %v349 = vld [vmem:[%s239 + $0xd0] sm:$0xff]
      %v350 = vld [vmem:[%s239 + $0xd8] sm:$0xff]
      %v351 = vld [vmem:[%s239 + $0xe0] sm:$0xff]
      %v352 = vld [vmem:[%s239 + $0xe8] sm:$0xff]
      %v353 = vld [vmem:[%s239 + $0xf0] sm:$0xff]
      %v354 = vld [vmem:[%s239 + $0xf8] sm:$0xff]
      %v355 = vld [vmem:[%s239 + $0x100] sm:$0xff]
      %v356 = vld [vmem:[%s239 + $0x108] sm:$0xff]
      %v357 = vld [vmem:[%s239 + $0x110] sm:$0xff]
      %v358 = vld [vmem:[%s239 + $0x118] sm:$0xff]
      %v359 = vld [vmem:[%s239 + $0x120] sm:$0xff]
      %v360 = vld [vmem:[%s239 + $0x128] sm:$0xff]
      %v361 = vld [vmem:[%s239 + $0x130] sm:$0xff]
      %v362 = vld [vmem:[%s239 + $0x138] sm:$0xff]
      %v363 = vld [vmem:[%s239 + $0x140] sm:$0xff]
      %v364 = vld [vmem:[%s239 + $0x148] sm:$0xff]
      %v365 = vld [vmem:[%s239 + $0x150] sm:$0xff]
      %v366 = vld [vmem:[%s239 + $0x158] sm:$0xff]
      %v367 = vld [vmem:[%s239 + $0x160] sm:$0xff]
      %v368 = vld [vmem:[%s239 + $0x168] sm:$0xff]
      %v369 = vld [vmem:[%s239 + $0x170] sm:$0xff]
      %v370 = vld [vmem:[%s239 + $0x178] sm:$0xff]
      %v371 = vld [vmem:[%s239 + $0x180] sm:$0xff]
      %v372 = vld [vmem:[%s239 + $0x188] sm:$0xff]
      %v373 = vld [vmem:[%s239 + $0x190] sm:$0xff]
      %v374 = vld [vmem:[%s239 + $0x198] sm:$0xff]
      %v375 = vld [vmem:[%s239 + $0x1a0] sm:$0xff]
      %v376 = vld [vmem:[%s239 + $0x1a8] sm:$0xff]
      %v377 = vld [vmem:[%s239 + $0x1b0] sm:$0xff]
      %v378 = vld [vmem:[%s239 + $0x1b8] sm:$0xff]
      %v379 = vld [vmem:[%s239 + $0x1c0] sm:$0xff]
      %v380 = vld [vmem:[%s239 + $0x1c8] sm:$0xff]
      %v381 = vld [vmem:[%s239 + $0x1d0] sm:$0xff]
      %v382 = vld [vmem:[%s239 + $0x1d8] sm:$0xff]
      %v383 = vld [vmem:[%s239 + $0x1e0] sm:$0xff]
      %v384 = vld [vmem:[%s239 + $0x1e8] sm:$0xff]
      %v385 = vld [vmem:[%s239 + $0x1f0] sm:$0xff]
      %v386 = vld [vmem:[%s239 + $0x1f8] sm:$0xff]
      %v387 = vld [vmem:[%s246] sm:$0xf]
      %v388 = vld [vmem:[%s246 + $0x4] sm:$0xf]
      %v389 = vld [vmem:[%s246 + $0x8] sm:$0xf]
      %v390 = vld [vmem:[%s246 + $0xc] sm:$0xf]
      %v391 = vld [vmem:[%s246 + $0x10] sm:$0xf]
      %v392 = vld [vmem:[%s246 + $0x14] sm:$0xf]
      %v393 = vld [vmem:[%s246 + $0x18] sm:$0xf]
      %v394 = vld [vmem:[%s246 + $0x1c] sm:$0xf]
      %v395 = vld [vmem:[%s246 + $0x20] sm:$0xf]
      %v396 = vld [vmem:[%s246 + $0x24] sm:$0xf]
      %v397 = vld [vmem:[%s246 + $0x28] sm:$0xf]
      %v398 = vld [vmem:[%s246 + $0x2c] sm:$0xf]
      %v399 = vld [vmem:[%s246 + $0x30] sm:$0xf]
      %v400 = vld [vmem:[%s246 + $0x34] sm:$0xf]
      %v401 = vld [vmem:[%s246 + $0x38] sm:$0xf]
      %v402 = vld [vmem:[%s246 + $0x3c] sm:$0xf]
      %v403 = vld [vmem:[%s246 + $0x40] sm:$0xf]
      %v404 = vld [vmem:[%s246 + $0x44] sm:$0xf]
      %v405 = vld [vmem:[%s246 + $0x48] sm:$0xf]
      %v406 = vld [vmem:[%s246 + $0x4c] sm:$0xf]
      %v407 = vld [vmem:[%s246 + $0x50] sm:$0xf]
      %v408 = vld [vmem:[%s246 + $0x54] sm:$0xf]
      %v409 = vld [vmem:[%s246 + $0x58] sm:$0xf]
      %v410 = vld [vmem:[%s246 + $0x5c] sm:$0xf]
      %v411 = vld [vmem:[%s246 + $0x60] sm:$0xf]
      %v412 = vld [vmem:[%s246 + $0x64] sm:$0xf]
      %v413 = vld [vmem:[%s246 + $0x68] sm:$0xf]
      %v414 = vld [vmem:[%s246 + $0x6c] sm:$0xf]
      %v415 = vld [vmem:[%s246 + $0x70] sm:$0xf]
      %v416 = vld [vmem:[%s246 + $0x74] sm:$0xf]
      %v417 = vld [vmem:[%s246 + $0x78] sm:$0xf]
      %v418 = vld [vmem:[%s246 + $0x7c] sm:$0xf]
      %v419 = vld [vmem:[%s246 + $0x80] sm:$0xf]
      %v420 = vld [vmem:[%s246 + $0x84] sm:$0xf]
      %v421 = vld [vmem:[%s246 + $0x88] sm:$0xf]
      %v422 = vld [vmem:[%s246 + $0x8c] sm:$0xf]
      %v423 = vld [vmem:[%s246 + $0x90] sm:$0xf]
      %v424 = vld [vmem:[%s246 + $0x94] sm:$0xf]
      %v425 = vld [vmem:[%s246 + $0x98] sm:$0xf]
      %v426 = vld [vmem:[%s246 + $0x9c] sm:$0xf]
      %v427 = vld [vmem:[%s246 + $0xa0] sm:$0xf]
      %v428 = vld [vmem:[%s246 + $0xa4] sm:$0xf]
      %v429 = vld [vmem:[%s246 + $0xa8] sm:$0xf]
      %v430 = vld [vmem:[%s246 + $0xac] sm:$0xf]
      %v431 = vld [vmem:[%s246 + $0xb0] sm:$0xf]
      %v432 = vld [vmem:[%s246 + $0xb4] sm:$0xf]
      %v433 = vld [vmem:[%s246 + $0xb8] sm:$0xf]
      %v434 = vld [vmem:[%s246 + $0xbc] sm:$0xf]
      %v435 = vld [vmem:[%s246 + $0xc0] sm:$0xf]
      %v436 = vld [vmem:[%s246 + $0xc4] sm:$0xf]
      %v437 = vld [vmem:[%s246 + $0xc8] sm:$0xf]
      %v438 = vld [vmem:[%s246 + $0xcc] sm:$0xf]
      %v439 = vld [vmem:[%s246 + $0xd0] sm:$0xf]
      %v440 = vld [vmem:[%s246 + $0xd4] sm:$0xf]
      %v441 = vld [vmem:[%s246 + $0xd8] sm:$0xf]
      %v442 = vld [vmem:[%s246 + $0xdc] sm:$0xf]
      %v443 = vld [vmem:[%s246 + $0xe0] sm:$0xf]
      %v444 = vld [vmem:[%s246 + $0xe4] sm:$0xf]
      %v445 = vld [vmem:[%s246 + $0xe8] sm:$0xf]
      %v446 = vld [vmem:[%s246 + $0xec] sm:$0xf]
      %v447 = vld [vmem:[%s246 + $0xf0] sm:$0xf]
      %v448 = vld [vmem:[%s246 + $0xf4] sm:$0xf]
      %v449 = vld [vmem:[%s246 + $0xf8] sm:$0xf]
      %v450 = vld [vmem:[%s246 + $0xfc] sm:$0xf]
      %v515 = vunpack.c.l.b16 %v323
      %v516 = vunpack.c.h.b16 %v323
      %v517 = vunpack.c.l.b16 %v324
      %v518 = vunpack.c.h.b16 %v324
      %v519 = vunpack.c.l.b16 %v325
      %v520 = vunpack.c.h.b16 %v325
      %v521 = vunpack.c.l.b16 %v326
      %v522 = vunpack.c.h.b16 %v326
      %v523 = vunpack.c.l.b16 %v327
      %v524 = vunpack.c.h.b16 %v327
      %v525 = vunpack.c.l.b16 %v328
      %v526 = vunpack.c.h.b16 %v328
      %v527 = vunpack.c.l.b16 %v329
      %v528 = vunpack.c.h.b16 %v329
      %v529 = vunpack.c.l.b16 %v330
      %v530 = vunpack.c.h.b16 %v330
      %v531 = vunpack.c.l.b16 %v331
      %v532 = vunpack.c.h.b16 %v331
      %v533 = vunpack.c.l.b16 %v332
      %v534 = vunpack.c.h.b16 %v332
      %v535 = vunpack.c.l.b16 %v333
      %v536 = vunpack.c.h.b16 %v333
      %v537 = vunpack.c.l.b16 %v334
      %v538 = vunpack.c.h.b16 %v334
      %v539 = vunpack.c.l.b16 %v335
      %v540 = vunpack.c.h.b16 %v335
      %v541 = vunpack.c.l.b16 %v336
      %v542 = vunpack.c.h.b16 %v336
      %v543 = vunpack.c.l.b16 %v337
      %v544 = vunpack.c.h.b16 %v337
      %v545 = vunpack.c.l.b16 %v338
      %v546 = vunpack.c.h.b16 %v338
      %v547 = vunpack.c.l.b16 %v339
      %v548 = vunpack.c.h.b16 %v339
      %v549 = vunpack.c.l.b16 %v340
      %v550 = vunpack.c.h.b16 %v340
      %v551 = vunpack.c.l.b16 %v341
      %v552 = vunpack.c.h.b16 %v341
      %v553 = vunpack.c.l.b16 %v342
      %v554 = vunpack.c.h.b16 %v342
      %v555 = vunpack.c.l.b16 %v343
      %v556 = vunpack.c.h.b16 %v343
      %v557 = vunpack.c.l.b16 %v344
      %v558 = vunpack.c.h.b16 %v344
      %v559 = vunpack.c.l.b16 %v345
      %v560 = vunpack.c.h.b16 %v345
      %v561 = vunpack.c.l.b16 %v346
      %v562 = vunpack.c.h.b16 %v346
      %v563 = vunpack.c.l.b16 %v347
      %v564 = vunpack.c.h.b16 %v347
      %v565 = vunpack.c.l.b16 %v348
      %v566 = vunpack.c.h.b16 %v348
      %v567 = vunpack.c.l.b16 %v349
      %v568 = vunpack.c.h.b16 %v349
      %v569 = vunpack.c.l.b16 %v350
      %v570 = vunpack.c.h.b16 %v350
      %v571 = vunpack.c.l.b16 %v351
      %v572 = vunpack.c.h.b16 %v351
      %v573 = vunpack.c.l.b16 %v352
      %v574 = vunpack.c.h.b16 %v352
      %v575 = vunpack.c.l.b16 %v353
      %v576 = vunpack.c.h.b16 %v353
      %v577 = vunpack.c.l.b16 %v354
      %v578 = vunpack.c.h.b16 %v354
      %v579 = vunpack.c.l.b16 %v355
      %v580 = vunpack.c.h.b16 %v355
      %v581 = vunpack.c.l.b16 %v356
      %v582 = vunpack.c.h.b16 %v356
      %v583 = vunpack.c.l.b16 %v357
      %v584 = vunpack.c.h.b16 %v357
      %v585 = vunpack.c.l.b16 %v358
      %v586 = vunpack.c.h.b16 %v358
      %v587 = vunpack.c.l.b16 %v359
      %v588 = vunpack.c.h.b16 %v359
      %v589 = vunpack.c.l.b16 %v360
      %v590 = vunpack.c.h.b16 %v360
      %v591 = vunpack.c.l.b16 %v361
      %v592 = vunpack.c.h.b16 %v361
      %v593 = vunpack.c.l.b16 %v362
      %v594 = vunpack.c.h.b16 %v362
      %v595 = vunpack.c.l.b16 %v363
      %v596 = vunpack.c.h.b16 %v363
      %v597 = vunpack.c.l.b16 %v364
      %v598 = vunpack.c.h.b16 %v364
      %v599 = vunpack.c.l.b16 %v365
      %v600 = vunpack.c.h.b16 %v365
      %v601 = vunpack.c.l.b16 %v366
      %v602 = vunpack.c.h.b16 %v366
      %v603 = vunpack.c.l.b16 %v367
      %v604 = vunpack.c.h.b16 %v367
      %v605 = vunpack.c.l.b16 %v368
      %v606 = vunpack.c.h.b16 %v368
      %v607 = vunpack.c.l.b16 %v369
      %v608 = vunpack.c.h.b16 %v369
      %v609 = vunpack.c.l.b16 %v370
      %v610 = vunpack.c.h.b16 %v370
      %v611 = vunpack.c.l.b16 %v371
      %v612 = vunpack.c.h.b16 %v371
      %v613 = vunpack.c.l.b16 %v372
      %v614 = vunpack.c.h.b16 %v372
      %v615 = vunpack.c.l.b16 %v373
      %v616 = vunpack.c.h.b16 %v373
      %v617 = vunpack.c.l.b16 %v374
      %v618 = vunpack.c.h.b16 %v374
      %v619 = vunpack.c.l.b16 %v375
      %v620 = vunpack.c.h.b16 %v375
      %v621 = vunpack.c.l.b16 %v376
      %v622 = vunpack.c.h.b16 %v376
      %v623 = vunpack.c.l.b16 %v377
      %v624 = vunpack.c.h.b16 %v377
      %v625 = vunpack.c.l.b16 %v378
      %v626 = vunpack.c.h.b16 %v378
      %v627 = vunpack.c.l.b16 %v379
      %v628 = vunpack.c.h.b16 %v379
      %v629 = vunpack.c.l.b16 %v380
      %v630 = vunpack.c.h.b16 %v380
      %v631 = vunpack.c.l.b16 %v381
      %v632 = vunpack.c.h.b16 %v381
      %v633 = vunpack.c.l.b16 %v382
      %v634 = vunpack.c.h.b16 %v382
      %v635 = vunpack.c.l.b16 %v383
      %v636 = vunpack.c.h.b16 %v383
      %v637 = vunpack.c.l.b16 %v384
      %v638 = vunpack.c.h.b16 %v384
      %v639 = vunpack.c.l.b16 %v385
      %v640 = vunpack.c.h.b16 %v385
      %v641 = vunpack.c.l.b16 %v386
      %v642 = vunpack.c.h.b16 %v386
      %v643 = vpack.c.b16 %v519, %v515
      %v644 = vpack.c.b16 %v520, %v516
      %v645 = vpack.c.b16 %v521, %v517
      %v646 = vpack.c.b16 %v522, %v518
      %v647 = vpack.c.b16 %v527, %v523
      %v648 = vpack.c.b16 %v528, %v524
      %v649 = vpack.c.b16 %v529, %v525
      %v650 = vpack.c.b16 %v530, %v526
      %v651 = vpack.c.b16 %v535, %v531
      %v652 = vpack.c.b16 %v536, %v532
      %v653 = vpack.c.b16 %v537, %v533
      %v654 = vpack.c.b16 %v538, %v534
      %v655 = vpack.c.b16 %v543, %v539
      %v656 = vpack.c.b16 %v544, %v540
      %v657 = vpack.c.b16 %v545, %v541
      %v658 = vpack.c.b16 %v546, %v542
      %v659 = vpack.c.b16 %v551, %v547
      %v660 = vpack.c.b16 %v552, %v548
      %v661 = vpack.c.b16 %v553, %v549
      %v662 = vpack.c.b16 %v554, %v550
      %v663 = vpack.c.b16 %v559, %v555
      %v664 = vpack.c.b16 %v560, %v556
      %v665 = vpack.c.b16 %v561, %v557
      %v666 = vpack.c.b16 %v562, %v558
      %v667 = vpack.c.b16 %v567, %v563
      %v668 = vpack.c.b16 %v568, %v564
      %v669 = vpack.c.b16 %v569, %v565
      %v670 = vpack.c.b16 %v570, %v566
      %v671 = vpack.c.b16 %v575, %v571
      %v672 = vpack.c.b16 %v576, %v572
      %v673 = vpack.c.b16 %v577, %v573
      %v674 = vpack.c.b16 %v578, %v574
      %v675 = vpack.c.b16 %v583, %v579
      %v676 = vpack.c.b16 %v584, %v580
      %v677 = vpack.c.b16 %v585, %v581
      %v678 = vpack.c.b16 %v586, %v582
      %v679 = vpack.c.b16 %v591, %v587
      %v680 = vpack.c.b16 %v592, %v588
      %v681 = vpack.c.b16 %v593, %v589
      %v682 = vpack.c.b16 %v594, %v590
      %v683 = vpack.c.b16 %v599, %v595
      %v684 = vpack.c.b16 %v600, %v596
      %v685 = vpack.c.b16 %v601, %v597
      %v686 = vpack.c.b16 %v602, %v598
      %v687 = vpack.c.b16 %v607, %v603
      %v688 = vpack.c.b16 %v608, %v604
      %v689 = vpack.c.b16 %v609, %v605
      %v690 = vpack.c.b16 %v610, %v606
      %v691 = vpack.c.b16 %v615, %v611
      %v692 = vpack.c.b16 %v616, %v612
      %v693 = vpack.c.b16 %v617, %v613
      %v694 = vpack.c.b16 %v618, %v614
      %v695 = vpack.c.b16 %v623, %v619
      %v696 = vpack.c.b16 %v624, %v620
      %v697 = vpack.c.b16 %v625, %v621
      %v698 = vpack.c.b16 %v626, %v622
      %v699 = vpack.c.b16 %v631, %v627
      %v700 = vpack.c.b16 %v632, %v628
      %v701 = vpack.c.b16 %v633, %v629
      %v702 = vpack.c.b16 %v634, %v630
      %v703 = vpack.c.b16 %v639, %v635
      %v704 = vpack.c.b16 %v640, %v636
      %v705 = vpack.c.b16 %v641, %v637
      %v706 = vpack.c.b16 %v642, %v638
      %v835 = vunpack.c.l.b16 %v387
      %v836 = vunpack.c.l.b16 %v388
      %v837 = vunpack.c.l.b16 %v389
      %v838 = vunpack.c.l.b16 %v390
      %v839 = vunpack.c.l.b16 %v391
      %v840 = vunpack.c.l.b16 %v392
      %v841 = vunpack.c.l.b16 %v393
      %v842 = vunpack.c.l.b16 %v394
      %v843 = vunpack.c.l.b16 %v395
      %v844 = vunpack.c.l.b16 %v396
      %v845 = vunpack.c.l.b16 %v397
      %v846 = vunpack.c.l.b16 %v398
      %v847 = vunpack.c.l.b16 %v399
      %v848 = vunpack.c.l.b16 %v400
      %v849 = vunpack.c.l.b16 %v401
      %v850 = vunpack.c.l.b16 %v402
      %v851 = vunpack.c.l.b16 %v403
      %v852 = vunpack.c.l.b16 %v404
      %v853 = vunpack.c.l.b16 %v405
      %v854 = vunpack.c.l.b16 %v406
      %v855 = vunpack.c.l.b16 %v407
      %v856 = vunpack.c.l.b16 %v408
      %v857 = vunpack.c.l.b16 %v409
      %v858 = vunpack.c.l.b16 %v410
      %v859 = vunpack.c.l.b16 %v411
      %v860 = vunpack.c.l.b16 %v412
      %v861 = vunpack.c.l.b16 %v413
      %v862 = vunpack.c.l.b16 %v414
      %v863 = vunpack.c.l.b16 %v415
      %v864 = vunpack.c.l.b16 %v416
      %v865 = vunpack.c.l.b16 %v417
      %v866 = vunpack.c.l.b16 %v418
      %v867 = vunpack.c.l.b16 %v419
      %v868 = vunpack.c.l.b16 %v420
      %v869 = vunpack.c.l.b16 %v421
      %v870 = vunpack.c.l.b16 %v422
      %v871 = vunpack.c.l.b16 %v423
      %v872 = vunpack.c.l.b16 %v424
      %v873 = vunpack.c.l.b16 %v425
      %v874 = vunpack.c.l.b16 %v426
      %v875 = vunpack.c.l.b16 %v427
      %v876 = vunpack.c.l.b16 %v428
      %v877 = vunpack.c.l.b16 %v429
      %v878 = vunpack.c.l.b16 %v430
      %v879 = vunpack.c.l.b16 %v431
      %v880 = vunpack.c.l.b16 %v432
      %v881 = vunpack.c.l.b16 %v433
      %v882 = vunpack.c.l.b16 %v434
      %v883 = vunpack.c.l.b16 %v435
      %v884 = vunpack.c.l.b16 %v436
      %v885 = vunpack.c.l.b16 %v437
      %v886 = vunpack.c.l.b16 %v438
      %v887 = vunpack.c.l.b16 %v439
      %v888 = vunpack.c.l.b16 %v440
      %v889 = vunpack.c.l.b16 %v441
      %v890 = vunpack.c.l.b16 %v442
      %v891 = vunpack.c.l.b16 %v443
      %v892 = vunpack.c.l.b16 %v444
      %v893 = vunpack.c.l.b16 %v445
      %v894 = vunpack.c.l.b16 %v446
      %v895 = vunpack.c.l.b16 %v447
      %v896 = vunpack.c.l.b16 %v448
      %v897 = vunpack.c.l.b16 %v449
      %v898 = vunpack.c.l.b16 %v450
      %v899 = vpack.c.b16 %v836, %v835
      %v900 = vpack.c.b16 %v838, %v837
      %v901 = vpack.c.b16 %v840, %v839
      %v902 = vpack.c.b16 %v842, %v841
      %v903 = vpack.c.b16 %v844, %v843
      %v904 = vpack.c.b16 %v846, %v845
      %v905 = vpack.c.b16 %v848, %v847
      %v906 = vpack.c.b16 %v850, %v849
      %v907 = vpack.c.b16 %v852, %v851
      %v908 = vpack.c.b16 %v854, %v853
      %v909 = vpack.c.b16 %v856, %v855
      %v910 = vpack.c.b16 %v858, %v857
      %v911 = vpack.c.b16 %v860, %v859
      %v912 = vpack.c.b16 %v862, %v861
      %v913 = vpack.c.b16 %v864, %v863
      %v914 = vpack.c.b16 %v866, %v865
      %v915 = vpack.c.b16 %v868, %v867
      %v916 = vpack.c.b16 %v870, %v869
      %v917 = vpack.c.b16 %v872, %v871
      %v918 = vpack.c.b16 %v874, %v873
      %v919 = vpack.c.b16 %v876, %v875
      %v920 = vpack.c.b16 %v878, %v877
      %v921 = vpack.c.b16 %v880, %v879
      %v922 = vpack.c.b16 %v882, %v881
      %v923 = vpack.c.b16 %v884, %v883
      %v924 = vpack.c.b16 %v886, %v885
      %v925 = vpack.c.b16 %v888, %v887
      %v926 = vpack.c.b16 %v890, %v889
      %v927 = vpack.c.b16 %v892, %v891
      %v928 = vpack.c.b16 %v894, %v893
      %v929 = vpack.c.b16 %v896, %v895
      %v930 = vpack.c.b16 %v898, %v897
      %963 = vmatprep.subr.bf16.mxu0 0
      %964 = vmatpush1.bf16.msra.mxu0 %v899
      %965 = vmatprep.subr.bf16.mxu0 0
      %966 = vmatpush1.bf16.msra.mxu0 %v900
      %967 = vmatprep.subr.bf16.mxu0 0
      %968 = vmatpush1.bf16.msra.mxu0 %v901
      %969 = vmatprep.subr.bf16.mxu0 0
      %970 = vmatpush1.bf16.msra.mxu0 %v902
      %971 = vmatprep.subr.bf16.mxu0 0
      %972 = vmatpush1.bf16.msra.mxu0 %v903
      %973 = vmatprep.subr.bf16.mxu0 0
      %974 = vmatpush1.bf16.msra.mxu0 %v904
      %975 = vmatprep.subr.bf16.mxu0 0
      %976 = vmatpush1.bf16.msra.mxu0 %v905
      %977 = vmatprep.subr.bf16.mxu0 0
      %978 = vmatpush1.bf16.msra.mxu0 %v906
      %979 = vmatprep.subr.bf16.mxu0 0
      %980 = vmatpush1.bf16.msra.mxu0 %v907
      %981 = vmatprep.subr.bf16.mxu0 0
      %982 = vmatpush1.bf16.msra.mxu0 %v908
      %983 = vmatprep.subr.bf16.mxu0 0
      %984 = vmatpush1.bf16.msra.mxu0 %v909
      %985 = vmatprep.subr.bf16.mxu0 0
      %986 = vmatpush1.bf16.msra.mxu0 %v910
      %987 = vmatprep.subr.bf16.mxu0 0
      %988 = vmatpush1.bf16.msra.mxu0 %v911
      %989 = vmatprep.subr.bf16.mxu0 0
      %990 = vmatpush1.bf16.msra.mxu0 %v912
      %991 = vmatprep.subr.bf16.mxu0 0
      %992 = vmatpush1.bf16.msra.mxu0 %v913
      %993 = vmatprep.subr.bf16.mxu0 0
      %994 = vmatpush1.bf16.msra.mxu0 %v914
      %995 = vmatprep.mubr.bf16.mxu0 %v644
      %996 = vmatmul.mubr.bf16.gmra.mrb[0].mxu0 %v643
      %v997 = vpop.f32.mrb[0].mxu0
      %v998 = vadd.f32 0.0, %v997
      %v999 = vpop.f32.mrb[0].mxu0
      %v1000 = vpop.f32.mrb[0].mxu0
      %v1001 = vadd.f32 0.0, %v1000
      %v1002 = vpop.f32.mrb[0].mxu0
      %1003 = vmatprep.mubr.bf16.mxu0 %v648
      %1004 = vmatmul.mubr.bf16.gmra.mrb[0].mxu0 %v647
      %v1005 = vpop.f32.mrb[0].mxu0
      %v1006 = vadd.f32 0.0, %v1005
      %v1007 = vpop.f32.mrb[0].mxu0
      %v1008 = vpop.f32.mrb[0].mxu0
      %v1009 = vadd.f32 0.0, %v1008
      %v1010 = vpop.f32.mrb[0].mxu0
      %1011 = vmatprep.mubr.bf16.mxu0 %v652
      %1012 = vmatmul.mubr.bf16.gmra.mrb[0].mxu0 %v651
      %v1013 = vpop.f32.mrb[0].mxu0
      %v1014 = vadd.f32 0.0, %v1013
      %v1015 = vpop.f32.mrb[0].mxu0
      %v1016 = vpop.f32.mrb[0].mxu0
      %v1017 = vadd.f32 0.0, %v1016
      %v1018 = vpop.f32.mrb[0].mxu0
      %1019 = vmatprep.mubr.bf16.mxu0 %v656
      %1020 = vmatmul.mubr.bf16.gmra.mrb[0].mxu0 %v655
      %v1021 = vpop.f32.mrb[0].mxu0
      %v1022 = vadd.f32 0.0, %v1021
      %v1023 = vpop.f32.mrb[0].mxu0
      %v1024 = vpop.f32.mrb[0].mxu0
      %v1025 = vadd.f32 0.0, %v1024
      %v1026 = vpop.f32.mrb[0].mxu0
      %1027 = vmatprep.mubr.bf16.mxu0 %v660
      %1028 = vmatmul.mubr.bf16.gmra.mrb[0].mxu0 %v659
      %v1029 = vpop.f32.mrb[0].mxu0
      %v1030 = vadd.f32 0.0, %v1029
      %v1031 = vpop.f32.mrb[0].mxu0
      %v1032 = vpop.f32.mrb[0].mxu0
      %v1033 = vadd.f32 0.0, %v1032
      %v1034 = vpop.f32.mrb[0].mxu0
      %1035 = vmatprep.mubr.bf16.mxu0 %v664
      %1036 = vmatmul.mubr.bf16.gmra.mrb[0].mxu0 %v663
      %v1037 = vpop.f32.mrb[0].mxu0
      %v1038 = vadd.f32 0.0, %v1037
      %v1039 = vpop.f32.mrb[0].mxu0
      %v1040 = vpop.f32.mrb[0].mxu0
      %v1041 = vadd.f32 0.0, %v1040
      %v1042 = vpop.f32.mrb[0].mxu0
      %1043 = vmatprep.mubr.bf16.mxu0 %v668
      %1044 = vmatmul.mubr.bf16.gmra.mrb[0].mxu0 %v667
      %v1045 = vpop.f32.mrb[0].mxu0
      %v1046 = vadd.f32 0.0, %v1045
      %v1047 = vpop.f32.mrb[0].mxu0
      %v1048 = vpop.f32.mrb[0].mxu0
      %v1049 = vadd.f32 0.0, %v1048
      %v1050 = vpop.f32.mrb[0].mxu0
      %1051 = vmatprep.mubr.bf16.mxu0 %v672
      %1052 = vmatmul.mubr.bf16.gmra.mrb[0].mxu0 %v671
      %v1053 = vpop.f32.mrb[0].mxu0
      %v1054 = vadd.f32 0.0, %v1053
      %v1055 = vpop.f32.mrb[0].mxu0
      %v1056 = vpop.f32.mrb[0].mxu0
      %v1057 = vadd.f32 0.0, %v1056
      %v1058 = vpop.f32.mrb[0].mxu0
      %1059 = vmatprep.mubr.bf16.mxu0 %v676
      %1060 = vmatmul.mubr.bf16.gmra.mrb[0].mxu0 %v675
      %v1061 = vpop.f32.mrb[0].mxu0
      %v1062 = vadd.f32 0.0, %v1061
      %v1063 = vpop.f32.mrb[0].mxu0
      %v1064 = vpop.f32.mrb[0].mxu0
      %v1065 = vadd.f32 0.0, %v1064
      %v1066 = vpop.f32.mrb[0].mxu0
      %1067 = vmatprep.mubr.bf16.mxu0 %v680
      %1068 = vmatmul.mubr.bf16.gmra.mrb[0].mxu0 %v679
      %v1069 = vpop.f32.mrb[0].mxu0
      %v1070 = vadd.f32 0.0, %v1069
      %v1071 = vpop.f32.mrb[0].mxu0
      %v1072 = vpop.f32.mrb[0].mxu0
      %v1073 = vadd.f32 0.0, %v1072
      %v1074 = vpop.f32.mrb[0].mxu0
      %1075 = vmatprep.mubr.bf16.mxu0 %v684
      %1076 = vmatmul.mubr.bf16.gmra.mrb[0].mxu0 %v683
      %v1077 = vpop.f32.mrb[0].mxu0
      %v1078 = vadd.f32 0.0, %v1077
      %v1079 = vpop.f32.mrb[0].mxu0
      %v1080 = vpop.f32.mrb[0].mxu0
      %v1081 = vadd.f32 0.0, %v1080
      %v1082 = vpop.f32.mrb[0].mxu0
      %1083 = vmatprep.mubr.bf16.mxu0 %v688
      %1084 = vmatmul.mubr.bf16.gmra.mrb[0].mxu0 %v687
      %v1085 = vpop.f32.mrb[0].mxu0
      %v1086 = vadd.f32 0.0, %v1085
      %v1087 = vpop.f32.mrb[0].mxu0
      %v1088 = vpop.f32.mrb[0].mxu0
      %v1089 = vadd.f32 0.0, %v1088
      %v1090 = vpop.f32.mrb[0].mxu0
      %1091 = vmatprep.mubr.bf16.mxu0 %v692
      %1092 = vmatmul.mubr.bf16.gmra.mrb[0].mxu0 %v691
      %v1093 = vpop.f32.mrb[0].mxu0
      %v1094 = vadd.f32 0.0, %v1093
      %v1095 = vpop.f32.mrb[0].mxu0
      %v1096 = vpop.f32.mrb[0].mxu0
      %v1097 = vadd.f32 0.0, %v1096
      %v1098 = vpop.f32.mrb[0].mxu0
      %1099 = vmatprep.mubr.bf16.mxu0 %v696
      %1100 = vmatmul.mubr.bf16.gmra.mrb[0].mxu0 %v695
      %v1101 = vpop.f32.mrb[0].mxu0
      %v1102 = vadd.f32 0.0, %v1101
      %v1103 = vpop.f32.mrb[0].mxu0
      %v1104 = vpop.f32.mrb[0].mxu0
      %v1105 = vadd.f32 0.0, %v1104
      %v1106 = vpop.f32.mrb[0].mxu0
      %1107 = vmatprep.mubr.bf16.mxu0 %v700
      %1108 = vmatmul.mubr.bf16.gmra.mrb[0].mxu0 %v699
      %v1109 = vpop.f32.mrb[0].mxu0
      %v1110 = vadd.f32 0.0, %v1109
      %v1111 = vpop.f32.mrb[0].mxu0
      %v1112 = vpop.f32.mrb[0].mxu0
      %v1113 = vadd.f32 0.0, %v1112
      %v1114 = vpop.f32.mrb[0].mxu0
      %1115 = vmatprep.mubr.bf16.mxu0 %v704
      %1116 = vmatmul.mubr.bf16.gmra.mrb[0].mxu0 %v703
      %v1117 = vpop.f32.mrb[0].mxu0
      %v1118 = vadd.f32 0.0, %v1117
      %v1119 = vpop.f32.mrb[0].mxu0
      %v1120 = vpop.f32.mrb[0].mxu0
      %v1121 = vadd.f32 0.0, %v1120
      %v1122 = vpop.f32.mrb[0].mxu0
      %1123 = vdwg.mxu0
      %1124 = vmatprep.subr.bf16.mxu0 0
      %1125 = vmatpush1.bf16.msra.mxu0 %v915
      %1126 = vmatprep.subr.bf16.mxu0 0
      %1127 = vmatpush1.bf16.msra.mxu0 %v916
      %1128 = vmatprep.subr.bf16.mxu0 0
      %1129 = vmatpush1.bf16.msra.mxu0 %v917
      %1130 = vmatprep.subr.bf16.mxu0 0
      %1131 = vmatpush1.bf16.msra.mxu0 %v918
      %1132 = vmatprep.subr.bf16.mxu0 0
      %1133 = vmatpush1.bf16.msra.mxu0 %v919
      %1134 = vmatprep.subr.bf16.mxu0 0
      %1135 = vmatpush1.bf16.msra.mxu0 %v920
      %1136 = vmatprep.subr.bf16.mxu0 0
      %1137 = vmatpush1.bf16.msra.mxu0 %v921
      %1138 = vmatprep.subr.bf16.mxu0 0
      %1139 = vmatpush1.bf16.msra.mxu0 %v922
      %1140 = vmatprep.subr.bf16.mxu0 0
      %1141 = vmatpush1.bf16.msra.mxu0 %v923
      %1142 = vmatprep.subr.bf16.mxu0 0
      %1143 = vmatpush1.bf16.msra.mxu0 %v924
      %1144 = vmatprep.subr.bf16.mxu0 0
      %1145 = vmatpush1.bf16.msra.mxu0 %v925
      %1146 = vmatprep.subr.bf16.mxu0 0
      %1147 = vmatpush1.bf16.msra.mxu0 %v926
      %1148 = vmatprep.subr.bf16.mxu0 0
      %1149 = vmatpush1.bf16.msra.mxu0 %v927
      %1150 = vmatprep.subr.bf16.mxu0 0
      %1151 = vmatpush1.bf16.msra.mxu0 %v928
      %1152 = vmatprep.subr.bf16.mxu0 0
      %1153 = vmatpush1.bf16.msra.mxu0 %v929
      %1154 = vmatprep.subr.bf16.mxu0 0
      %1155 = vmatpush1.bf16.msra.mxu0 %v930
      %1156 = vmatprep.mubr.bf16.mxu0 %v646
      %1157 = vmatmul.mubr.bf16.gmra.mrb[0].mxu0 %v645
      %v1158 = vpop.f32.mrb[0].mxu0
      %v1159 = vadd.f32 %v998, %v1158
      %v1160 = vpop.f32.mrb[0].mxu0
      %v1161 = vpop.f32.mrb[0].mxu0
      %v1162 = vadd.f32 %v1001, %v1161
      %v1163 = vpop.f32.mrb[0].mxu0
      %1164 = vmatprep.mubr.bf16.mxu0 %v650
      %1165 = vmatmul.mubr.bf16.gmra.mrb[0].mxu0 %v649
      %v1166 = vpop.f32.mrb[0].mxu0
      %v1167 = vadd.f32 %v1006, %v1166
      %v1168 = vpop.f32.mrb[0].mxu0
      %v1169 = vpop.f32.mrb[0].mxu0
      %v1170 = vadd.f32 %v1009, %v1169
      %v1171 = vpop.f32.mrb[0].mxu0
      %1172 = vmatprep.mubr.bf16.mxu0 %v654
      %1173 = vmatmul.mubr.bf16.gmra.mrb[0].mxu0 %v653
      %v1174 = vpop.f32.mrb[0].mxu0
      %v1175 = vadd.f32 %v1014, %v1174
      %v1176 = vpop.f32.mrb[0].mxu0
      %v1177 = vpop.f32.mrb[0].mxu0
      %v1178 = vadd.f32 %v1017, %v1177
      %v1179 = vpop.f32.mrb[0].mxu0
      %1180 = vmatprep.mubr.bf16.mxu0 %v658
      %1181 = vmatmul.mubr.bf16.gmra.mrb[0].mxu0 %v657
      %v1182 = vpop.f32.mrb[0].mxu0
      %v1183 = vadd.f32 %v1022, %v1182
      %v1184 = vpop.f32.mrb[0].mxu0
      %v1185 = vpop.f32.mrb[0].mxu0
      %v1186 = vadd.f32 %v1025, %v1185
      %v1187 = vpop.f32.mrb[0].mxu0
      %1188 = vmatprep.mubr.bf16.mxu0 %v662
      %1189 = vmatmul.mubr.bf16.gmra.mrb[0].mxu0 %v661
      %v1190 = vpop.f32.mrb[0].mxu0
      %v1191 = vadd.f32 %v1030, %v1190
      %v1192 = vpop.f32.mrb[0].mxu0
      %v1193 = vpop.f32.mrb[0].mxu0
      %v1194 = vadd.f32 %v1033, %v1193
      %v1195 = vpop.f32.mrb[0].mxu0
      %1196 = vmatprep.mubr.bf16.mxu0 %v666
      %1197 = vmatmul.mubr.bf16.gmra.mrb[0].mxu0 %v665
      %v1198 = vpop.f32.mrb[0].mxu0
      %v1199 = vadd.f32 %v1038, %v1198
      %v1200 = vpop.f32.mrb[0].mxu0
      %v1201 = vpop.f32.mrb[0].mxu0
      %v1202 = vadd.f32 %v1041, %v1201
      %v1203 = vpop.f32.mrb[0].mxu0
      %1204 = vmatprep.mubr.bf16.mxu0 %v670
      %1205 = vmatmul.mubr.bf16.gmra.mrb[0].mxu0 %v669
      %v1206 = vpop.f32.mrb[0].mxu0
      %v1207 = vadd.f32 %v1046, %v1206
      %v1208 = vpop.f32.mrb[0].mxu0
      %v1209 = vpop.f32.mrb[0].mxu0
      %v1210 = vadd.f32 %v1049, %v1209
      %v1211 = vpop.f32.mrb[0].mxu0
      %1212 = vmatprep.mubr.bf16.mxu0 %v674
      %1213 = vmatmul.mubr.bf16.gmra.mrb[0].mxu0 %v673
      %v1214 = vpop.f32.mrb[0].mxu0
      %v1215 = vadd.f32 %v1054, %v1214
      %v1216 = vpop.f32.mrb[0].mxu0
      %v1217 = vpop.f32.mrb[0].mxu0
      %v1218 = vadd.f32 %v1057, %v1217
      %v1219 = vpop.f32.mrb[0].mxu0
      %1220 = vmatprep.mubr.bf16.mxu0 %v678
      %1221 = vmatmul.mubr.bf16.gmra.mrb[0].mxu0 %v677
      %v1222 = vpop.f32.mrb[0].mxu0
      %v1223 = vadd.f32 %v1062, %v1222
      %v1224 = vpop.f32.mrb[0].mxu0
      %v1225 = vpop.f32.mrb[0].mxu0
      %v1226 = vadd.f32 %v1065, %v1225
      %v1227 = vpop.f32.mrb[0].mxu0
      %1228 = vmatprep.mubr.bf16.mxu0 %v682
      %1229 = vmatmul.mubr.bf16.gmra.mrb[0].mxu0 %v681
      %v1230 = vpop.f32.mrb[0].mxu0
      %v1231 = vadd.f32 %v1070, %v1230
      %v1232 = vpop.f32.mrb[0].mxu0
      %v1233 = vpop.f32.mrb[0].mxu0
      %v1234 = vadd.f32 %v1073, %v1233
      %v1235 = vpop.f32.mrb[0].mxu0
      %1236 = vmatprep.mubr.bf16.mxu0 %v686
      %1237 = vmatmul.mubr.bf16.gmra.mrb[0].mxu0 %v685
      %v1238 = vpop.f32.mrb[0].mxu0
      %v1239 = vadd.f32 %v1078, %v1238
      %v1240 = vpop.f32.mrb[0].mxu0
      %v1241 = vpop.f32.mrb[0].mxu0
      %v1242 = vadd.f32 %v1081, %v1241
      %v1243 = vpop.f32.mrb[0].mxu0
      %1244 = vmatprep.mubr.bf16.mxu0 %v690
      %1245 = vmatmul.mubr.bf16.gmra.mrb[0].mxu0 %v689
      %v1246 = vpop.f32.mrb[0].mxu0
      %v1247 = vadd.f32 %v1086, %v1246
      %v1248 = vpop.f32.mrb[0].mxu0
      %v1249 = vpop.f32.mrb[0].mxu0
      %v1250 = vadd.f32 %v1089, %v1249
      %v1251 = vpop.f32.mrb[0].mxu0
      %1252 = vmatprep.mubr.bf16.mxu0 %v694
      %1253 = vmatmul.mubr.bf16.gmra.mrb[0].mxu0 %v693
      %v1254 = vpop.f32.mrb[0].mxu0
      %v1255 = vadd.f32 %v1094, %v1254
      %v1256 = vpop.f32.mrb[0].mxu0
      %v1257 = vpop.f32.mrb[0].mxu0
      %v1258 = vadd.f32 %v1097, %v1257
      %v1259 = vpop.f32.mrb[0].mxu0
      %1260 = vmatprep.mubr.bf16.mxu0 %v698
      %1261 = vmatmul.mubr.bf16.gmra.mrb[0].mxu0 %v697
      %v1262 = vpop.f32.mrb[0].mxu0
      %v1263 = vadd.f32 %v1102, %v1262
      %v1264 = vpop.f32.mrb[0].mxu0
      %v1265 = vpop.f32.mrb[0].mxu0
      %v1266 = vadd.f32 %v1105, %v1265
      %v1267 = vpop.f32.mrb[0].mxu0
      %1268 = vmatprep.mubr.bf16.mxu0 %v702
      %1269 = vmatmul.mubr.bf16.gmra.mrb[0].mxu0 %v701
      %v1270 = vpop.f32.mrb[0].mxu0
      %v1271 = vadd.f32 %v1110, %v1270
      %v1272 = vpop.f32.mrb[0].mxu0
      %v1273 = vpop.f32.mrb[0].mxu0
      %v1274 = vadd.f32 %v1113, %v1273
      %v1275 = vpop.f32.mrb[0].mxu0
      %1276 = vmatprep.mubr.bf16.mxu0 %v706
      %1277 = vmatmul.mubr.bf16.gmra.mrb[0].mxu0 %v705
      %v1278 = vpop.f32.mrb[0].mxu0
      %v1279 = vadd.f32 %v1118, %v1278
      %v1280 = vpop.f32.mrb[0].mxu0
      %v1281 = vpop.f32.mrb[0].mxu0
      %v1282 = vadd.f32 %v1121, %v1281
      %v1283 = vpop.f32.mrb[0].mxu0
      %1284 = vdwg.mxu0
      %v1285 = vadd.f32 %v291, %v1159
      %v1286 = vadd.f32 %v292, %v1162
      %v1287 = vadd.f32 %v293, %v1167
      %v1288 = vadd.f32 %v294, %v1170
      %v1289 = vadd.f32 %v295, %v1175
      %v1290 = vadd.f32 %v296, %v1178
      %v1291 = vadd.f32 %v297, %v1183
      %v1292 = vadd.f32 %v298, %v1186
      %v1293 = vadd.f32 %v299, %v1191
      %v1294 = vadd.f32 %v300, %v1194
      %v1295 = vadd.f32 %v301, %v1199
      %v1296 = vadd.f32 %v302, %v1202
      %v1297 = vadd.f32 %v303, %v1207
      %v1298 = vadd.f32 %v304, %v1210
      %v1299 = vadd.f32 %v305, %v1215
      %v1300 = vadd.f32 %v306, %v1218
      %v1301 = vadd.f32 %v307, %v1223
      %v1302 = vadd.f32 %v308, %v1226
      %v1303 = vadd.f32 %v309, %v1231
      %v1304 = vadd.f32 %v310, %v1234
      %v1305 = vadd.f32 %v311, %v1239
      %v1306 = vadd.f32 %v312, %v1242
      %v1307 = vadd.f32 %v313, %v1247
      %v1308 = vadd.f32 %v314, %v1250
      %v1309 = vadd.f32 %v315, %v1255
      %v1310 = vadd.f32 %v316, %v1258
      %v1311 = vadd.f32 %v317, %v1263
      %v1312 = vadd.f32 %v318, %v1266
      %v1313 = vadd.f32 %v319, %v1271
      %v1314 = vadd.f32 %v320, %v1274
      %v1315 = vadd.f32 %v321, %v1279
      %v1316 = vadd.f32 %v322, %v1282
      %1317 = vst [vmem:[#allocation2] sm:$0xff] %v1285
      %1318 = vst [vmem:[#allocation2 + $0x8] sm:$0xff] %v1286
      %1319 = vst [vmem:[#allocation2 + $0x10] sm:$0xff] %v1287
      %1320 = vst [vmem:[#allocation2 + $0x18] sm:$0xff] %v1288
      %1321 = vst [vmem:[#allocation2 + $0x20] sm:$0xff] %v1289
      %1322 = vst [vmem:[#allocation2 + $0x28] sm:$0xff] %v1290
      %1323 = vst [vmem:[#allocation2 + $0x30] sm:$0xff] %v1291
      %1324 = vst [vmem:[#allocation2 + $0x38] sm:$0xff] %v1292
      %1325 = vst [vmem:[#allocation2 + $0x40] sm:$0xff] %v1293
      %1326 = vst [vmem:[#allocation2 + $0x48] sm:$0xff] %v1294
      %1327 = vst [vmem:[#allocation2 + $0x50] sm:$0xff] %v1295
      %1328 = vst [vmem:[#allocation2 + $0x58] sm:$0xff] %v1296
      %1329 = vst [vmem:[#allocation2 + $0x60] sm:$0xff] %v1297
      %1330 = vst [vmem:[#allocation2 + $0x68] sm:$0xff] %v1298
      %1331 = vst [vmem:[#allocation2 + $0x70] sm:$0xff] %v1299
      %1332 = vst [vmem:[#allocation2 + $0x78] sm:$0xff] %v1300
      %1333 = vst [vmem:[#allocation2 + $0x80] sm:$0xff] %v1301
      %1334 = vst [vmem:[#allocation2 + $0x88] sm:$0xff] %v1302
      %1335 = vst [vmem:[#allocation2 + $0x90] sm:$0xff] %v1303
      %1336 = vst [vmem:[#allocation2 + $0x98] sm:$0xff] %v1304
      %1337 = vst [vmem:[#allocation2 + $0xa0] sm:$0xff] %v1305
      %1338 = vst [vmem:[#allocation2 + $0xa8] sm:$0xff] %v1306
      %1339 = vst [vmem:[#allocation2 + $0xb0] sm:$0xff] %v1307
      %1340 = vst [vmem:[#allocation2 + $0xb8] sm:$0xff] %v1308
      %1341 = vst [vmem:[#allocation2 + $0xc0] sm:$0xff] %v1309
      %1342 = vst [vmem:[#allocation2 + $0xc8] sm:$0xff] %v1310
      %1343 = vst [vmem:[#allocation2 + $0xd0] sm:$0xff] %v1311
      %1344 = vst [vmem:[#allocation2 + $0xd8] sm:$0xff] %v1312
      %1345 = vst [vmem:[#allocation2 + $0xe0] sm:$0xff] %v1313
      %1346 = vst [vmem:[#allocation2 + $0xe8] sm:$0xff] %v1314
      %1347 = vst [vmem:[#allocation2 + $0xf0] sm:$0xff] %v1315
      %1348 = vst [vmem:[#allocation2 + $0xf8] sm:$0xff] %v1316
      // Predicated region
      $region41: #{scgnn_forward.4} parent=35 // pred_check
        %p1349 = pneg %p255
      $region42: #{scgnn_forward.4} parent=35 // pred_check_branch
        %1351 = sbr.rel (%p1349) target = $region44
      $region43: #{scgnn_forward.4} parent=35 // pred_region
        %v1352 = vld [vmem:[#allocation2] sm:$0xff]
        %v1353 = vld [vmem:[#allocation2 + $0x8] sm:$0xff]
        %v1354 = vld [vmem:[#allocation2 + $0x10] sm:$0xff]
        %v1355 = vld [vmem:[#allocation2 + $0x18] sm:$0xff]
        %v1356 = vld [vmem:[#allocation2 + $0x20] sm:$0xff]
        %v1357 = vld [vmem:[#allocation2 + $0x28] sm:$0xff]
        %v1358 = vld [vmem:[#allocation2 + $0x30] sm:$0xff]
        %v1359 = vld [vmem:[#allocation2 + $0x38] sm:$0xff]
        %v1360 = vld [vmem:[#allocation2 + $0x40] sm:$0xff]
        %v1361 = vld [vmem:[#allocation2 + $0x48] sm:$0xff]
        %v1362 = vld [vmem:[#allocation2 + $0x50] sm:$0xff]
        %v1363 = vld [vmem:[#allocation2 + $0x58] sm:$0xff]
        %v1364 = vld [vmem:[#allocation2 + $0x60] sm:$0xff]
        %v1365 = vld [vmem:[#allocation2 + $0x68] sm:$0xff]
        %v1366 = vld [vmem:[#allocation2 + $0x70] sm:$0xff]
        %v1367 = vld [vmem:[#allocation2 + $0x78] sm:$0xff]
        %v1368 = vld [vmem:[#allocation2 + $0x80] sm:$0xff]
        %v1369 = vld [vmem:[#allocation2 + $0x88] sm:$0xff]
        %v1370 = vld [vmem:[#allocation2 + $0x90] sm:$0xff]
        %v1371 = vld [vmem:[#allocation2 + $0x98] sm:$0xff]
        %v1372 = vld [vmem:[#allocation2 + $0xa0] sm:$0xff]
        %v1373 = vld [vmem:[#allocation2 + $0xa8] sm:$0xff]
        %v1374 = vld [vmem:[#allocation2 + $0xb0] sm:$0xff]
        %v1375 = vld [vmem:[#allocation2 + $0xb8] sm:$0xff]
        %v1376 = vld [vmem:[#allocation2 + $0xc0] sm:$0xff]
        %v1377 = vld [vmem:[#allocation2 + $0xc8] sm:$0xff]
        %v1378 = vld [vmem:[#allocation2 + $0xd0] sm:$0xff]
        %v1379 = vld [vmem:[#allocation2 + $0xd8] sm:$0xff]
        %v1380 = vld [vmem:[#allocation2 + $0xe0] sm:$0xff]
        %v1381 = vld [vmem:[#allocation2 + $0xe8] sm:$0xff]
        %v1382 = vld [vmem:[#allocation2 + $0xf0] sm:$0xff]
        %v1383 = vld [vmem:[#allocation2 + $0xf8] sm:$0xff]
        %v1384 = vld [vmem:[%s2] sm:$0x1]
        %v1386 = vlaneseq
        %v1387 = vshrl.u32 %v1386, 7
        %v1388 = vsub.s32 0, %v1387
        %v1389 = vrot.slane %v1384, %v1388
        %v1391 = vadd.f32 %v1352, %v1389
        %v1392 = vadd.f32 %v1353, %v1389
        %v1393 = vadd.f32 %v1354, %v1389
        %v1394 = vadd.f32 %v1355, %v1389
        %v1395 = vadd.f32 %v1356, %v1389
        %v1396 = vadd.f32 %v1357, %v1389
        %v1397 = vadd.f32 %v1358, %v1389
        %v1398 = vadd.f32 %v1359, %v1389
        %v1399 = vadd.f32 %v1360, %v1389
        %v1400 = vadd.f32 %v1361, %v1389
        %v1401 = vadd.f32 %v1362, %v1389
        %v1402 = vadd.f32 %v1363, %v1389
        %v1403 = vadd.f32 %v1364, %v1389
        %v1404 = vadd.f32 %v1365, %v1389
        %v1405 = vadd.f32 %v1366, %v1389
        %v1406 = vadd.f32 %v1367, %v1389
        %v1407 = vadd.f32 %v1368, %v1389
        %v1408 = vadd.f32 %v1369, %v1389
        %v1409 = vadd.f32 %v1370, %v1389
        %v1410 = vadd.f32 %v1371, %v1389
        %v1411 = vadd.f32 %v1372, %v1389
        %v1412 = vadd.f32 %v1373, %v1389
        %v1413 = vadd.f32 %v1374, %v1389
        %v1414 = vadd.f32 %v1375, %v1389
        %v1415 = vadd.f32 %v1376, %v1389
        %v1416 = vadd.f32 %v1377, %v1389
        %v1417 = vadd.f32 %v1378, %v1389
        %v1418 = vadd.f32 %v1379, %v1389
        %v1419 = vadd.f32 %v1380, %v1389
        %v1420 = vadd.f32 %v1381, %v1389
        %v1421 = vadd.f32 %v1382, %v1389
        %v1422 = vadd.f32 %v1383, %v1389
        %v1423 = vmax.f32 %v1391, 0.0
        %v1424 = vmax.f32 %v1392, 0.0
        %v1425 = vmax.f32 %v1393, 0.0
        %v1426 = vmax.f32 %v1394, 0.0
        %v1427 = vmax.f32 %v1395, 0.0
        %v1428 = vmax.f32 %v1396, 0.0
        %v1429 = vmax.f32 %v1397, 0.0
        %v1430 = vmax.f32 %v1398, 0.0
        %v1431 = vmax.f32 %v1399, 0.0
        %v1432 = vmax.f32 %v1400, 0.0
        %v1433 = vmax.f32 %v1401, 0.0
        %v1434 = vmax.f32 %v1402, 0.0
        %v1435 = vmax.f32 %v1403, 0.0
        %v1436 = vmax.f32 %v1404, 0.0
        %v1437 = vmax.f32 %v1405, 0.0
        %v1438 = vmax.f32 %v1406, 0.0
        %v1439 = vmax.f32 %v1407, 0.0
        %v1440 = vmax.f32 %v1408, 0.0
        %v1441 = vmax.f32 %v1409, 0.0
        %v1442 = vmax.f32 %v1410, 0.0
        %v1443 = vmax.f32 %v1411, 0.0
        %v1444 = vmax.f32 %v1412, 0.0
        %v1445 = vmax.f32 %v1413, 0.0
        %v1446 = vmax.f32 %v1414, 0.0
        %v1447 = vmax.f32 %v1415, 0.0
        %v1448 = vmax.f32 %v1416, 0.0
        %v1449 = vmax.f32 %v1417, 0.0
        %v1450 = vmax.f32 %v1418, 0.0
        %v1451 = vmax.f32 %v1419, 0.0
        %v1452 = vmax.f32 %v1420, 0.0
        %v1453 = vmax.f32 %v1421, 0.0
        %v1454 = vmax.f32 %v1422, 0.0
        %v1455 = vpack.c.bf16 %v1424, %v1423
        %v1456 = vpack.c.bf16 %v1426, %v1425
        %v1457 = vpack.c.bf16 %v1428, %v1427
        %v1458 = vpack.c.bf16 %v1430, %v1429
        %v1459 = vpack.c.bf16 %v1432, %v1431
        %v1460 = vpack.c.bf16 %v1434, %v1433
        %v1461 = vpack.c.bf16 %v1436, %v1435
        %v1462 = vpack.c.bf16 %v1438, %v1437
        %v1463 = vpack.c.bf16 %v1440, %v1439
        %v1464 = vpack.c.bf16 %v1442, %v1441
        %v1465 = vpack.c.bf16 %v1444, %v1443
        %v1466 = vpack.c.bf16 %v1446, %v1445
        %v1467 = vpack.c.bf16 %v1448, %v1447
        %v1468 = vpack.c.bf16 %v1450, %v1449
        %v1469 = vpack.c.bf16 %v1452, %v1451
        %v1470 = vpack.c.bf16 %v1454, %v1453
        %v1471 = vld [vmem:[%s3] sm:$0xf]
        %v1472 = vld [vmem:[%s3 + $0x4] sm:$0xf]
        %v1473 = vld [vmem:[%s3 + $0x8] sm:$0xf]
        %v1474 = vld [vmem:[%s3 + $0xc] sm:$0xf]
        %v1475 = vld [vmem:[%s3 + $0x10] sm:$0xf]
        %v1476 = vld [vmem:[%s3 + $0x14] sm:$0xf]
        %v1477 = vld [vmem:[%s3 + $0x18] sm:$0xf]
        %v1478 = vld [vmem:[%s3 + $0x1c] sm:$0xf]
        %v1479 = vld [vmem:[%s3 + $0x20] sm:$0xf]
        %v1480 = vld [vmem:[%s3 + $0x24] sm:$0xf]
        %v1481 = vld [vmem:[%s3 + $0x28] sm:$0xf]
        %v1482 = vld [vmem:[%s3 + $0x2c] sm:$0xf]
        %v1483 = vld [vmem:[%s3 + $0x30] sm:$0xf]
        %v1484 = vld [vmem:[%s3 + $0x34] sm:$0xf]
        %v1485 = vld [vmem:[%s3 + $0x38] sm:$0xf]
        %v1486 = vld [vmem:[%s3 + $0x3c] sm:$0xf]
        %v1503 = vunpack.c.l.b16 %v1471
        %v1504 = vunpack.c.l.b16 %v1472
        %v1505 = vunpack.c.l.b16 %v1473
        %v1506 = vunpack.c.l.b16 %v1474
        %v1507 = vunpack.c.l.b16 %v1475
        %v1508 = vunpack.c.l.b16 %v1476
        %v1509 = vunpack.c.l.b16 %v1477
        %v1510 = vunpack.c.l.b16 %v1478
        %v1511 = vunpack.c.l.b16 %v1479
        %v1512 = vunpack.c.l.b16 %v1480
        %v1513 = vunpack.c.l.b16 %v1481
        %v1514 = vunpack.c.l.b16 %v1482
        %v1515 = vunpack.c.l.b16 %v1483
        %v1516 = vunpack.c.l.b16 %v1484
        %v1517 = vunpack.c.l.b16 %v1485
        %v1518 = vunpack.c.l.b16 %v1486
        %v1519 = vpack.c.b16 %v1504, %v1503
        %v1520 = vpack.c.b16 %v1506, %v1505
        %v1521 = vpack.c.b16 %v1508, %v1507
        %v1522 = vpack.c.b16 %v1510, %v1509
        %v1523 = vpack.c.b16 %v1512, %v1511
        %v1524 = vpack.c.b16 %v1514, %v1513
        %v1525 = vpack.c.b16 %v1516, %v1515
        %v1526 = vpack.c.b16 %v1518, %v1517
        %1535 = vmatprep.subr.bf16.mxu0 0
        %1536 = vmatpush1.bf16.msra.mxu0 %v1519
        %1537 = vmatprep.subr.bf16.mxu0 0
        %1538 = vmatpush1.bf16.msra.mxu0 %v1520
        %1539 = vmatprep.subr.bf16.mxu0 0
        %1540 = vmatpush1.bf16.msra.mxu0 %v1521
        %1541 = vmatprep.subr.bf16.mxu0 0
        %1542 = vmatpush1.bf16.msra.mxu0 %v1522
        %1543 = vmatprep.subr.bf16.mxu0 0
        %1544 = vmatpush1.bf16.msra.mxu0 %v1523
        %1545 = vmatprep.subr.bf16.mxu0 0
        %1546 = vmatpush1.bf16.msra.mxu0 %v1524
        %1547 = vmatprep.subr.bf16.mxu0 0
        %1548 = vmatpush1.bf16.msra.mxu0 %v1525
        %1549 = vmatprep.subr.bf16.mxu0 0
        %1550 = vmatpush1.bf16.msra.mxu0 %v1526
        %1551 = vmatprep.subr.bf16.mxu0 0
        %1552 = vmatpush1.bf16.msra.mxu0 0
        %1553 = vmatprep.subr.bf16.mxu0 0
        %1554 = vmatpush1.bf16.msra.mxu0 0
        %1555 = vmatprep.subr.bf16.mxu0 0
        %1556 = vmatpush1.bf16.msra.mxu0 0
        %1557 = vmatprep.subr.bf16.mxu0 0
        %1558 = vmatpush1.bf16.msra.mxu0 0
        %1559 = vmatprep.subr.bf16.mxu0 0
        %1560 = vmatpush1.bf16.msra.mxu0 0
        %1561 = vmatprep.subr.bf16.mxu0 0
        %1562 = vmatpush1.bf16.msra.mxu0 0
        %1563 = vmatprep.subr.bf16.mxu0 0
        %1564 = vmatpush1.bf16.msra.mxu0 0
        %1565 = vmatprep.subr.bf16.mxu0 0
        %1566 = vmatpush1.bf16.msra.mxu0 0
        %1567 = vmatprep.mubr.bf16.mxu0 0
        %1568 = vmatmul.mubr.bf16.gmra.mrb[0].mxu0 %v1455
        %v1569 = vpop.f32.mrb[0].mxu0
        %v1570 = vadd.f32 0.0, %v1569
        %v1571 = vpop.f32.mrb[0].mxu0
        %v1572 = vpop.f32.mrb[0].mxu0
        %v1573 = vadd.f32 0.0, %v1572
        %v1574 = vpop.f32.mrb[0].mxu0
        %1575 = vmatprep.mubr.bf16.mxu0 0
        %1576 = vmatmul.mubr.bf16.gmra.mrb[0].mxu0 %v1456
        %v1577 = vpop.f32.mrb[0].mxu0
        %v1578 = vadd.f32 0.0, %v1577
        %v1579 = vpop.f32.mrb[0].mxu0
        %v1580 = vpop.f32.mrb[0].mxu0
        %v1581 = vadd.f32 0.0, %v1580
        %v1582 = vpop.f32.mrb[0].mxu0
        %1583 = vmatprep.mubr.bf16.mxu0 0
        %1584 = vmatmul.mubr.bf16.gmra.mrb[0].mxu0 %v1457
        %v1585 = vpop.f32.mrb[0].mxu0
        %v1586 = vadd.f32 0.0, %v1585
        %v1587 = vpop.f32.mrb[0].mxu0
        %v1588 = vpop.f32.mrb[0].mxu0
        %v1589 = vadd.f32 0.0, %v1588
        %v1590 = vpop.f32.mrb[0].mxu0
        %1591 = vmatprep.mubr.bf16.mxu0 0
        %1592 = vmatmul.mubr.bf16.gmra.mrb[0].mxu0 %v1458
        %v1593 = vpop.f32.mrb[0].mxu0
        %v1594 = vadd.f32 0.0, %v1593
        %v1595 = vpop.f32.mrb[0].mxu0
        %v1596 = vpop.f32.mrb[0].mxu0
        %v1597 = vadd.f32 0.0, %v1596
        %v1598 = vpop.f32.mrb[0].mxu0
        %1599 = vmatprep.mubr.bf16.mxu0 0
        %1600 = vmatmul.mubr.bf16.gmra.mrb[0].mxu0 %v1459
        %v1601 = vpop.f32.mrb[0].mxu0
        %v1602 = vadd.f32 0.0, %v1601
        %v1603 = vpop.f32.mrb[0].mxu0
        %v1604 = vpop.f32.mrb[0].mxu0
        %v1605 = vadd.f32 0.0, %v1604
        %v1606 = vpop.f32.mrb[0].mxu0
        %1607 = vmatprep.mubr.bf16.mxu0 0
        %1608 = vmatmul.mubr.bf16.gmra.mrb[0].mxu0 %v1460
        %v1609 = vpop.f32.mrb[0].mxu0
        %v1610 = vadd.f32 0.0, %v1609
        %v1611 = vpop.f32.mrb[0].mxu0
        %v1612 = vpop.f32.mrb[0].mxu0
        %v1613 = vadd.f32 0.0, %v1612
        %v1614 = vpop.f32.mrb[0].mxu0
        %1615 = vmatprep.mubr.bf16.mxu0 0
        %1616 = vmatmul.mubr.bf16.gmra.mrb[0].mxu0 %v1461
        %v1617 = vpop.f32.mrb[0].mxu0
        %v1618 = vadd.f32 0.0, %v1617
        %v1619 = vpop.f32.mrb[0].mxu0
        %v1620 = vpop.f32.mrb[0].mxu0
        %v1621 = vadd.f32 0.0, %v1620
        %v1622 = vpop.f32.mrb[0].mxu0
        %1623 = vmatprep.mubr.bf16.mxu0 0
        %1624 = vmatmul.mubr.bf16.gmra.mrb[0].mxu0 %v1462
        %v1625 = vpop.f32.mrb[0].mxu0
        %v1626 = vadd.f32 0.0, %v1625
        %v1627 = vpop.f32.mrb[0].mxu0
        %v1628 = vpop.f32.mrb[0].mxu0
        %v1629 = vadd.f32 0.0, %v1628
        %v1630 = vpop.f32.mrb[0].mxu0
        %1631 = vmatprep.mubr.bf16.mxu0 0
        %1632 = vmatmul.mubr.bf16.gmra.mrb[0].mxu0 %v1463
        %v1633 = vpop.f32.mrb[0].mxu0
        %v1634 = vadd.f32 0.0, %v1633
        %v1635 = vpop.f32.mrb[0].mxu0
        %v1636 = vpop.f32.mrb[0].mxu0
        %v1637 = vadd.f32 0.0, %v1636
        %v1638 = vpop.f32.mrb[0].mxu0
        %1639 = vmatprep.mubr.bf16.mxu0 0
        %1640 = vmatmul.mubr.bf16.gmra.mrb[0].mxu0 %v1464
        %v1641 = vpop.f32.mrb[0].mxu0
        %v1642 = vadd.f32 0.0, %v1641
        %v1643 = vpop.f32.mrb[0].mxu0
        %v1644 = vpop.f32.mrb[0].mxu0
        %v1645 = vadd.f32 0.0, %v1644
        %v1646 = vpop.f32.mrb[0].mxu0
        %1647 = vmatprep.mubr.bf16.mxu0 0
        %1648 = vmatmul.mubr.bf16.gmra.mrb[0].mxu0 %v1465
        %v1649 = vpop.f32.mrb[0].mxu0
        %v1650 = vadd.f32 0.0, %v1649
        %v1651 = vpop.f32.mrb[0].mxu0
        %v1652 = vpop.f32.mrb[0].mxu0
        %v1653 = vadd.f32 0.0, %v1652
        %v1654 = vpop.f32.mrb[0].mxu0
        %1655 = vmatprep.mubr.bf16.mxu0 0
        %1656 = vmatmul.mubr.bf16.gmra.mrb[0].mxu0 %v1466
        %v1657 = vpop.f32.mrb[0].mxu0
        %v1658 = vadd.f32 0.0, %v1657
        %v1659 = vpop.f32.mrb[0].mxu0
        %v1660 = vpop.f32.mrb[0].mxu0
        %v1661 = vadd.f32 0.0, %v1660
        %v1662 = vpop.f32.mrb[0].mxu0
        %1663 = vmatprep.mubr.bf16.mxu0 0
        %1664 = vmatmul.mubr.bf16.gmra.mrb[0].mxu0 %v1467
        %v1665 = vpop.f32.mrb[0].mxu0
        %v1666 = vadd.f32 0.0, %v1665
        %v1667 = vpop.f32.mrb[0].mxu0
        %v1668 = vpop.f32.mrb[0].mxu0
        %v1669 = vadd.f32 0.0, %v1668
        %v1670 = vpop.f32.mrb[0].mxu0
        %1671 = vmatprep.mubr.bf16.mxu0 0
        %1672 = vmatmul.mubr.bf16.gmra.mrb[0].mxu0 %v1468
        %v1673 = vpop.f32.mrb[0].mxu0
        %v1674 = vadd.f32 0.0, %v1673
        %v1675 = vpop.f32.mrb[0].mxu0
        %v1676 = vpop.f32.mrb[0].mxu0
        %v1677 = vadd.f32 0.0, %v1676
        %v1678 = vpop.f32.mrb[0].mxu0
        %1679 = vmatprep.mubr.bf16.mxu0 0
        %1680 = vmatmul.mubr.bf16.gmra.mrb[0].mxu0 %v1469
        %v1681 = vpop.f32.mrb[0].mxu0
        %v1682 = vadd.f32 0.0, %v1681
        %v1683 = vpop.f32.mrb[0].mxu0
        %v1684 = vpop.f32.mrb[0].mxu0
        %v1685 = vadd.f32 0.0, %v1684
        %v1686 = vpop.f32.mrb[0].mxu0
        %1687 = vmatprep.mubr.bf16.mxu0 0
        %1688 = vmatmul.mubr.bf16.gmra.mrb[0].mxu0 %v1470
        %v1689 = vpop.f32.mrb[0].mxu0
        %v1690 = vadd.f32 0.0, %v1689
        %v1691 = vpop.f32.mrb[0].mxu0
        %v1692 = vpop.f32.mrb[0].mxu0
        %v1693 = vadd.f32 0.0, %v1692
        %v1694 = vpop.f32.mrb[0].mxu0
        %1695 = vdwg.mxu0
        %v1696 = vpack.c.bf16 %v1573, %v1570
        %v1697 = vpack.c.bf16 %v1581, %v1578
        %v1698 = vpack.c.bf16 %v1589, %v1586
        %v1699 = vpack.c.bf16 %v1597, %v1594
        %v1700 = vpack.c.bf16 %v1605, %v1602
        %v1701 = vpack.c.bf16 %v1613, %v1610
        %v1702 = vpack.c.bf16 %v1621, %v1618
        %v1703 = vpack.c.bf16 %v1629, %v1626
        %v1704 = vpack.c.bf16 %v1637, %v1634
        %v1705 = vpack.c.bf16 %v1645, %v1642
        %v1706 = vpack.c.bf16 %v1653, %v1650
        %v1707 = vpack.c.bf16 %v1661, %v1658
        %v1708 = vpack.c.bf16 %v1669, %v1666
        %v1709 = vpack.c.bf16 %v1677, %v1674
        %v1710 = vpack.c.bf16 %v1685, %v1682
        %v1711 = vpack.c.bf16 %v1693, %v1690
        %v1728 = vunpack.c.l.b16 %v1696
        %v1729 = vunpack.c.h.b16 %v1696
        %v1730 = vunpack.c.l.b16 %v1697
        %v1731 = vunpack.c.h.b16 %v1697
        %v1732 = vunpack.c.l.b16 %v1698
        %v1733 = vunpack.c.h.b16 %v1698
        %v1734 = vunpack.c.l.b16 %v1699
        %v1735 = vunpack.c.h.b16 %v1699
        %v1736 = vunpack.c.l.b16 %v1700
        %v1737 = vunpack.c.h.b16 %v1700
        %v1738 = vunpack.c.l.b16 %v1701
        %v1739 = vunpack.c.h.b16 %v1701
        %v1740 = vunpack.c.l.b16 %v1702
        %v1741 = vunpack.c.h.b16 %v1702
        %v1742 = vunpack.c.l.b16 %v1703
        %v1743 = vunpack.c.h.b16 %v1703
        %v1744 = vunpack.c.l.b16 %v1704
        %v1745 = vunpack.c.h.b16 %v1704
        %v1746 = vunpack.c.l.b16 %v1705
        %v1747 = vunpack.c.h.b16 %v1705
        %v1748 = vunpack.c.l.b16 %v1706
        %v1749 = vunpack.c.h.b16 %v1706
        %v1750 = vunpack.c.l.b16 %v1707
        %v1751 = vunpack.c.h.b16 %v1707
        %v1752 = vunpack.c.l.b16 %v1708
        %v1753 = vunpack.c.h.b16 %v1708
        %v1754 = vunpack.c.l.b16 %v1709
        %v1755 = vunpack.c.h.b16 %v1709
        %v1756 = vunpack.c.l.b16 %v1710
        %v1757 = vunpack.c.h.b16 %v1710
        %v1758 = vunpack.c.l.b16 %v1711
        %v1759 = vunpack.c.h.b16 %v1711
        %v1760 = vpack.c.b16 %v1728, %v1728
        %v1761 = vpack.c.b16 %v1729, %v1729
        %v1762 = vpack.c.b16 %v1730, %v1730
        %v1763 = vpack.c.b16 %v1731, %v1731
        %v1764 = vpack.c.b16 %v1732, %v1732
        %v1765 = vpack.c.b16 %v1733, %v1733
        %v1766 = vpack.c.b16 %v1734, %v1734
        %v1767 = vpack.c.b16 %v1735, %v1735
        %v1768 = vpack.c.b16 %v1736, %v1736
        %v1769 = vpack.c.b16 %v1737, %v1737
        %v1770 = vpack.c.b16 %v1738, %v1738
        %v1771 = vpack.c.b16 %v1739, %v1739
        %v1772 = vpack.c.b16 %v1740, %v1740
        %v1773 = vpack.c.b16 %v1741, %v1741
        %v1774 = vpack.c.b16 %v1742, %v1742
        %v1775 = vpack.c.b16 %v1743, %v1743
        %v1776 = vpack.c.b16 %v1744, %v1744
        %v1777 = vpack.c.b16 %v1745, %v1745
        %v1778 = vpack.c.b16 %v1746, %v1746
        %v1779 = vpack.c.b16 %v1747, %v1747
        %v1780 = vpack.c.b16 %v1748, %v1748
        %v1781 = vpack.c.b16 %v1749, %v1749
        %v1782 = vpack.c.b16 %v1750, %v1750
        %v1783 = vpack.c.b16 %v1751, %v1751
        %v1784 = vpack.c.b16 %v1752, %v1752
        %v1785 = vpack.c.b16 %v1753, %v1753
        %v1786 = vpack.c.b16 %v1754, %v1754
        %v1787 = vpack.c.b16 %v1755, %v1755
        %v1788 = vpack.c.b16 %v1756, %v1756
        %v1789 = vpack.c.b16 %v1757, %v1757
        %v1790 = vpack.c.b16 %v1758, %v1758
        %v1791 = vpack.c.b16 %v1759, %v1759
        %1824 = vst [vmem:[%s252] sm:$0xf] %v1760
        %1825 = vst [vmem:[%s252 + $0x4] sm:$0xf] %v1761
        %1826 = vst [vmem:[%s252 + $0x8] sm:$0xf] %v1762
        %1827 = vst [vmem:[%s252 + $0xc] sm:$0xf] %v1763
        %1828 = vst [vmem:[%s252 + $0x10] sm:$0xf] %v1764
        %1829 = vst [vmem:[%s252 + $0x14] sm:$0xf] %v1765
        %1830 = vst [vmem:[%s252 + $0x18] sm:$0xf] %v1766
        %1831 = vst [vmem:[%s252 + $0x1c] sm:$0xf] %v1767
        %1832 = vst [vmem:[%s252 + $0x20] sm:$0xf] %v1768
        %1833 = vst [vmem:[%s252 + $0x24] sm:$0xf] %v1769
        %1834 = vst [vmem:[%s252 + $0x28] sm:$0xf] %v1770
        %1835 = vst [vmem:[%s252 + $0x2c] sm:$0xf] %v1771
        %1836 = vst [vmem:[%s252 + $0x30] sm:$0xf] %v1772
        %1837 = vst [vmem:[%s252 + $0x34] sm:$0xf] %v1773
        %1838 = vst [vmem:[%s252 + $0x38] sm:$0xf] %v1774
        %1839 = vst [vmem:[%s252 + $0x3c] sm:$0xf] %v1775
        %1840 = vst [vmem:[%s252 + $0x40] sm:$0xf] %v1776
        %1841 = vst [vmem:[%s252 + $0x44] sm:$0xf] %v1777
        %1842 = vst [vmem:[%s252 + $0x48] sm:$0xf] %v1778
        %1843 = vst [vmem:[%s252 + $0x4c] sm:$0xf] %v1779
        %1844 = vst [vmem:[%s252 + $0x50] sm:$0xf] %v1780
        %1845 = vst [vmem:[%s252 + $0x54] sm:$0xf] %v1781
        %1846 = vst [vmem:[%s252 + $0x58] sm:$0xf] %v1782
        %1847 = vst [vmem:[%s252 + $0x5c] sm:$0xf] %v1783
        %1848 = vst [vmem:[%s252 + $0x60] sm:$0xf] %v1784
        %1849 = vst [vmem:[%s252 + $0x64] sm:$0xf] %v1785
        %1850 = vst [vmem:[%s252 + $0x68] sm:$0xf] %v1786
        %1851 = vst [vmem:[%s252 + $0x6c] sm:$0xf] %v1787
        %1852 = vst [vmem:[%s252 + $0x70] sm:$0xf] %v1788
        %1853 = vst [vmem:[%s252 + $0x74] sm:$0xf] %v1789
        %1854 = vst [vmem:[%s252 + $0x78] sm:$0xf] %v1790
        %1855 = vst [vmem:[%s252 + $0x7c] sm:$0xf] %v1791
      $region44: #{scgnn_forward.4} parent=35 // pred_fallthru
        _
      %s1856 = smul.u32 32, %s19
      %p1857 = scmp.lt.s32.totalorder %s1856, 63
      %s1858 = scalar_select %p1857, %s1856, 63
      %s1859 = smul.addr %s1858, 4
      %s1860 = scalar_lea.vmem %s4, %s1859
      // Predicated region
      $region45: #{scgnn_forward.4} parent=35 // pred_check
        %p1861 = pneg %p141
      $region46: #{scgnn_forward.4} parent=35 // pred_check_branch
        %1863 = sbr.rel (%p1861) target = $region48
      $region47: #{scgnn_forward.4} parent=35 // pred_region
        %s1864 = smul.u32 32, %s19
      $region48: #{scgnn_forward.4} parent=35 // pred_fallthru
        _
    $region36: #{scgnn_forward.4} parent=5 // pred_fallthru
      _
    %p1865 = scmp.le.s32.totalorder 2, %s10
    // Predicated region
    $region49: #{scgnn_forward.4} parent=5 // pred_check
      %p1866 = pneg %p1865
    $region50: #{scgnn_forward.4} parent=5 // pred_check_branch
      %1868 = sbr.rel (%p1866) target = $region52
    $region51: #{scgnn_forward.4} parent=5 // pred_region
      %s1869 = ssub.s32 %s10, 2
      // Predicated region
      $region53: #{scgnn_forward.4} parent=51 // pred_check
        %p1870 = pneg %p147
      $region54: #{scgnn_forward.4} parent=51 // pred_check_branch
        %1872 = sbr.rel (%p1870) target = $region56
      $region55: #{scgnn_forward.4} parent=51 // pred_region
        %s1873 = smul.u32 32, %s21
        %p1874 = scmp.lt.s32.totalorder %s1873, 63
        %s1875 = scalar_select %p1874, %s1873, 63
        %s1876 = smul.addr %s1875, 4
        %s1877 = scalar_lea.vmem %s4, %s1876
      $region56: #{scgnn_forward.4} parent=51 // pred_fallthru
        _
    $region52: #{scgnn_forward.4} parent=5 // pred_fallthru
      _
  $region6: #{scgnn_forward.4} parent=0 // loop_footer
    %s14 = sadd.s32 1, %s10
  $region7: #{scgnn_forward.4} parent=0 // loop_footer_branch
    %9 = sbr.rel target = $region3
  $region8: #{scgnn_forward.4} parent=0 // loop_exit
    _

</llo_original>
